<compile_context>
chip_gen: v5e
topology: v5e:2x2
jax: 0.10.0
libtpu: 0.0.40
codegen_flags: <defaults>
</compile_context>

<pallas_src>
import jax
import jax.numpy as jnp
from jax.experimental import pallas as pl
from jax.experimental.pallas import tpu as pltpu


Q_CHUNK1 = 768   # conv1 pooled-pixel chunk (6 * 128); 1400 pixels pad to 2*768
Q_CHUNK2 = 256   # conv2 pooled-pixel chunk (2 * 128); 240 pixels pad to 256


# ----------------------------------------------------------------------------
# Kernel 1: conv1 (as one transposed im2col matmul) + bias + ReLU + 2x2 pool.
# ----------------------------------------------------------------------------
def _conv_pool_kernel(x_ref, w_ref, b_ref, o_ref):
    """x_ref: (1, K, 4*QC) bf16 patches, columns ordered (parity, q).
       w_ref: (OC, K) bf16.  b_ref: (OC, QC) f32.  o_ref: (1, OC, QC) bf16.

    pool(relu(conv + b)) == relu(max_parity(conv) + b) because the bias is
    per-channel and ReLU is monotone.  One dot covers all 4 parities; the max
    is over 4 lane-aligned column blocks.
    """
    s = jnp.dot(w_ref[...], x_ref[0], preferred_element_type=jnp.float32)
    qc = s.shape[1] // 4
    m = jnp.maximum(jnp.maximum(s[:, :qc], s[:, qc:2 * qc]),
                    jnp.maximum(s[:, 2 * qc:3 * qc], s[:, 3 * qc:]))
    m = jnp.maximum(m + b_ref[...], 0.0)
    o_ref[0] = m.astype(o_ref.dtype)


def conv_pool_pallas(patches, w_mat, bias, q_chunk):
    """patches: (N, K, T*4*q_chunk) bf16; w_mat: (OC, K) bf16;
       bias: (OC, q_chunk) f32.  Returns (N, OC, T*q_chunk) bf16."""
    n, k, total = patches.shape
    t = total // (4 * q_chunk)
    oc = w_mat.shape[0]
    return pl.pallas_call(
        _conv_pool_kernel,
        out_shape=jax.ShapeDtypeStruct((n, oc, t * q_chunk), jnp.bfloat16),
        grid=(n, t),
        in_specs=[
            pl.BlockSpec((1, k, 4 * q_chunk), lambda i, j: (i, 0, j)),
            pl.BlockSpec((oc, k), lambda i, j: (0, 0)),
            pl.BlockSpec((oc, q_chunk), lambda i, j: (0, 0)),
        ],
        out_specs=pl.BlockSpec((1, oc, q_chunk), lambda i, j: (i, 0, j)),
        compiler_params=pltpu.CompilerParams(
            dimension_semantics=("parallel", "parallel")),
    )(patches, w_mat, bias)


# ----------------------------------------------------------------------------
# Kernel 2: conv2 + bias + ReLU + pool + fc1 + ReLU + fc2 + ReLU + value_head.
# ----------------------------------------------------------------------------
def _conv2_fc_kernel(x_ref, w2_ref, bc_ref, w1r_ref, b1_ref, w2f_ref,
                     b2f_ref, w3_ref, b3_ref, o_ref):
    """x_ref: (1, 150, 1024) bf16 conv2 patches (parity-major columns).
       w2_ref: (16, 150) bf16.  bc_ref: (16, 256) f32.
       w1r_ref: (256, 2048) bf16 with w1r[q, c*128+n] = fc1_w[c*240+q, n].
       b1/b2f/b3: (1, 128) f32.  w2f/w3: (128, 128) bf16.
       o_ref: (1, 1, 128) f32 (column 0 is the value)."""
    # conv2 (all 4 parities in one dot) + pool + bias + ReLU
    s = jnp.dot(w2_ref[...], x_ref[0], preferred_element_type=jnp.float32)
    qc = s.shape[1] // 4                                     # 256
    m = jnp.maximum(jnp.maximum(s[:, :qc], s[:, qc:2 * qc]),
                    jnp.maximum(s[:, 2 * qc:3 * qc], s[:, 3 * qc:]))
    m = jnp.maximum(m + bc_ref[...], 0.0)                    # (16, 256)
    feat_t = m.astype(jnp.bfloat16)

    # fc1 via wide matmul + diagonal-block extraction (no in-kernel reshape).
    full = jnp.dot(feat_t, w1r_ref[...],
                   preferred_element_type=jnp.float32)        # (16, 2048)
    c2 = full.shape[0]
    nl = full.shape[1] // c2                                  # 128
    h = full[0:1, 0:nl]
    for c in range(1, c2):
        h = h + full[c:c + 1, c * nl:(c + 1) * nl]            # (1, 128)
    h = jnp.maximum(h + b1_ref[...], 0.0)

    # fc2 + ReLU + value head
    h = jnp.dot(h.astype(jnp.bfloat16), w2f_ref[...],
                preferred_element_type=jnp.float32)
    h = jnp.maximum(h + b2f_ref[...], 0.0)
    v = jnp.dot(h.astype(jnp.bfloat16), w3_ref[...],
                preferred_element_type=jnp.float32)
    o_ref[0] = v + b3_ref[...]


def conv2_fc_pallas(p2, w2m, b2c, w1r, b1, w2f, b2f, w3, b3):
    n = p2.shape[0]

    def full_spec(a):
        nd = a.ndim
        return pl.BlockSpec(a.shape, lambda i, _nd=nd: (0,) * _nd)

    return pl.pallas_call(
        _conv2_fc_kernel,
        out_shape=jax.ShapeDtypeStruct((n, 1, 128), jnp.float32),
        grid=(n,),
        in_specs=[pl.BlockSpec((1,) + p2.shape[1:], lambda i: (i, 0, 0)),
                  full_spec(w2m), full_spec(b2c), full_spec(w1r),
                  full_spec(b1), full_spec(w2f), full_spec(b2f),
                  full_spec(w3), full_spec(b3)],
        out_specs=pl.BlockSpec((1, 1, 128), lambda i: (i, 0, 0)),
        compiler_params=pltpu.CompilerParams(
            dimension_semantics=("parallel",)),
    )(p2, w2m, b2c, w1r, b1, w2f, b2f, w3, b3)


# ----------------------------------------------------------------------------
# XLA glue: transposed, pool-parity-ordered, lane-padded im2col patches.
# ----------------------------------------------------------------------------
def _pool_parity_patches(x, kh, kw, q_chunk):
    """x: (N, C, H, W) channel-major input to a VALID conv whose output is
    then 2x2/stride-2 max-pooled.  Returns (N, K, T*4*q_chunk) with
    K = kh*kw*C rows ordered (di, dj, c), and columns ordered
    (q_chunk_index, parity a*2+b, q_in_chunk) where pooled pixel
    q = ph*PW + pw and conv output pixel = (2*ph + a, 2*pw + b)."""
    n, c, h, w = x.shape
    oh, ow = h - kh + 1, w - kw + 1
    ph, pw = oh // 2, ow // 2
    q = ph * pw
    k = kh * kw * c
    sl = [x[:, :, di:di + oh, dj:dj + ow]
          for di in range(kh) for dj in range(kw)]
    p = jnp.stack(sl, axis=1)                    # (n, kh*kw, c, oh, ow)
    p = p.reshape(n, k, oh, ow)                  # rows k = (di, dj, c)
    p = p.reshape(n, k, ph, 2, pw, 2)            # (n, k, ph, a, pw, b)
    p = p.transpose(0, 1, 3, 5, 2, 4)            # (n, k, a, b, ph, pw)
    p = p.reshape(n, k, 4, q)
    t = -(-q // q_chunk)
    p = jnp.pad(p, ((0, 0), (0, 0), (0, 0), (0, t * q_chunk - q)))
    p = p.reshape(n, k, 4, t, q_chunk)
    p = p.transpose(0, 1, 3, 2, 4)               # (n, k, chunk, parity, q)
    return p.reshape(n, k, t * 4 * q_chunk)


# ----------------------------------------------------------------------------
# Parameters (PyTorch layout) + one-time kernel-layout preprocessing
# ----------------------------------------------------------------------------
def init_params(key, in_channels, hidden_dim):
    ks = jax.random.split(key, 10)
    s = 0.05
    return {
        "conv1_w": jax.random.normal(ks[0], (6, in_channels, 5, 5), jnp.float32) * s,
        "conv1_b": jax.random.normal(ks[1], (6,), jnp.float32) * s,
        "conv2_w": jax.random.normal(ks[2], (16, 6, 5, 5), jnp.float32) * s,
        "conv2_b": jax.random.normal(ks[3], (16,), jnp.float32) * s,
        "fc1_w": jax.random.normal(ks[4], (16 * 5 * 48, 120), jnp.float32) * s,
        "fc1_b": jax.random.normal(ks[5], (120,), jnp.float32) * s,
        "fc2_w": jax.random.normal(ks[6], (120, hidden_dim), jnp.float32) * s,
        "fc2_b": jax.random.normal(ks[7], (hidden_dim,), jnp.float32) * s,
        "vh_w": jax.random.normal(ks[8], (hidden_dim, 1), jnp.float32) * s,
        "vh_b": jax.random.normal(ks[9], (1,), jnp.float32) * s,
    }


def preprocess_params(params):
    """One-time (outside jit) weight re-layout / zero-padding / bf16 cast."""
    f32, bf16 = jnp.float32, jnp.bfloat16
    c_in = params["conv1_w"].shape[1]
    hidden_dim = params["fc2_w"].shape[1]
    n1 = params["fc1_w"].shape[1]      # 120
    assert hidden_dim <= 128 and n1 <= 128

    # conv weights: (OC, C, 5, 5) -> (OC, 25*C) with columns in (di, dj, c)
    # order, matching patch rows; conv1 OC padded 6 -> 8.
    w1m = params["conv1_w"].transpose(0, 2, 3, 1).reshape(6, 25 * c_in)
    w1m = jnp.pad(w1m, ((0, 2), (0, 0))).astype(bf16)                # (8, 25C)
    b1c = jnp.zeros((8,), f32).at[:6].set(params["conv1_b"])
    b1c = jnp.tile(b1c[:, None], (1, Q_CHUNK1))                      # (8, 768)

    w2m = params["conv2_w"].transpose(0, 2, 3, 1).reshape(16, 150).astype(bf16)
    b2c = jnp.tile(params["conv2_b"].astype(f32)[:, None], (1, Q_CHUNK2))

    # fc1 rows are in NCHW-flatten order (c, ph, pw) = (c, q) with q = ph*48+pw.
    # Re-lay as w1r[q, c*128 + n] = fc1_w[c*240 + q, n] so the in-kernel
    # featT(16,256) @ w1r(256,2048) + diagonal-block sum computes fc1 exactly.
    fc1_3d = params["fc1_w"].reshape(16, 240, n1)                    # (c, q, n)
    w1r = jnp.zeros((240, 16, 128), f32).at[:, :, :n1].set(
        fc1_3d.transpose(1, 0, 2))
    w1r = jnp.pad(w1r.reshape(240, 2048), ((0, 16), (0, 0))).astype(bf16)

    b1 = jnp.zeros((1, 128), f32).at[0, :n1].set(params["fc1_b"])
    w2f = jnp.zeros((128, 128), bf16).at[:n1, :hidden_dim].set(
        params["fc2_w"].astype(bf16))
    b2f = jnp.zeros((1, 128), f32).at[0, :hidden_dim].set(params["fc2_b"])
    w3 = jnp.zeros((128, 128), bf16).at[:hidden_dim, :1].set(
        params["vh_w"].astype(bf16))
    b3 = jnp.zeros((1, 128), f32).at[0, :1].set(params["vh_b"])

    return {"w1m": w1m, "b1c": b1c, "w2m": w2m, "b2c": b2c,
            "w1r": w1r, "b1": b1, "w2f": w2f, "b2f": b2f, "w3": w3, "b3": b3}


# ----------------------------------------------------------------------------
# ValueNet forward
# ----------------------------------------------------------------------------
def value_net_forward(prep, x):
    """x: (N, C, 28, 200) NCHW f32 -> value (N, 1) f32."""
    n = x.shape[0]
    ph1, pw1 = x.shape[2] // 2, x.shape[3] // 2                      # 14, 100

    xb = jnp.pad(x.astype(jnp.bfloat16), ((0, 0), (0, 0), (2, 2), (2, 2)))
    p1 = _pool_parity_patches(xb, 5, 5, Q_CHUNK1)          # (n, 100, 6144)
    out1 = conv_pool_pallas(p1, prep["w1m"], prep["b1c"], Q_CHUNK1)
    a1 = out1[:, :6, :ph1 * pw1].reshape(n, 6, ph1, pw1)   # (n, 6, 14, 100)

    p2 = _pool_parity_patches(a1, 5, 5, Q_CHUNK2)          # (n, 150, 1024)
    out2 = conv2_fc_pallas(p2, prep["w2m"], prep["b2c"], prep["w1r"],
                           prep["b1"], prep["w2f"], prep["b2f"],
                           prep["w3"], prep["b3"])          # (n, 1, 128)
    return out2[:, 0, :1]


def reference_forward(params, x):
    """Pure-JAX f32 reference (XLA conv / pool, PyTorch layout)."""
    hp = jax.lax.Precision.HIGHEST

    def conv(h, w, b, pad):
        y = jax.lax.conv_general_dilated(
            h, w, window_strides=(1, 1),
            padding=((pad, pad), (pad, pad)),
            dimension_numbers=("NCHW", "OIHW", "NCHW"), precision=hp)
        return y + b[None, :, None, None]

    def pool(h):
        return jax.lax.reduce_window(h, -jnp.inf, jax.lax.max,
                                     (1, 1, 2, 2), (1, 1, 2, 2), "VALID")

    h = pool(jax.nn.relu(conv(x, params["conv1_w"], params["conv1_b"], 2)))
    h = pool(jax.nn.relu(conv(h, params["conv2_w"], params["conv2_b"], 0)))
    h = h.reshape(h.shape[0], -1)                                  # NCHW flatten
    h = jax.nn.relu(jnp.dot(h, params["fc1_w"], precision=hp) + params["fc1_b"])
    h = jax.nn.relu(jnp.dot(h, params["fc2_w"], precision=hp) + params["fc2_b"])
    return jnp.dot(h, params["vh_w"], precision=hp) + params["vh_b"]


if __name__ == "__main__":
    key = jax.random.PRNGKey(0)
    k_in, k_par = jax.random.split(key)

    batch, in_channels, hidden_dim = 2, 4, 32
    # spatial 28 x 200 is fixed by fc1's in_features (16 * 5 * 48)
    x = jax.random.normal(k_in, (batch, in_channels, 28, 200), jnp.float32)
    params = init_params(k_par, in_channels, hidden_dim)
    prep = preprocess_params(params)            # one-time, outside the jit

    value = jax.jit(value_net_forward)(prep, x)
    value = jax.block_until_ready(value)
    assert value.shape == (batch, 1), value.shape

    ref = jax.block_until_ready(jax.jit(reference_forward)(params, x))
    # bf16 matmul path vs f32 reference: allow ~1-2% relative error.
    assert jnp.allclose(value, ref, rtol=2e-2, atol=5e-3), (value, ref)

    print("KERNEL_OK")
</pallas_src>

<mosaic_0001>
module attributes {stable_mosaic.version = 11 : i64} {
  func.func @_conv_pool_kernel(%arg0: i32, %arg1: i32, %arg2: memref<1x100x3072xbf16, #tpu.memory_space<vmem>>, %arg3: memref<8x100xbf16, #tpu.memory_space<vmem>>, %arg4: memref<8x768xf32, #tpu.memory_space<vmem>>, %arg5: memref<1x8x768xbf16, #tpu.memory_space<vmem>>) attributes {dimension_semantics = [#tpu.dimension_semantics<parallel>, #tpu.dimension_semantics<parallel>], iteration_bounds = array<i64: 2, 2>, scalar_prefetch = 0 : i64, scratch_operands = 0 : i64, tpu.core_type = #tpu.core_type<tc>, window_params = [{transform_indices = @transform_0, window_bounds = array<i64: 1, 100, 3072>}, {pipeline_mode = #tpu.pipeline_mode<synchronous>, transform_indices = @transform_1, window_bounds = array<i64: 8, 100>}, {pipeline_mode = #tpu.pipeline_mode<synchronous>, transform_indices = @transform_2, window_bounds = array<i64: 8, 768>}, {transform_indices = @transform_3, window_bounds = array<i64: 1, 8, 768>}]} {
    %c0 = arith.constant 0 : index
    %c0_0 = arith.constant 0 : index
    %0 = vector.load %arg3[%c0, %c0_0] : memref<8x100xbf16, #tpu.memory_space<vmem>>, vector<8x100xbf16>
    %c0_1 = arith.constant 0 : index
    %c0_2 = arith.constant 0 : index
    %c0_3 = arith.constant 0 : index
    %1 = vector.load %arg2[%c0_1, %c0_2, %c0_3] : memref<1x100x3072xbf16, #tpu.memory_space<vmem>>, vector<1x100x3072xbf16>
    %2 = vector.shape_cast %1 : vector<1x100x3072xbf16> to vector<100x3072xbf16>
    %cst = arith.constant dense<0.000000e+00> : vector<8x3072xf32>
    %3 = tpu.matmul %0, %2, %cst {dimension_numbers = #tpu.dot_dimension_numbers<[1], [0], [0], [1], [0, 0, 1, 1], [], []>} : vector<8x100xbf16>, vector<100x3072xbf16>, vector<8x3072xf32> -> vector<8x3072xf32>
    %4 = vector.extract_strided_slice %3 {offsets = [0, 0], sizes = [8, 768], strides = [1, 1]} : vector<8x3072xf32> to vector<8x768xf32>
    %5 = vector.extract_strided_slice %3 {offsets = [0, 768], sizes = [8, 768], strides = [1, 1]} : vector<8x3072xf32> to vector<8x768xf32>
    %6 = arith.maximumf %4, %5 : vector<8x768xf32>
    %7 = vector.extract_strided_slice %3 {offsets = [0, 1536], sizes = [8, 768], strides = [1, 1]} : vector<8x3072xf32> to vector<8x768xf32>
    %8 = vector.extract_strided_slice %3 {offsets = [0, 2304], sizes = [8, 768], strides = [1, 1]} : vector<8x3072xf32> to vector<8x768xf32>
    %9 = arith.maximumf %7, %8 : vector<8x768xf32>
    %10 = arith.maximumf %6, %9 : vector<8x768xf32>
    %c0_4 = arith.constant 0 : index
    %c0_5 = arith.constant 0 : index
    %11 = vector.load %arg4[%c0_4, %c0_5] : memref<8x768xf32, #tpu.memory_space<vmem>>, vector<8x768xf32>
    %12 = arith.addf %10, %11 : vector<8x768xf32>
    %cst_6 = arith.constant 0.000000e+00 : f32
    %13 = vector.broadcast %cst_6 : f32 to vector<8x768xf32>
    %14 = arith.maximumf %12, %13 : vector<8x768xf32>
    %15 = arith.truncf %14 : vector<8x768xf32> to vector<8x768xbf16>
    %c0_7 = arith.constant 0 : index
    %c0_8 = arith.constant 0 : index
    %c0_9 = arith.constant 0 : index
    %16 = vector.load %arg5[%c0_7, %c0_8, %c0_9] : memref<1x8x768xbf16, #tpu.memory_space<vmem>>, vector<1x8x768xbf16>
    %17 = vector.shape_cast %16 : vector<1x8x768xbf16> to vector<8x768xbf16>
    %18 = vector.shape_cast %15 : vector<8x768xbf16> to vector<1x8x768xbf16>
    tpu.vector_store %arg5[%c0_7, %c0_8, %c0_9], %18 {strides = array<i32>} : memref<1x8x768xbf16, #tpu.memory_space<vmem>>, vector<1x8x768xbf16>,
    return
  }
  func.func @transform_0(%arg0: i32, %arg1: i32) -> (i32, i32, i32) {
    %c0_i32 = arith.constant 0 : i32
    %c0_i32_0 = arith.constant 0 : i32
    return %arg0, %c0_i32, %arg1 : i32, i32, i32
  }
  func.func @transform_1(%arg0: i32, %arg1: i32) -> (i32, i32) {
    %c0_i32 = arith.constant 0 : i32
    %c0_i32_0 = arith.constant 0 : i32
    %c0_i32_1 = arith.constant 0 : i32
    return %c0_i32, %c0_i32_0 : i32, i32
  }
  func.func @transform_2(%arg0: i32, %arg1: i32) -> (i32, i32) {
    %c0_i32 = arith.constant 0 : i32
    %c0_i32_0 = arith.constant 0 : i32
    %c0_i32_1 = arith.constant 0 : i32
    return %c0_i32, %c0_i32_0 : i32, i32
  }
  func.func @transform_3(%arg0: i32, %arg1: i32) -> (i32, i32, i32) {
    %c0_i32 = arith.constant 0 : i32
    %c0_i32_0 = arith.constant 0 : i32
    return %arg0, %c0_i32, %arg1 : i32, i32, i32
  }
}

module attributes {stable_mosaic.version = 11 : i64} {
  func.func @_conv2_fc_kernel(%arg0: i32, %arg1: memref<1x150x1024xbf16, #tpu.memory_space<vmem>>, %arg2: memref<16x150xbf16, #tpu.memory_space<vmem>>, %arg3: memref<16x256xf32, #tpu.memory_space<vmem>>, %arg4: memref<256x2048xbf16, #tpu.memory_space<vmem>>, %arg5: memref<1x128xf32, #tpu.memory_space<vmem>>, %arg6: memref<128x128xbf16, #tpu.memory_space<vmem>>, %arg7: memref<1x128xf32, #tpu.memory_space<vmem>>, %arg8: memref<128x128xbf16, #tpu.memory_space<vmem>>, %arg9: memref<1x128xf32, #tpu.memory_space<vmem>>, %arg10: memref<1x1x128xf32, #tpu.memory_space<vmem>>) attributes {dimension_semantics = [#tpu.dimension_semantics<parallel>], iteration_bounds = array<i64: 2>, scalar_prefetch = 0 : i64, scratch_operands = 0 : i64, tpu.core_type = #tpu.core_type<tc>, window_params = [{transform_indices = @transform_0, window_bounds = array<i64: 1, 150, 1024>}, {pipeline_mode = #tpu.pipeline_mode<synchronous>, transform_indices = @transform_1, window_bounds = array<i64: 16, 150>}, {pipeline_mode = #tpu.pipeline_mode<synchronous>, transform_indices = @transform_2, window_bounds = array<i64: 16, 256>}, {pipeline_mode = #tpu.pipeline_mode<synchronous>, transform_indices = @transform_3, window_bounds = array<i64: 256, 2048>}, {pipeline_mode = #tpu.pipeline_mode<synchronous>, transform_indices = @transform_4, window_bounds = array<i64: 1, 128>}, {pipeline_mode = #tpu.pipeline_mode<synchronous>, transform_indices = @transform_5, window_bounds = array<i64: 128, 128>}, {pipeline_mode = #tpu.pipeline_mode<synchronous>, transform_indices = @transform_6, window_bounds = array<i64: 1, 128>}, {pipeline_mode = #tpu.pipeline_mode<synchronous>, transform_indices = @transform_7, window_bounds = array<i64: 128, 128>}, {pipeline_mode = #tpu.pipeline_mode<synchronous>, transform_indices = @transform_8, window_bounds = array<i64: 1, 128>}, {transform_indices = @transform_9, window_bounds = array<i64: 1, 1, 128>}]} {
    %c0 = arith.constant 0 : index
    %c0_0 = arith.constant 0 : index
    %0 = vector.load %arg2[%c0, %c0_0] : memref<16x150xbf16, #tpu.memory_space<vmem>>, vector<16x150xbf16>
    %c0_1 = arith.constant 0 : index
    %c0_2 = arith.constant 0 : index
    %c0_3 = arith.constant 0 : index
    %1 = vector.load %arg1[%c0_1, %c0_2, %c0_3] : memref<1x150x1024xbf16, #tpu.memory_space<vmem>>, vector<1x150x1024xbf16>
    %2 = vector.shape_cast %1 : vector<1x150x1024xbf16> to vector<150x1024xbf16>
    %cst = arith.constant dense<0.000000e+00> : vector<16x1024xf32>
    %3 = tpu.matmul %0, %2, %cst {dimension_numbers = #tpu.dot_dimension_numbers<[1], [0], [0], [1], [0, 0, 1, 1], [], []>} : vector<16x150xbf16>, vector<150x1024xbf16>, vector<16x1024xf32> -> vector<16x1024xf32>
    %4 = vector.extract_strided_slice %3 {offsets = [0, 0], sizes = [16, 256], strides = [1, 1]} : vector<16x1024xf32> to vector<16x256xf32>
    %5 = vector.extract_strided_slice %3 {offsets = [0, 256], sizes = [16, 256], strides = [1, 1]} : vector<16x1024xf32> to vector<16x256xf32>
    %6 = arith.maximumf %4, %5 : vector<16x256xf32>
    %7 = vector.extract_strided_slice %3 {offsets = [0, 512], sizes = [16, 256], strides = [1, 1]} : vector<16x1024xf32> to vector<16x256xf32>
    %8 = vector.extract_strided_slice %3 {offsets = [0, 768], sizes = [16, 256], strides = [1, 1]} : vector<16x1024xf32> to vector<16x256xf32>
    %9 = arith.maximumf %7, %8 : vector<16x256xf32>
    %10 = arith.maximumf %6, %9 : vector<16x256xf32>
    %c0_4 = arith.constant 0 : index
    %c0_5 = arith.constant 0 : index
    %11 = vector.load %arg3[%c0_4, %c0_5] : memref<16x256xf32, #tpu.memory_space<vmem>>, vector<16x256xf32>
    %12 = arith.addf %10, %11 : vector<16x256xf32>
    %cst_6 = arith.constant 0.000000e+00 : f32
    %13 = vector.broadcast %cst_6 : f32 to vector<16x256xf32>
    %14 = arith.maximumf %12, %13 : vector<16x256xf32>
    %15 = arith.truncf %14 : vector<16x256xf32> to vector<16x256xbf16>
    %c0_7 = arith.constant 0 : index
    %c0_8 = arith.constant 0 : index
    %16 = vector.load %arg4[%c0_7, %c0_8] : memref<256x2048xbf16, #tpu.memory_space<vmem>>, vector<256x2048xbf16>
    %cst_9 = arith.constant dense<0.000000e+00> : vector<16x2048xf32>
    %17 = tpu.matmul %15, %16, %cst_9 {dimension_numbers = #tpu.dot_dimension_numbers<[1], [0], [0], [1], [0, 0, 1, 1], [], []>} : vector<16x256xbf16>, vector<256x2048xbf16>, vector<16x2048xf32> -> vector<16x2048xf32>
    %18 = vector.extract_strided_slice %17 {offsets = [0, 0], sizes = [1, 128], strides = [1, 1]} : vector<16x2048xf32> to vector<1x128xf32>
    %19 = vector.extract_strided_slice %17 {offsets = [1, 128], sizes = [1, 128], strides = [1, 1]} : vector<16x2048xf32> to vector<1x128xf32>
    %20 = arith.addf %18, %19 : vector<1x128xf32>
    %21 = vector.extract_strided_slice %17 {offsets = [2, 256], sizes = [1, 128], strides = [1, 1]} : vector<16x2048xf32> to vector<1x128xf32>
    %22 = arith.addf %20, %21 : vector<1x128xf32>
    %23 = vector.extract_strided_slice %17 {offsets = [3, 384], sizes = [1, 128], strides = [1, 1]} : vector<16x2048xf32> to vector<1x128xf32>
    %24 = arith.addf %22, %23 : vector<1x128xf32>
    %25 = vector.extract_strided_slice %17 {offsets = [4, 512], sizes = [1, 128], strides = [1, 1]} : vector<16x2048xf32> to vector<1x128xf32>
    %26 = arith.addf %24, %25 : vector<1x128xf32>
    %27 = vector.extract_strided_slice %17 {offsets = [5, 640], sizes = [1, 128], strides = [1, 1]} : vector<16x2048xf32> to vector<1x128xf32>
    %28 = arith.addf %26, %27 : vector<1x128xf32>
    %29 = vector.extract_strided_slice %17 {offsets = [6, 768], sizes = [1, 128], strides = [1, 1]} : vector<16x2048xf32> to vector<1x128xf32>
    %30 = arith.addf %28, %29 : vector<1x128xf32>
    %31 = vector.extract_strided_slice %17 {offsets = [7, 896], sizes = [1, 128], strides = [1, 1]} : vector<16x2048xf32> to vector<1x128xf32>
    %32 = arith.addf %30, %31 : vector<1x128xf32>
    %33 = vector.extract_strided_slice %17 {offsets = [8, 1024], sizes = [1, 128], strides = [1, 1]} : vector<16x2048xf32> to vector<1x128xf32>
    %34 = arith.addf %32, %33 : vector<1x128xf32>
    %35 = vector.extract_strided_slice %17 {offsets = [9, 1152], sizes = [1, 128], strides = [1, 1]} : vector<16x2048xf32> to vector<1x128xf32>
    %36 = arith.addf %34, %35 : vector<1x128xf32>
    %37 = vector.extract_strided_slice %17 {offsets = [10, 1280], sizes = [1, 128], strides = [1, 1]} : vector<16x2048xf32> to vector<1x128xf32>
    %38 = arith.addf %36, %37 : vector<1x128xf32>
    %39 = vector.extract_strided_slice %17 {offsets = [11, 1408], sizes = [1, 128], strides = [1, 1]} : vector<16x2048xf32> to vector<1x128xf32>
    %40 = arith.addf %38, %39 : vector<1x128xf32>
    %41 = vector.extract_strided_slice %17 {offsets = [12, 1536], sizes = [1, 128], strides = [1, 1]} : vector<16x2048xf32> to vector<1x128xf32>
    %42 = arith.addf %40, %41 : vector<1x128xf32>
    %43 = vector.extract_strided_slice %17 {offsets = [13, 1664], sizes = [1, 128], strides = [1, 1]} : vector<16x2048xf32> to vector<1x128xf32>
    %44 = arith.addf %42, %43 : vector<1x128xf32>
    %45 = vector.extract_strided_slice %17 {offsets = [14, 1792], sizes = [1, 128], strides = [1, 1]} : vector<16x2048xf32> to vector<1x128xf32>
    %46 = arith.addf %44, %45 : vector<1x128xf32>
    %47 = vector.extract_strided_slice %17 {offsets = [15, 1920], sizes = [1, 128], strides = [1, 1]} : vector<16x2048xf32> to vector<1x128xf32>
    %48 = arith.addf %46, %47 : vector<1x128xf32>
    %c0_10 = arith.constant 0 : index
    %c0_11 = arith.constant 0 : index
    %49 = vector.load %arg5[%c0_10, %c0_11] : memref<1x128xf32, #tpu.memory_space<vmem>>, vector<1x128xf32>
    %50 = arith.addf %48, %49 : vector<1x128xf32>
    %cst_12 = arith.constant 0.000000e+00 : f32
    %51 = vector.broadcast %cst_12 : f32 to vector<1x128xf32>
    %52 = arith.maximumf %50, %51 : vector<1x128xf32>
    %53 = arith.truncf %52 : vector<1x128xf32> to vector<1x128xbf16>
    %c0_13 = arith.constant 0 : index
    %c0_14 = arith.constant 0 : index
    %54 = vector.load %arg6[%c0_13, %c0_14] : memref<128x128xbf16, #tpu.memory_space<vmem>>, vector<128x128xbf16>
    %cst_15 = arith.constant dense<0.000000e+00> : vector<1x128xf32>
    %55 = tpu.matmul %53, %54, %cst_15 {dimension_numbers = #tpu.dot_dimension_numbers<[1], [0], [0], [1], [0, 0, 1, 1], [], []>} : vector<1x128xbf16>, vector<128x128xbf16>, vector<1x128xf32> -> vector<1x128xf32>
    %c0_16 = arith.constant 0 : index
    %c0_17 = arith.constant 0 : index
    %56 = vector.load %arg7[%c0_16, %c0_17] : memref<1x128xf32, #tpu.memory_space<vmem>>, vector<1x128xf32>
    %57 = arith.addf %55, %56 : vector<1x128xf32>
    %cst_18 = arith.constant 0.000000e+00 : f32
    %58 = vector.broadcast %cst_18 : f32 to vector<1x128xf32>
    %59 = arith.maximumf %57, %58 : vector<1x128xf32>
    %60 = arith.truncf %59 : vector<1x128xf32> to vector<1x128xbf16>
    %c0_19 = arith.constant 0 : index
    %c0_20 = arith.constant 0 : index
    %61 = vector.load %arg8[%c0_19, %c0_20] : memref<128x128xbf16, #tpu.memory_space<vmem>>, vector<128x128xbf16>
    %cst_21 = arith.constant dense<0.000000e+00> : vector<1x128xf32>
    %62 = tpu.matmul %60, %61, %cst_21 {dimension_numbers = #tpu.dot_dimension_numbers<[1], [0], [0], [1], [0, 0, 1, 1], [], []>} : vector<1x128xbf16>, vector<128x128xbf16>, vector<1x128xf32> -> vector<1x128xf32>
    %c0_22 = arith.constant 0 : index
    %c0_23 = arith.constant 0 : index
    %63 = vector.load %arg9[%c0_22, %c0_23] : memref<1x128xf32, #tpu.memory_space<vmem>>, vector<1x128xf32>
    %64 = arith.addf %62, %63 : vector<1x128xf32>
    %c0_24 = arith.constant 0 : index
    %c0_25 = arith.constant 0 : index
    %c0_26 = arith.constant 0 : index
    %65 = vector.load %arg10[%c0_24, %c0_25, %c0_26] : memref<1x1x128xf32, #tpu.memory_space<vmem>>, vector<1x1x128xf32>
    %66 = vector.shape_cast %65 : vector<1x1x128xf32> to vector<1x128xf32>
    %67 = vector.shape_cast %64 : vector<1x128xf32> to vector<1x1x128xf32>
    tpu.vector_store %arg10[%c0_24, %c0_25, %c0_26], %67 {strides = array<i32>} : memref<1x1x128xf32, #tpu.memory_space<vmem>>, vector<1x1x128xf32>,
    return
  }
  func.func @transform_0(%arg0: i32) -> (i32, i32, i32) {
    %c0_i32 = arith.constant 0 : i32
    %c0_i32_0 = arith.constant 0 : i32
    %c0_i32_1 = arith.constant 0 : i32
    return %arg0, %c0_i32, %c0_i32_0 : i32, i32, i32
  }
  func.func @transform_1(%arg0: i32) -> (i32, i32) {
    %c0_i32 = arith.constant 0 : i32
    %c0_i32_0 = arith.constant 0 : i32
    %c0_i32_1 = arith.constant 0 : i32
    return %c0_i32, %c0_i32_0 : i32, i32
  }
  func.func @transform_2(%arg0: i32) -> (i32, i32) {
    %c0_i32 = arith.constant 0 : i32
    %c0_i32_0 = arith.constant 0 : i32
    %c0_i32_1 = arith.constant 0 : i32
    return %c0_i32, %c0_i32_0 : i32, i32
  }
  func.func @transform_3(%arg0: i32) -> (i32, i32) {
    %c0_i32 = arith.constant 0 : i32
    %c0_i32_0 = arith.constant 0 : i32
    %c0_i32_1 = arith.constant 0 : i32
    return %c0_i32, %c0_i32_0 : i32, i32
  }
  func.func @transform_4(%arg0: i32) -> (i32, i32) {
    %c0_i32 = arith.constant 0 : i32
    %c0_i32_0 = arith.constant 0 : i32
    %c0_i32_1 = arith.constant 0 : i32
    return %c0_i32, %c0_i32_0 : i32, i32
  }
  func.func @transform_5(%arg0: i32) -> (i32, i32) {
    %c0_i32 = arith.constant 0 : i32
    %c0_i32_0 = arith.constant 0 : i32
    %c0_i32_1 = arith.constant 0 : i32
    return %c0_i32, %c0_i32_0 : i32, i32
  }
  func.func @transform_6(%arg0: i32) -> (i32, i32) {
    %c0_i32 = arith.constant 0 : i32
    %c0_i32_0 = arith.constant 0 : i32
    %c0_i32_1 = arith.constant 0 : i32
    return %c0_i32, %c0_i32_0 : i32, i32
  }
  func.func @transform_7(%arg0: i32) -> (i32, i32) {
    %c0_i32 = arith.constant 0 : i32
    %c0_i32_0 = arith.constant 0 : i32
    %c0_i32_1 = arith.constant 0 : i32
    return %c0_i32, %c0_i32_0 : i32, i32
  }
  func.func @transform_8(%arg0: i32) -> (i32, i32) {
    %c0_i32 = arith.constant 0 : i32
    %c0_i32_0 = arith.constant 0 : i32
    %c0_i32_1 = arith.constant 0 : i32
    return %c0_i32, %c0_i32_0 : i32, i32
  }
  func.func @transform_9(%arg0: i32) -> (i32, i32, i32) {
    %c0_i32 = arith.constant 0 : i32
    %c0_i32_0 = arith.constant 0 : i32
    %c0_i32_1 = arith.constant 0 : i32
    return %arg0, %c0_i32, %c0_i32_0 : i32, i32, i32
  }
}

</mosaic_0001>

<llo_original>
// kernel: value_net_forward.2
$region0: #{value_net_forward.2}
  #allocation0 [shape = 'u32[]', space=smem, size = 0x4, offset = 0x4, fixed_abs, tag = 'smem constant byte address 0x4 - core index']
  #allocation1 [shape = 'u32[72,128]{1,0:T(1,128)}', space=vmem, size = 0x9000, scoped, tag = 'internal scratch']
  %s0 = inlined_call_operand.vmem [shape: bf16[2,100,6144], index: 0, kind: input, shape index: {}]
  %s1 = inlined_call_operand.vmem [shape: bf16[8,100], index: 1, kind: input, shape index: {}]
  %s2 = inlined_call_operand.vmem [shape: f32[8,768], index: 2, kind: input, shape index: {}]
  %s3 = inlined_call_operand.vmem [shape: bf16[2,8,1536], index: 3, kind: output, shape index: {}]
  %s4 = sld [smem:[#allocation0]]
  $region68: #{value_net_forward.2} parent=0
    _
  %s6 = ssub.s32 1, %s4
  %s7 = scalar_select 0, %s6, %s4
  $region1: #{value_net_forward.2} parent=0
    #allocation2 [shape = 'u8[1277952]{0}', space=vmem, size = 0x138000, scoped, tag = 'input window, operand 0']
    loop: start=0, step=1, limit=6
    $region2: #{value_net_forward.2} parent=1 // loop_pre_header
      _
    $region3: #{value_net_forward.2} parent=1 // loop_header
      %s9 = sphi 0, %s13
      %p10 = scmp.ge.s32.totalorder %s9, 6
      %s16 = sphi 0, %s28
      %s17 = sphi 0, %s24
      %s18 = sphi 0, %s16
      %s19 = sphi 0, %s17
      %s20 = sphi 0, %s18
      %s21 = sphi 0, %s19
      %s33 = sphi 0, %s35
      %s36 = sphi 0, %s33
      %s37 = sphi 0, %s36
      %s53 = sphi 0, %s37
      %s57 = sphi 0, %s57
      %s59 = sphi 0, %s57
      %s60 = sphi 0, %s59
      %s74 = sphi 0, %s60
      %s78 = sphi 0, %s78
      %s80 = sphi 0, %s78
      %s81 = sphi 0, %s80
      %s95 = sphi 0, %s81
      %s103 = sphi 0, %s105
      %s106 = sphi 0, %s103
      %s107 = sphi 0, %s106
      %s123 = sphi 0, %s107
    $region4: #{value_net_forward.2} parent=1 // loop_header_branch
      %12 = sbr.rel (%p10) target = $region8
    $region5: #{value_net_forward.2} parent=1 // loop_body
      %s14 = ssub.s32 %s9, 1
      %s15 = ssub.s32 %s9, 2
      %s22 = sadd.s32 1, %s17
      %p23 = scmp.ge.s32.totalorder %s22, 2
      %s24 = scalar_select %p23, 0, %s22
      %s25 = sadd.s32 1, %s16
      %s26 = scalar_select %p23, %s25, %s16
      %p27 = scmp.ge.s32.totalorder %s26, 2
      %s28 = scalar_select %p27, 0, %s26
      %s29 = ssub.s32 %s16, %s28
      %s30 = ssub.s32 %s17, %s24
      %s31 = sor.u32 %s29, %s30
      %p32 = scmp.eq.s32.totalorder %s31, 0
      %s34 = sadd.s32 %s33, 1
      %s35 = scalar_select %p32, %s33, %s34
      %p38 = pneg %p32
      %p39 = scmp.eq.s32.totalorder %s9, 3
      %p40 = por %p38, %p39
      %p41 = scmp.ne.s32.totalorder %s33, %s36
      %p42 = scmp.eq.s32.totalorder %s9, 0
      %p43 = por %p41, %p42
      %p44 = scmp.ne.s32.totalorder %s33, %s36
      %p45 = scmp.eq.s32.totalorder %s14, 3
      %p46 = por %p44, %p45
      %p47 = scmp.ne.s32.totalorder %s36, %s37
      %p48 = scmp.eq.s32.totalorder %s14, 0
      %p49 = por %p47, %p48
      %p50 = scmp.ne.s32.totalorder %s36, %s37
      %p51 = scmp.eq.s32.totalorder %s15, 3
      %p52 = por %p50, %p51
      %p54 = scmp.ne.s32.totalorder %s37, %s53
      %p55 = scmp.eq.s32.totalorder %s15, 0
      %p56 = por %p54, %p55
      %s58 = sadd.s32 %s57, 1
      %p61 = scmp.eq.s32.totalorder %s9, 3
      %p62 = scmp.ne.s32.totalorder %s57, %s59
      %p63 = scmp.eq.s32.totalorder %s9, 0
      %p64 = por %p62, %p63
      %p65 = scmp.ne.s32.totalorder %s57, %s59
      %p66 = scmp.eq.s32.totalorder %s14, 3
      %p67 = por %p65, %p66
      %p68 = scmp.ne.s32.totalorder %s59, %s60
      %p69 = scmp.eq.s32.totalorder %s14, 0
      %p70 = por %p68, %p69
      %p71 = scmp.ne.s32.totalorder %s59, %s60
      %p72 = scmp.eq.s32.totalorder %s15, 3
      %p73 = por %p71, %p72
      %p75 = scmp.ne.s32.totalorder %s60, %s74
      %p76 = scmp.eq.s32.totalorder %s15, 0
      %p77 = por %p75, %p76
      %s79 = sadd.s32 %s78, 1
      %p82 = scmp.eq.s32.totalorder %s9, 3
      %p83 = scmp.ne.s32.totalorder %s78, %s80
      %p84 = scmp.eq.s32.totalorder %s9, 0
      %p85 = por %p83, %p84
      %p86 = scmp.ne.s32.totalorder %s78, %s80
      %p87 = scmp.eq.s32.totalorder %s14, 3
      %p88 = por %p86, %p87
      %p89 = scmp.ne.s32.totalorder %s80, %s81
      %p90 = scmp.eq.s32.totalorder %s14, 0
      %p91 = por %p89, %p90
      %p92 = scmp.ne.s32.totalorder %s80, %s81
      %p93 = scmp.eq.s32.totalorder %s15, 3
      %p94 = por %p92, %p93
      %p96 = scmp.ne.s32.totalorder %s81, %s95
      %p97 = scmp.eq.s32.totalorder %s15, 0
      %p98 = por %p96, %p97
      %s99 = ssub.s32 %s16, %s28
      %s100 = ssub.s32 %s17, %s24
      %s101 = sor.u32 %s99, %s100
      %p102 = scmp.eq.s32.totalorder %s101, 0
      %s104 = sadd.s32 %s103, 1
      %s105 = scalar_select %p102, %s103, %s104
      %p108 = pneg %p102
      %p109 = scmp.eq.s32.totalorder %s9, 3
      %p110 = por %p108, %p109
      %p111 = scmp.ne.s32.totalorder %s103, %s106
      %p112 = scmp.eq.s32.totalorder %s9, 0
      %p113 = por %p111, %p112
      %p114 = scmp.ne.s32.totalorder %s103, %s106
      %p115 = scmp.eq.s32.totalorder %s14, 3
      %p116 = por %p114, %p115
      %p117 = scmp.ne.s32.totalorder %s106, %s107
      %p118 = scmp.eq.s32.totalorder %s14, 0
      %p119 = por %p117, %p118
      %p120 = scmp.ne.s32.totalorder %s106, %s107
      %p121 = scmp.eq.s32.totalorder %s15, 3
      %p122 = por %p120, %p121
      %p124 = scmp.ne.s32.totalorder %s107, %s123
      %p125 = scmp.eq.s32.totalorder %s15, 0
      %p126 = por %p124, %p125
      %p127 = scmp.le.s32.totalorder 1, %s9
      %p128 = scmp.lt.s32.totalorder %s9, 5
      %p129 = pnand %p127, %p128
      %p130 = pneg %p129
      // Predicated region
      $region9: #{value_net_forward.2} parent=5 // pred_check
        _
      $region10: #{value_net_forward.2} parent=5 // pred_check_branch
        %132 = sbr.rel (%p129) target = $region12
      $region11: #{value_net_forward.2} parent=5 // pred_region
        %s133 = ssub.s32 %s9, 1
        // Predicated region
        $region13: #{value_net_forward.2} parent=11 // pred_check
          %p134 = pneg %p70
        $region14: #{value_net_forward.2} parent=11 // pred_check_branch
          %136 = sbr.rel (%p134) target = $region16
        $region15: #{value_net_forward.2} parent=11 // pred_region
          _
        $region16: #{value_net_forward.2} parent=11 // pred_fallthru
          _
        // Predicated region
        $region17: #{value_net_forward.2} parent=11 // pred_check
          %p137 = pneg %p91
        $region18: #{value_net_forward.2} parent=11 // pred_check_branch
          %139 = sbr.rel (%p137) target = $region20
        $region19: #{value_net_forward.2} parent=11 // pred_region
          _
        $region20: #{value_net_forward.2} parent=11 // pred_fallthru
          _
      $region12: #{value_net_forward.2} parent=5 // pred_fallthru
        _
      %p140 = scmp.lt.s32.totalorder %s9, 4
      // Predicated region
      $region21: #{value_net_forward.2} parent=5 // pred_check
        %p141 = pneg %p140
      $region22: #{value_net_forward.2} parent=5 // pred_check_branch
        %143 = sbr.rel (%p141) target = $region24
      $region23: #{value_net_forward.2} parent=5 // pred_region
        // Predicated region
        $region25: #{value_net_forward.2} parent=23 // pred_check
          %p144 = pneg %p43
        $region26: #{value_net_forward.2} parent=23 // pred_check_branch
          %146 = sbr.rel (%p144) target = $region28
        $region27: #{value_net_forward.2} parent=23 // pred_region
          %s147 = sand.u32 %s33, 1
          %s148 = sand.u32 %s33, 1
          %s149 = smul.addr %s148, 1248
          %s150 = scalar_lea.vmem [#allocation2], %s149
          %s151 = smul.u32 24, %s17
          %s152 = smul.addr %s16, 624
          %s153 = sadd.s32 %s151, %s152
          %s154 = smul.addr %s153, 4
          %s155 = scalar_lea.vmem %s0, %s154
          // Predicated region
          $region29: #{value_net_forward.2} parent=27 // pred_check
            _
          $region30: #{value_net_forward.2} parent=27 // pred_check_branch
            %157 = sbr.rel (0) target = $region32
          $region31: #{value_net_forward.2} parent=27 // pred_region
            // Predicated region
            $region33: #{value_net_forward.2} parent=31 // pred_check
              _
            $region34: #{value_net_forward.2} parent=31 // pred_check_branch
              %159 = sbr.rel (0) target = $region36
            $region35: #{value_net_forward.2} parent=31 // pred_region
              loop: start=0, step=1, limit=1
              $region37: #{value_net_forward.2} parent=35 // loop_pre_header
                _
              $region38: #{value_net_forward.2} parent=35 // loop_header
                %s161 = sphi 0, %s165
                %p162 = scmp.ge.s32.totalorder %s161, 1
                %s166 = sphi %s155, %s155
                %s167 = sphi %s150, %s150
              $region39: #{value_net_forward.2} parent=35 // loop_header_branch
                %164 = sbr.rel (%p162) target = $region43
              $region40: #{value_net_forward.2} parent=35 // loop_body
                %v168 = vld [vmem:[%s166] sm:$0xff]
                %169 = vst [vmem:[%s167] sm:$0xff] %v168
                %v170 = vld [vmem:[%s166 + $0x8] sm:$0xff]
                %171 = vst [vmem:[%s167 + $0x8] sm:$0xff] %v170
                %v172 = vld [vmem:[%s166 + $0x10] sm:$0xff]
                %173 = vst [vmem:[%s167 + $0x10] sm:$0xff] %v172
                %v174 = vld [vmem:[%s166 + $0x18] sm:$0xff]
                %175 = vst [vmem:[%s167 + $0x18] sm:$0xff] %v174
                %v176 = vld [vmem:[%s166 + $0x20] sm:$0xff]
                %177 = vst [vmem:[%s167 + $0x20] sm:$0xff] %v176
                %v178 = vld [vmem:[%s166 + $0x28] sm:$0xff]
                %179 = vst [vmem:[%s167 + $0x28] sm:$0xff] %v178
                %v180 = vld [vmem:[%s166 + $0x30] sm:$0xff]
                %181 = vst [vmem:[%s167 + $0x30] sm:$0xff] %v180
                %v182 = vld [vmem:[%s166 + $0x38] sm:$0xff]
                %183 = vst [vmem:[%s167 + $0x38] sm:$0xff] %v182
                %v184 = vld [vmem:[%s166 + $0x40] sm:$0xff]
                %185 = vst [vmem:[%s167 + $0x40] sm:$0xff] %v184
                %v186 = vld [vmem:[%s166 + $0x48] sm:$0xff]
                %187 = vst [vmem:[%s167 + $0x48] sm:$0xff] %v186
                %v188 = vld [vmem:[%s166 + $0x50] sm:$0xff]
                %189 = vst [vmem:[%s167 + $0x50] sm:$0xff] %v188
                %v190 = vld [vmem:[%s166 + $0x58] sm:$0xff]
                %191 = vst [vmem:[%s167 + $0x58] sm:$0xff] %v190
                %v192 = vld [vmem:[%s166 + $0xc0] sm:$0xff]
                %193 = vst [vmem:[%s167 + $0x60] sm:$0xff] %v192
                %v194 = vld [vmem:[%s166 + $0xc8] sm:$0xff]
                %195 = vst [vmem:[%s167 + $0x68] sm:$0xff] %v194
                %v196 = vld [vmem:[%s166 + $0xd0] sm:$0xff]
                %197 = vst [vmem:[%s167 + $0x70] sm:$0xff] %v196
                %v198 = vld [vmem:[%s166 + $0xd8] sm:$0xff]
                %199 = vst [vmem:[%s167 + $0x78] sm:$0xff] %v198
                %v200 = vld [vmem:[%s166 + $0xe0] sm:$0xff]
                %201 = vst [vmem:[%s167 + $0x80] sm:$0xff] %v200
                %v202 = vld [vmem:[%s166 + $0xe8] sm:$0xff]
                %203 = vst [vmem:[%s167 + $0x88] sm:$0xff] %v202
                %v204 = vld [vmem:[%s166 + $0xf0] sm:$0xff]
                %205 = vst [vmem:[%s167 + $0x90] sm:$0xff] %v204
                %v206 = vld [vmem:[%s166 + $0xf8] sm:$0xff]
                %207 = vst [vmem:[%s167 + $0x98] sm:$0xff] %v206
                %v208 = vld [vmem:[%s166 + $0x100] sm:$0xff]
                %209 = vst [vmem:[%s167 + $0xa0] sm:$0xff] %v208
                %v210 = vld [vmem:[%s166 + $0x108] sm:$0xff]
                %211 = vst [vmem:[%s167 + $0xa8] sm:$0xff] %v210
                %v212 = vld [vmem:[%s166 + $0x110] sm:$0xff]
                %213 = vst [vmem:[%s167 + $0xb0] sm:$0xff] %v212
                %v214 = vld [vmem:[%s166 + $0x118] sm:$0xff]
                %215 = vst [vmem:[%s167 + $0xb8] sm:$0xff] %v214
                %v216 = vld [vmem:[%s166 + $0x180] sm:$0xff]
                %217 = vst [vmem:[%s167 + $0xc0] sm:$0xff] %v216
                %v218 = vld [vmem:[%s166 + $0x188] sm:$0xff]
                %219 = vst [vmem:[%s167 + $0xc8] sm:$0xff] %v218
                %v220 = vld [vmem:[%s166 + $0x190] sm:$0xff]
                %221 = vst [vmem:[%s167 + $0xd0] sm:$0xff] %v220
                %v222 = vld [vmem:[%s166 + $0x198] sm:$0xff]
                %223 = vst [vmem:[%s167 + $0xd8] sm:$0xff] %v222
                %v224 = vld [vmem:[%s166 + $0x1a0] sm:$0xff]
                %225 = vst [vmem:[%s167 + $0xe0] sm:$0xff] %v224
                %v226 = vld [vmem:[%s166 + $0x1a8] sm:$0xff]
                %227 = vst [vmem:[%s167 + $0xe8] sm:$0xff] %v226
                %v228 = vld [vmem:[%s166 + $0x1b0] sm:$0xff]
                %229 = vst [vmem:[%s167 + $0xf0] sm:$0xff] %v228
                %v230 = vld [vmem:[%s166 + $0x1b8] sm:$0xff]
                %231 = vst [vmem:[%s167 + $0xf8] sm:$0xff] %v230
                %v232 = vld [vmem:[%s166 + $0x1c0] sm:$0xff]
                %233 = vst [vmem:[%s167 + $0x100] sm:$0xff] %v232
                %v234 = vld [vmem:[%s166 + $0x1c8] sm:$0xff]
                %235 = vst [vmem:[%s167 + $0x108] sm:$0xff] %v234
                %v236 = vld [vmem:[%s166 + $0x1d0] sm:$0xff]
                %237 = vst [vmem:[%s167 + $0x110] sm:$0xff] %v236
                %v238 = vld [vmem:[%s166 + $0x1d8] sm:$0xff]
                %239 = vst [vmem:[%s167 + $0x118] sm:$0xff] %v238
                %v240 = vld [vmem:[%s166 + $0x240] sm:$0xff]
                %241 = vst [vmem:[%s167 + $0x120] sm:$0xff] %v240
                %v242 = vld [vmem:[%s166 + $0x248] sm:$0xff]
                %243 = vst [vmem:[%s167 + $0x128] sm:$0xff] %v242
                %v244 = vld [vmem:[%s166 + $0x250] sm:$0xff]
                %245 = vst [vmem:[%s167 + $0x130] sm:$0xff] %v244
                %v246 = vld [vmem:[%s166 + $0x258] sm:$0xff]
                %247 = vst [vmem:[%s167 + $0x138] sm:$0xff] %v246
                %v248 = vld [vmem:[%s166 + $0x260] sm:$0xff]
                %249 = vst [vmem:[%s167 + $0x140] sm:$0xff] %v248
                %v250 = vld [vmem:[%s166 + $0x268] sm:$0xff]
                %251 = vst [vmem:[%s167 + $0x148] sm:$0xff] %v250
                %v252 = vld [vmem:[%s166 + $0x270] sm:$0xff]
                %253 = vst [vmem:[%s167 + $0x150] sm:$0xff] %v252
                %v254 = vld [vmem:[%s166 + $0x278] sm:$0xff]
                %255 = vst [vmem:[%s167 + $0x158] sm:$0xff] %v254
                %v256 = vld [vmem:[%s166 + $0x280] sm:$0xff]
                %257 = vst [vmem:[%s167 + $0x160] sm:$0xff] %v256
                %v258 = vld [vmem:[%s166 + $0x288] sm:$0xff]
                %259 = vst [vmem:[%s167 + $0x168] sm:$0xff] %v258
                %v260 = vld [vmem:[%s166 + $0x290] sm:$0xff]
                %261 = vst [vmem:[%s167 + $0x170] sm:$0xff] %v260
                %v262 = vld [vmem:[%s166 + $0x298] sm:$0xff]
                %263 = vst [vmem:[%s167 + $0x178] sm:$0xff] %v262
                %v264 = vld [vmem:[%s166 + $0x300] sm:$0xff]
                %265 = vst [vmem:[%s167 + $0x180] sm:$0xff] %v264
                %v266 = vld [vmem:[%s166 + $0x308] sm:$0xff]
                %267 = vst [vmem:[%s167 + $0x188] sm:$0xff] %v266
                %v268 = vld [vmem:[%s166 + $0x310] sm:$0xff]
                %269 = vst [vmem:[%s167 + $0x190] sm:$0xff] %v268
                %v270 = vld [vmem:[%s166 + $0x318] sm:$0xff]
                %271 = vst [vmem:[%s167 + $0x198] sm:$0xff] %v270
                %v272 = vld [vmem:[%s166 + $0x320] sm:$0xff]
                %273 = vst [vmem:[%s167 + $0x1a0] sm:$0xff] %v272
                %v274 = vld [vmem:[%s166 + $0x328] sm:$0xff]
                %275 = vst [vmem:[%s167 + $0x1a8] sm:$0xff] %v274
                %v276 = vld [vmem:[%s166 + $0x330] sm:$0xff]
                %277 = vst [vmem:[%s167 + $0x1b0] sm:$0xff] %v276
                %v278 = vld [vmem:[%s166 + $0x338] sm:$0xff]
                %279 = vst [vmem:[%s167 + $0x1b8] sm:$0xff] %v278
                %v280 = vld [vmem:[%s166 + $0x340] sm:$0xff]
                %281 = vst [vmem:[%s167 + $0x1c0] sm:$0xff] %v280
                %v282 = vld [vmem:[%s166 + $0x348] sm:$0xff]
                %283 = vst [vmem:[%s167 + $0x1c8] sm:$0xff] %v282
                %v284 = vld [vmem:[%s166 + $0x350] sm:$0xff]
                %285 = vst [vmem:[%s167 + $0x1d0] sm:$0xff] %v284
                %v286 = vld [vmem:[%s166 + $0x358] sm:$0xff]
                %287 = vst [vmem:[%s167 + $0x1d8] sm:$0xff] %v286
                %v288 = vld [vmem:[%s166 + $0x3c0] sm:$0xff]
                %289 = vst [vmem:[%s167 + $0x1e0] sm:$0xff] %v288
                %v290 = vld [vmem:[%s166 + $0x3c8] sm:$0xff]
                %291 = vst [vmem:[%s167 + $0x1e8] sm:$0xff] %v290
                %v292 = vld [vmem:[%s166 + $0x3d0] sm:$0xff]
                %293 = vst [vmem:[%s167 + $0x1f0] sm:$0xff] %v292
                %v294 = vld [vmem:[%s166 + $0x3d8] sm:$0xff]
                %295 = vst [vmem:[%s167 + $0x1f8] sm:$0xff] %v294
                %v296 = vld [vmem:[%s166 + $0x3e0] sm:$0xff]
                %297 = vst [vmem:[%s167 + $0x200] sm:$0xff] %v296
                %v298 = vld [vmem:[%s166 + $0x3e8] sm:$0xff]
                %299 = vst [vmem:[%s167 + $0x208] sm:$0xff] %v298
                %v300 = vld [vmem:[%s166 + $0x3f0] sm:$0xff]
                %301 = vst [vmem:[%s167 + $0x210] sm:$0xff] %v300
                %v302 = vld [vmem:[%s166 + $0x3f8] sm:$0xff]
                %303 = vst [vmem:[%s167 + $0x218] sm:$0xff] %v302
                %v304 = vld [vmem:[%s166 + $0x400] sm:$0xff]
                %305 = vst [vmem:[%s167 + $0x220] sm:$0xff] %v304
                %v306 = vld [vmem:[%s166 + $0x408] sm:$0xff]
                %307 = vst [vmem:[%s167 + $0x228] sm:$0xff] %v306
                %v308 = vld [vmem:[%s166 + $0x410] sm:$0xff]
                %309 = vst [vmem:[%s167 + $0x230] sm:$0xff] %v308
                %v310 = vld [vmem:[%s166 + $0x418] sm:$0xff]
                %311 = vst [vmem:[%s167 + $0x238] sm:$0xff] %v310
                %v312 = vld [vmem:[%s166 + $0x480] sm:$0xff]
                %313 = vst [vmem:[%s167 + $0x240] sm:$0xff] %v312
                %v314 = vld [vmem:[%s166 + $0x488] sm:$0xff]
                %315 = vst [vmem:[%s167 + $0x248] sm:$0xff] %v314
                %v316 = vld [vmem:[%s166 + $0x490] sm:$0xff]
                %317 = vst [vmem:[%s167 + $0x250] sm:$0xff] %v316
                %v318 = vld [vmem:[%s166 + $0x498] sm:$0xff]
                %319 = vst [vmem:[%s167 + $0x258] sm:$0xff] %v318
                %v320 = vld [vmem:[%s166 + $0x4a0] sm:$0xff]
                %321 = vst [vmem:[%s167 + $0x260] sm:$0xff] %v320
                %v322 = vld [vmem:[%s166 + $0x4a8] sm:$0xff]
                %323 = vst [vmem:[%s167 + $0x268] sm:$0xff] %v322
                %v324 = vld [vmem:[%s166 + $0x4b0] sm:$0xff]
                %325 = vst [vmem:[%s167 + $0x270] sm:$0xff] %v324
                %v326 = vld [vmem:[%s166 + $0x4b8] sm:$0xff]
                %327 = vst [vmem:[%s167 + $0x278] sm:$0xff] %v326
                %v328 = vld [vmem:[%s166 + $0x4c0] sm:$0xff]
                %329 = vst [vmem:[%s167 + $0x280] sm:$0xff] %v328
                %v330 = vld [vmem:[%s166 + $0x4c8] sm:$0xff]
                %331 = vst [vmem:[%s167 + $0x288] sm:$0xff] %v330
                %v332 = vld [vmem:[%s166 + $0x4d0] sm:$0xff]
                %333 = vst [vmem:[%s167 + $0x290] sm:$0xff] %v332
                %v334 = vld [vmem:[%s166 + $0x4d8] sm:$0xff]
                %335 = vst [vmem:[%s167 + $0x298] sm:$0xff] %v334
                %v336 = vld [vmem:[%s166 + $0x540] sm:$0xff]
                %337 = vst [vmem:[%s167 + $0x2a0] sm:$0xff] %v336
                %v338 = vld [vmem:[%s166 + $0x548] sm:$0xff]
                %339 = vst [vmem:[%s167 + $0x2a8] sm:$0xff] %v338
                %v340 = vld [vmem:[%s166 + $0x550] sm:$0xff]
                %341 = vst [vmem:[%s167 + $0x2b0] sm:$0xff] %v340
                %v342 = vld [vmem:[%s166 + $0x558] sm:$0xff]
                %343 = vst [vmem:[%s167 + $0x2b8] sm:$0xff] %v342
                %v344 = vld [vmem:[%s166 + $0x560] sm:$0xff]
                %345 = vst [vmem:[%s167 + $0x2c0] sm:$0xff] %v344
                %v346 = vld [vmem:[%s166 + $0x568] sm:$0xff]
                %347 = vst [vmem:[%s167 + $0x2c8] sm:$0xff] %v346
                %v348 = vld [vmem:[%s166 + $0x570] sm:$0xff]
                %349 = vst [vmem:[%s167 + $0x2d0] sm:$0xff] %v348
                %v350 = vld [vmem:[%s166 + $0x578] sm:$0xff]
                %351 = vst [vmem:[%s167 + $0x2d8] sm:$0xff] %v350
                %v352 = vld [vmem:[%s166 + $0x580] sm:$0xff]
                %353 = vst [vmem:[%s167 + $0x2e0] sm:$0xff] %v352
                %v354 = vld [vmem:[%s166 + $0x588] sm:$0xff]
                %355 = vst [vmem:[%s167 + $0x2e8] sm:$0xff] %v354
                %v356 = vld [vmem:[%s166 + $0x590] sm:$0xff]
                %357 = vst [vmem:[%s167 + $0x2f0] sm:$0xff] %v356
                %v358 = vld [vmem:[%s166 + $0x598] sm:$0xff]
                %359 = vst [vmem:[%s167 + $0x2f8] sm:$0xff] %v358
                %v360 = vld [vmem:[%s166 + $0x600] sm:$0xff]
                %361 = vst [vmem:[%s167 + $0x300] sm:$0xff] %v360
                %v362 = vld [vmem:[%s166 + $0x608] sm:$0xff]
                %363 = vst [vmem:[%s167 + $0x308] sm:$0xff] %v362
                %v364 = vld [vmem:[%s166 + $0x610] sm:$0xff]
                %365 = vst [vmem:[%s167 + $0x310] sm:$0xff] %v364
                %v366 = vld [vmem:[%s166 + $0x618] sm:$0xff]
                %367 = vst [vmem:[%s167 + $0x318] sm:$0xff] %v366
                %v368 = vld [vmem:[%s166 + $0x620] sm:$0xff]
                %369 = vst [vmem:[%s167 + $0x320] sm:$0xff] %v368
                %v370 = vld [vmem:[%s166 + $0x628] sm:$0xff]
                %371 = vst [vmem:[%s167 + $0x328] sm:$0xff] %v370
                %v372 = vld [vmem:[%s166 + $0x630] sm:$0xff]
                %373 = vst [vmem:[%s167 + $0x330] sm:$0xff] %v372
                %v374 = vld [vmem:[%s166 + $0x638] sm:$0xff]
                %375 = vst [vmem:[%s167 + $0x338] sm:$0xff] %v374
                %v376 = vld [vmem:[%s166 + $0x640] sm:$0xff]
                %377 = vst [vmem:[%s167 + $0x340] sm:$0xff] %v376
                %v378 = vld [vmem:[%s166 + $0x648] sm:$0xff]
                %379 = vst [vmem:[%s167 + $0x348] sm:$0xff] %v378
                %v380 = vld [vmem:[%s166 + $0x650] sm:$0xff]
                %381 = vst [vmem:[%s167 + $0x350] sm:$0xff] %v380
                %v382 = vld [vmem:[%s166 + $0x658] sm:$0xff]
                %383 = vst [vmem:[%s167 + $0x358] sm:$0xff] %v382
                %v384 = vld [vmem:[%s166 + $0x6c0] sm:$0xff]
                %385 = vst [vmem:[%s167 + $0x360] sm:$0xff] %v384
                %v386 = vld [vmem:[%s166 + $0x6c8] sm:$0xff]
                %387 = vst [vmem:[%s167 + $0x368] sm:$0xff] %v386
                %v388 = vld [vmem:[%s166 + $0x6d0] sm:$0xff]
                %389 = vst [vmem:[%s167 + $0x370] sm:$0xff] %v388
                %v390 = vld [vmem:[%s166 + $0x6d8] sm:$0xff]
                %391 = vst [vmem:[%s167 + $0x378] sm:$0xff] %v390
                %v392 = vld [vmem:[%s166 + $0x6e0] sm:$0xff]
                %393 = vst [vmem:[%s167 + $0x380] sm:$0xff] %v392
                %v394 = vld [vmem:[%s166 + $0x6e8] sm:$0xff]
                %395 = vst [vmem:[%s167 + $0x388] sm:$0xff] %v394
                %v396 = vld [vmem:[%s166 + $0x6f0] sm:$0xff]
                %397 = vst [vmem:[%s167 + $0x390] sm:$0xff] %v396
                %v398 = vld [vmem:[%s166 + $0x6f8] sm:$0xff]
                %399 = vst [vmem:[%s167 + $0x398] sm:$0xff] %v398
                %v400 = vld [vmem:[%s166 + $0x700] sm:$0xff]
                %401 = vst [vmem:[%s167 + $0x3a0] sm:$0xff] %v400
                %v402 = vld [vmem:[%s166 + $0x708] sm:$0xff]
                %403 = vst [vmem:[%s167 + $0x3a8] sm:$0xff] %v402
                %v404 = vld [vmem:[%s166 + $0x710] sm:$0xff]
                %405 = vst [vmem:[%s167 + $0x3b0] sm:$0xff] %v404
                %v406 = vld [vmem:[%s166 + $0x718] sm:$0xff]
                %407 = vst [vmem:[%s167 + $0x3b8] sm:$0xff] %v406
                %v408 = vld [vmem:[%s166 + $0x780] sm:$0xff]
                %409 = vst [vmem:[%s167 + $0x3c0] sm:$0xff] %v408
                %v410 = vld [vmem:[%s166 + $0x788] sm:$0xff]
                %411 = vst [vmem:[%s167 + $0x3c8] sm:$0xff] %v410
                %v412 = vld [vmem:[%s166 + $0x790] sm:$0xff]
                %413 = vst [vmem:[%s167 + $0x3d0] sm:$0xff] %v412
                %v414 = vld [vmem:[%s166 + $0x798] sm:$0xff]
                %415 = vst [vmem:[%s167 + $0x3d8] sm:$0xff] %v414
                %v416 = vld [vmem:[%s166 + $0x7a0] sm:$0xff]
                %417 = vst [vmem:[%s167 + $0x3e0] sm:$0xff] %v416
                %v418 = vld [vmem:[%s166 + $0x7a8] sm:$0xff]
                %419 = vst [vmem:[%s167 + $0x3e8] sm:$0xff] %v418
                %v420 = vld [vmem:[%s166 + $0x7b0] sm:$0xff]
                %421 = vst [vmem:[%s167 + $0x3f0] sm:$0xff] %v420
                %v422 = vld [vmem:[%s166 + $0x7b8] sm:$0xff]
                %423 = vst [vmem:[%s167 + $0x3f8] sm:$0xff] %v422
                %v424 = vld [vmem:[%s166 + $0x7c0] sm:$0xff]
                %425 = vst [vmem:[%s167 + $0x400] sm:$0xff] %v424
                %v426 = vld [vmem:[%s166 + $0x7c8] sm:$0xff]
                %427 = vst [vmem:[%s167 + $0x408] sm:$0xff] %v426
                %v428 = vld [vmem:[%s166 + $0x7d0] sm:$0xff]
                %429 = vst [vmem:[%s167 + $0x410] sm:$0xff] %v428
                %v430 = vld [vmem:[%s166 + $0x7d8] sm:$0xff]
                %431 = vst [vmem:[%s167 + $0x418] sm:$0xff] %v430
                %v432 = vld [vmem:[%s166 + $0x840] sm:$0xff]
                %433 = vst [vmem:[%s167 + $0x420] sm:$0xff] %v432
                %v434 = vld [vmem:[%s166 + $0x848] sm:$0xff]
                %435 = vst [vmem:[%s167 + $0x428] sm:$0xff] %v434
                %v436 = vld [vmem:[%s166 + $0x850] sm:$0xff]
                %437 = vst [vmem:[%s167 + $0x430] sm:$0xff] %v436
                %v438 = vld [vmem:[%s166 + $0x858] sm:$0xff]
                %439 = vst [vmem:[%s167 + $0x438] sm:$0xff] %v438
                %v440 = vld [vmem:[%s166 + $0x860] sm:$0xff]
                %441 = vst [vmem:[%s167 + $0x440] sm:$0xff] %v440
                %v442 = vld [vmem:[%s166 + $0x868] sm:$0xff]
                %443 = vst [vmem:[%s167 + $0x448] sm:$0xff] %v442
                %v444 = vld [vmem:[%s166 + $0x870] sm:$0xff]
                %445 = vst [vmem:[%s167 + $0x450] sm:$0xff] %v444
                %v446 = vld [vmem:[%s166 + $0x878] sm:$0xff]
                %447 = vst [vmem:[%s167 + $0x458] sm:$0xff] %v446
                %v448 = vld [vmem:[%s166 + $0x880] sm:$0xff]
                %449 = vst [vmem:[%s167 + $0x460] sm:$0xff] %v448
                %v450 = vld [vmem:[%s166 + $0x888] sm:$0xff]
                %451 = vst [vmem:[%s167 + $0x468] sm:$0xff] %v450
                %v452 = vld [vmem:[%s166 + $0x890] sm:$0xff]
                %453 = vst [vmem:[%s167 + $0x470] sm:$0xff] %v452
                %v454 = vld [vmem:[%s166 + $0x898] sm:$0xff]
                %455 = vst [vmem:[%s167 + $0x478] sm:$0xff] %v454
                %v456 = vld [vmem:[%s166 + $0x900] sm:$0xff]
                %457 = vst [vmem:[%s167 + $0x480] sm:$0xff] %v456
                %v458 = vld [vmem:[%s166 + $0x908] sm:$0xff]
                %459 = vst [vmem:[%s167 + $0x488] sm:$0xff] %v458
                %v460 = vld [vmem:[%s166 + $0x910] sm:$0xff]
                %461 = vst [vmem:[%s167 + $0x490] sm:$0xff] %v460
                %v462 = vld [vmem:[%s166 + $0x918] sm:$0xff]
                %463 = vst [vmem:[%s167 + $0x498] sm:$0xff] %v462
                %v464 = vld [vmem:[%s166 + $0x920] sm:$0xff]
                %465 = vst [vmem:[%s167 + $0x4a0] sm:$0xff] %v464
                %v466 = vld [vmem:[%s166 + $0x928] sm:$0xff]
                %467 = vst [vmem:[%s167 + $0x4a8] sm:$0xff] %v466
                %v468 = vld [vmem:[%s166 + $0x930] sm:$0xff]
                %469 = vst [vmem:[%s167 + $0x4b0] sm:$0xff] %v468
                %v470 = vld [vmem:[%s166 + $0x938] sm:$0xff]
                %471 = vst [vmem:[%s167 + $0x4b8] sm:$0xff] %v470
                %v472 = vld [vmem:[%s166 + $0x940] sm:$0xff]
                %473 = vst [vmem:[%s167 + $0x4c0] sm:$0xff] %v472
                %v474 = vld [vmem:[%s166 + $0x948] sm:$0xff]
                %475 = vst [vmem:[%s167 + $0x4c8] sm:$0xff] %v474
                %v476 = vld [vmem:[%s166 + $0x950] sm:$0xff]
                %477 = vst [vmem:[%s167 + $0x4d0] sm:$0xff] %v476
                %v478 = vld [vmem:[%s166 + $0x958] sm:$0xff]
                %479 = vst [vmem:[%s167 + $0x4d8] sm:$0xff] %v478
              $region41: #{value_net_forward.2} parent=35 // loop_footer
                %s165 = sadd.s32 1, %s161
              $region42: #{value_net_forward.2} parent=35 // loop_footer_branch
                %160 = sbr.rel target = $region38
              $region43: #{value_net_forward.2} parent=35 // loop_exit
                _
            $region36: #{value_net_forward.2} parent=31 // pred_fallthru
              _
            // Predicated region
            $region44: #{value_net_forward.2} parent=31 // pred_check
              _
            $region45: #{value_net_forward.2} parent=31 // pred_check_branch
              %481 = sbr.rel target = $region47
            $region46: #{value_net_forward.2} parent=31 // pred_region
              _
            $region47: #{value_net_forward.2} parent=31 // pred_fallthru
              _
          $region32: #{value_net_forward.2} parent=27 // pred_fallthru
            _
          %482 = vnop
        $region28: #{value_net_forward.2} parent=23 // pred_fallthru
          _
      $region24: #{value_net_forward.2} parent=5 // pred_fallthru
        _
      %p483 = scmp.le.s32.totalorder 1, %s9
      %p484 = scmp.lt.s32.totalorder %s9, 5
      %p485 = pnand %p483, %p484
      %p486 = pneg %p485
      // Predicated region
      $region48: #{value_net_forward.2} parent=5 // pred_check
        _
      $region49: #{value_net_forward.2} parent=5 // pred_check_branch
        %488 = sbr.rel (%p485) target = $region51
      $region50: #{value_net_forward.2} parent=5 // pred_region
        %s489 = ssub.s32 %s9, 1
        %s490 = sand.u32 %s36, 1
        %s491 = sand.u32 %s36, 1
        %s492 = smul.addr %s491, 1248
        %s493 = scalar_lea.vmem [#allocation2], %s492
        // Predicated region
        $region52: #{value_net_forward.2} parent=50 // pred_check
          %p494 = pneg %p49
        $region53: #{value_net_forward.2} parent=50 // pred_check_branch
          %496 = sbr.rel (%p494) target = $region55
        $region54: #{value_net_forward.2} parent=50 // pred_region
          _
        $region55: #{value_net_forward.2} parent=50 // pred_fallthru
          _
        %s497 = sand.u32 %s36, 1
        %s498 = sand.u32 %s36, 1
        %s499 = smul.addr %s498, 1248
        %s500 = scalar_lea.vmem [#allocation2], %s499
        %p501 = pneg %p49
        %p502 = pneg %p46
        %p503 = pneg %p70
        %p504 = pneg %p67
        %p505 = pneg %p91
        %p506 = pneg %p88
        %p507 = pneg %p119
        %p508 = pneg %p116
        %s509 = smul.u32 6, %s19
        %p510 = scmp.lt.s32.totalorder %s18, 1
        %s511 = scalar_select %p510, %s18, 1
        %p512 = scmp.lt.s32.totalorder %s509, 11
        %s513 = scalar_select %p512, %s509, 11
        %s514 = smul.addr %s511, 12
        %s515 = sadd.s32 %s513, %s514
        %s516 = smul.addr %s515, 4
        %s517 = scalar_lea.vmem %s3, %s516
        %s518 = smul.u32 24, %s19
        %s519 = smul.u32 6, %s19
        %p520 = scmp.lt.s32.totalorder %s18, 1
        %s521 = scalar_select %p520, %s18, 1
        %p522 = scmp.lt.s32.totalorder %s519, 11
        %s523 = scalar_select %p522, %s519, 11
        %s524 = smul.addr %s521, 12
        %s525 = sadd.s32 %s523, %s524
        %s526 = smul.addr %s525, 4
        %s527 = scalar_lea.vmem %s3, %s526
        %s528 = smul.u32 6, %s19
        %v530 = vld [vmem:[%s1] sm:$0xf]
        %v531 = vld [vmem:[%s493] sm:$0xff]
        %v532 = vld [vmem:[%s493 + $0x8] sm:$0xff]
        %v533 = vld [vmem:[%s493 + $0x10] sm:$0xff]
        %v534 = vld [vmem:[%s493 + $0x18] sm:$0xff]
        %v535 = vld [vmem:[%s493 + $0x20] sm:$0xff]
        %v536 = vld [vmem:[%s493 + $0x28] sm:$0xff]
        %v537 = vld [vmem:[%s493 + $0x30] sm:$0xff]
        %v538 = vld [vmem:[%s493 + $0x38] sm:$0xff]
        %v539 = vld [vmem:[%s493 + $0x40] sm:$0xff]
        %v540 = vld [vmem:[%s493 + $0x48] sm:$0xff]
        %v541 = vld [vmem:[%s493 + $0x50] sm:$0xff]
        %v542 = vld [vmem:[%s493 + $0x58] sm:$0xff]
        %v543 = vld [vmem:[%s493 + $0x60] sm:$0xff]
        %v544 = vld [vmem:[%s493 + $0x68] sm:$0xff]
        %v545 = vld [vmem:[%s493 + $0x70] sm:$0xff]
        %v546 = vld [vmem:[%s493 + $0x78] sm:$0xff]
        %v547 = vld [vmem:[%s493 + $0x80] sm:$0xff]
        %v548 = vld [vmem:[%s493 + $0x88] sm:$0xff]
        %v549 = vld [vmem:[%s493 + $0x90] sm:$0xff]
        %v550 = vld [vmem:[%s493 + $0x98] sm:$0xff]
        %v551 = vld [vmem:[%s493 + $0xa0] sm:$0xff]
        %v552 = vld [vmem:[%s493 + $0xa8] sm:$0xff]
        %v553 = vld [vmem:[%s493 + $0xb0] sm:$0xff]
        %v554 = vld [vmem:[%s493 + $0xb8] sm:$0xff]
        %v555 = vld [vmem:[%s493 + $0xc0] sm:$0xff]
        %v556 = vld [vmem:[%s493 + $0xc8] sm:$0xff]
        %v557 = vld [vmem:[%s493 + $0xd0] sm:$0xff]
        %v558 = vld [vmem:[%s493 + $0xd8] sm:$0xff]
        %v559 = vld [vmem:[%s493 + $0xe0] sm:$0xff]
        %v560 = vld [vmem:[%s493 + $0xe8] sm:$0xff]
        %v561 = vld [vmem:[%s493 + $0xf0] sm:$0xff]
        %v562 = vld [vmem:[%s493 + $0xf8] sm:$0xff]
        %v563 = vld [vmem:[%s493 + $0x100] sm:$0xff]
        %v564 = vld [vmem:[%s493 + $0x108] sm:$0xff]
        %v565 = vld [vmem:[%s493 + $0x110] sm:$0xff]
        %v566 = vld [vmem:[%s493 + $0x118] sm:$0xff]
        %v567 = vld [vmem:[%s493 + $0x120] sm:$0xff]
        %v568 = vld [vmem:[%s493 + $0x128] sm:$0xff]
        %v569 = vld [vmem:[%s493 + $0x130] sm:$0xff]
        %v570 = vld [vmem:[%s493 + $0x138] sm:$0xff]
        %v571 = vld [vmem:[%s493 + $0x140] sm:$0xff]
        %v572 = vld [vmem:[%s493 + $0x148] sm:$0xff]
        %v573 = vld [vmem:[%s493 + $0x150] sm:$0xff]
        %v574 = vld [vmem:[%s493 + $0x158] sm:$0xff]
        %v575 = vld [vmem:[%s493 + $0x160] sm:$0xff]
        %v576 = vld [vmem:[%s493 + $0x168] sm:$0xff]
        %v577 = vld [vmem:[%s493 + $0x170] sm:$0xff]
        %v578 = vld [vmem:[%s493 + $0x178] sm:$0xff]
        %v579 = vld [vmem:[%s493 + $0x180] sm:$0xff]
        %v580 = vld [vmem:[%s493 + $0x188] sm:$0xff]
        %v581 = vld [vmem:[%s493 + $0x190] sm:$0xff]
        %v582 = vld [vmem:[%s493 + $0x198] sm:$0xff]
        %v583 = vld [vmem:[%s493 + $0x1a0] sm:$0xff]
        %v584 = vld [vmem:[%s493 + $0x1a8] sm:$0xff]
        %v585 = vld [vmem:[%s493 + $0x1b0] sm:$0xff]
        %v586 = vld [vmem:[%s493 + $0x1b8] sm:$0xff]
        %v587 = vld [vmem:[%s493 + $0x1c0] sm:$0xff]
        %v588 = vld [vmem:[%s493 + $0x1c8] sm:$0xff]
        %v589 = vld [vmem:[%s493 + $0x1d0] sm:$0xff]
        %v590 = vld [vmem:[%s493 + $0x1d8] sm:$0xff]
        %v591 = vld [vmem:[%s493 + $0x1e0] sm:$0xff]
        %v592 = vld [vmem:[%s493 + $0x1e8] sm:$0xff]
        %v593 = vld [vmem:[%s493 + $0x1f0] sm:$0xff]
        %v594 = vld [vmem:[%s493 + $0x1f8] sm:$0xff]
        %v595 = vld [vmem:[%s493 + $0x200] sm:$0xff]
        %v596 = vld [vmem:[%s493 + $0x208] sm:$0xff]
        %v597 = vld [vmem:[%s493 + $0x210] sm:$0xff]
        %v598 = vld [vmem:[%s493 + $0x218] sm:$0xff]
        %v599 = vld [vmem:[%s493 + $0x220] sm:$0xff]
        %v600 = vld [vmem:[%s493 + $0x228] sm:$0xff]
        %v601 = vld [vmem:[%s493 + $0x230] sm:$0xff]
        %v602 = vld [vmem:[%s493 + $0x238] sm:$0xff]
        %v603 = vld [vmem:[%s493 + $0x240] sm:$0xff]
        %v604 = vld [vmem:[%s493 + $0x248] sm:$0xff]
        %v605 = vld [vmem:[%s493 + $0x250] sm:$0xff]
        %v606 = vld [vmem:[%s493 + $0x258] sm:$0xff]
        %v607 = vld [vmem:[%s493 + $0x260] sm:$0xff]
        %v608 = vld [vmem:[%s493 + $0x268] sm:$0xff]
        %v609 = vld [vmem:[%s493 + $0x270] sm:$0xff]
        %v610 = vld [vmem:[%s493 + $0x278] sm:$0xff]
        %v611 = vld [vmem:[%s493 + $0x280] sm:$0xff]
        %v612 = vld [vmem:[%s493 + $0x288] sm:$0xff]
        %v613 = vld [vmem:[%s493 + $0x290] sm:$0xff]
        %v614 = vld [vmem:[%s493 + $0x298] sm:$0xff]
        %v615 = vld [vmem:[%s493 + $0x2a0] sm:$0xff]
        %v616 = vld [vmem:[%s493 + $0x2a8] sm:$0xff]
        %v617 = vld [vmem:[%s493 + $0x2b0] sm:$0xff]
        %v618 = vld [vmem:[%s493 + $0x2b8] sm:$0xff]
        %v619 = vld [vmem:[%s493 + $0x2c0] sm:$0xff]
        %v620 = vld [vmem:[%s493 + $0x2c8] sm:$0xff]
        %v621 = vld [vmem:[%s493 + $0x2d0] sm:$0xff]
        %v622 = vld [vmem:[%s493 + $0x2d8] sm:$0xff]
        %v623 = vld [vmem:[%s493 + $0x2e0] sm:$0xff]
        %v624 = vld [vmem:[%s493 + $0x2e8] sm:$0xff]
        %v625 = vld [vmem:[%s493 + $0x2f0] sm:$0xff]
        %v626 = vld [vmem:[%s493 + $0x2f8] sm:$0xff]
        %v627 = vld [vmem:[%s493 + $0x300] sm:$0xff]
        %v628 = vld [vmem:[%s493 + $0x308] sm:$0xff]
        %v629 = vld [vmem:[%s493 + $0x310] sm:$0xff]
        %v630 = vld [vmem:[%s493 + $0x318] sm:$0xff]
        %v631 = vld [vmem:[%s493 + $0x320] sm:$0xff]
        %v632 = vld [vmem:[%s493 + $0x328] sm:$0xff]
        %v633 = vld [vmem:[%s493 + $0x330] sm:$0xff]
        %v634 = vld [vmem:[%s493 + $0x338] sm:$0xff]
        %v635 = vld [vmem:[%s493 + $0x340] sm:$0xff]
        %v636 = vld [vmem:[%s493 + $0x348] sm:$0xff]
        %v637 = vld [vmem:[%s493 + $0x350] sm:$0xff]
        %v638 = vld [vmem:[%s493 + $0x358] sm:$0xff]
        %v639 = vld [vmem:[%s493 + $0x360] sm:$0xff]
        %v640 = vld [vmem:[%s493 + $0x368] sm:$0xff]
        %v641 = vld [vmem:[%s493 + $0x370] sm:$0xff]
        %v642 = vld [vmem:[%s493 + $0x378] sm:$0xff]
        %v643 = vld [vmem:[%s493 + $0x380] sm:$0xff]
        %v644 = vld [vmem:[%s493 + $0x388] sm:$0xff]
        %v645 = vld [vmem:[%s493 + $0x390] sm:$0xff]
        %v646 = vld [vmem:[%s493 + $0x398] sm:$0xff]
        %v647 = vld [vmem:[%s493 + $0x3a0] sm:$0xff]
        %v648 = vld [vmem:[%s493 + $0x3a8] sm:$0xff]
        %v649 = vld [vmem:[%s493 + $0x3b0] sm:$0xff]
        %v650 = vld [vmem:[%s493 + $0x3b8] sm:$0xff]
        %v651 = vld [vmem:[%s493 + $0x3c0] sm:$0xff]
        %v652 = vld [vmem:[%s493 + $0x3c8] sm:$0xff]
        %v653 = vld [vmem:[%s493 + $0x3d0] sm:$0xff]
        %v654 = vld [vmem:[%s493 + $0x3d8] sm:$0xff]
        %v655 = vld [vmem:[%s493 + $0x3e0] sm:$0xff]
        %v656 = vld [vmem:[%s493 + $0x3e8] sm:$0xff]
        %v657 = vld [vmem:[%s493 + $0x3f0] sm:$0xff]
        %v658 = vld [vmem:[%s493 + $0x3f8] sm:$0xff]
        %v659 = vld [vmem:[%s493 + $0x400] sm:$0xff]
        %v660 = vld [vmem:[%s493 + $0x408] sm:$0xff]
        %v661 = vld [vmem:[%s493 + $0x410] sm:$0xff]
        %v662 = vld [vmem:[%s493 + $0x418] sm:$0xff]
        %v663 = vld [vmem:[%s493 + $0x420] sm:$0xff]
        %v664 = vld [vmem:[%s493 + $0x428] sm:$0xff]
        %v665 = vld [vmem:[%s493 + $0x430] sm:$0xff]
        %v666 = vld [vmem:[%s493 + $0x438] sm:$0xff]
        %v667 = vld [vmem:[%s493 + $0x440] sm:$0xff]
        %v668 = vld [vmem:[%s493 + $0x448] sm:$0xff]
        %v669 = vld [vmem:[%s493 + $0x450] sm:$0xff]
        %v670 = vld [vmem:[%s493 + $0x458] sm:$0xff]
        %v671 = vld [vmem:[%s493 + $0x460] sm:$0xff]
        %v672 = vld [vmem:[%s493 + $0x468] sm:$0xff]
        %v673 = vld [vmem:[%s493 + $0x470] sm:$0xff]
        %v674 = vld [vmem:[%s493 + $0x478] sm:$0xff]
        %v675 = vld [vmem:[%s493 + $0x480] sm:$0x33]
        %v676 = vld [vmem:[%s493 + $0x488] sm:$0x33]
        %v677 = vld [vmem:[%s493 + $0x490] sm:$0x33]
        %v678 = vld [vmem:[%s493 + $0x498] sm:$0x33]
        %v679 = vld [vmem:[%s493 + $0x4a0] sm:$0x33]
        %v680 = vld [vmem:[%s493 + $0x4a8] sm:$0x33]
        %v681 = vld [vmem:[%s493 + $0x4b0] sm:$0x33]
        %v682 = vld [vmem:[%s493 + $0x4b8] sm:$0x33]
        %v683 = vld [vmem:[%s493 + $0x4c0] sm:$0x33]
        %v684 = vld [vmem:[%s493 + $0x4c8] sm:$0x33]
        %v685 = vld [vmem:[%s493 + $0x4d0] sm:$0x33]
        %v686 = vld [vmem:[%s493 + $0x4d8] sm:$0x33]
        %v843 = vunpack.c.l.b16 %v531
        %v844 = vunpack.c.h.b16 %v531
        %v845 = vunpack.c.l.b16 %v532
        %v846 = vunpack.c.h.b16 %v532
        %v847 = vunpack.c.l.b16 %v533
        %v848 = vunpack.c.h.b16 %v533
        %v849 = vunpack.c.l.b16 %v534
        %v850 = vunpack.c.h.b16 %v534
        %v851 = vunpack.c.l.b16 %v535
        %v852 = vunpack.c.h.b16 %v535
        %v853 = vunpack.c.l.b16 %v536
        %v854 = vunpack.c.h.b16 %v536
        %v855 = vunpack.c.l.b16 %v537
        %v856 = vunpack.c.h.b16 %v537
        %v857 = vunpack.c.l.b16 %v538
        %v858 = vunpack.c.h.b16 %v538
        %v859 = vunpack.c.l.b16 %v539
        %v860 = vunpack.c.h.b16 %v539
        %v861 = vunpack.c.l.b16 %v540
        %v862 = vunpack.c.h.b16 %v540
        %v863 = vunpack.c.l.b16 %v541
        %v864 = vunpack.c.h.b16 %v541
        %v865 = vunpack.c.l.b16 %v542
        %v866 = vunpack.c.h.b16 %v542
        %v867 = vunpack.c.l.b16 %v543
        %v868 = vunpack.c.h.b16 %v543
        %v869 = vunpack.c.l.b16 %v544
        %v870 = vunpack.c.h.b16 %v544
        %v871 = vunpack.c.l.b16 %v545
        %v872 = vunpack.c.h.b16 %v545
        %v873 = vunpack.c.l.b16 %v546
        %v874 = vunpack.c.h.b16 %v546
        %v875 = vunpack.c.l.b16 %v547
        %v876 = vunpack.c.h.b16 %v547
        %v877 = vunpack.c.l.b16 %v548
        %v878 = vunpack.c.h.b16 %v548
        %v879 = vunpack.c.l.b16 %v549
        %v880 = vunpack.c.h.b16 %v549
        %v881 = vunpack.c.l.b16 %v550
        %v882 = vunpack.c.h.b16 %v550
        %v883 = vunpack.c.l.b16 %v551
        %v884 = vunpack.c.h.b16 %v551
        %v885 = vunpack.c.l.b16 %v552
        %v886 = vunpack.c.h.b16 %v552
        %v887 = vunpack.c.l.b16 %v553
        %v888 = vunpack.c.h.b16 %v553
        %v889 = vunpack.c.l.b16 %v554
        %v890 = vunpack.c.h.b16 %v554
        %v891 = vunpack.c.l.b16 %v555
        %v892 = vunpack.c.h.b16 %v555
        %v893 = vunpack.c.l.b16 %v556
        %v894 = vunpack.c.h.b16 %v556
        %v895 = vunpack.c.l.b16 %v557
        %v896 = vunpack.c.h.b16 %v557
        %v897 = vunpack.c.l.b16 %v558
        %v898 = vunpack.c.h.b16 %v558
        %v899 = vunpack.c.l.b16 %v559
        %v900 = vunpack.c.h.b16 %v559
        %v901 = vunpack.c.l.b16 %v560
        %v902 = vunpack.c.h.b16 %v560
        %v903 = vunpack.c.l.b16 %v561
        %v904 = vunpack.c.h.b16 %v561
        %v905 = vunpack.c.l.b16 %v562
        %v906 = vunpack.c.h.b16 %v562
        %v907 = vunpack.c.l.b16 %v563
        %v908 = vunpack.c.h.b16 %v563
        %v909 = vunpack.c.l.b16 %v564
        %v910 = vunpack.c.h.b16 %v564
        %v911 = vunpack.c.l.b16 %v565
        %v912 = vunpack.c.h.b16 %v565
        %v913 = vunpack.c.l.b16 %v566
        %v914 = vunpack.c.h.b16 %v566
        %v915 = vunpack.c.l.b16 %v567
        %v916 = vunpack.c.h.b16 %v567
        %v917 = vunpack.c.l.b16 %v568
        %v918 = vunpack.c.h.b16 %v568
        %v919 = vunpack.c.l.b16 %v569
        %v920 = vunpack.c.h.b16 %v569
        %v921 = vunpack.c.l.b16 %v570
        %v922 = vunpack.c.h.b16 %v570
        %v923 = vunpack.c.l.b16 %v571
        %v924 = vunpack.c.h.b16 %v571
        %v925 = vunpack.c.l.b16 %v572
        %v926 = vunpack.c.h.b16 %v572
        %v927 = vunpack.c.l.b16 %v573
        %v928 = vunpack.c.h.b16 %v573
        %v929 = vunpack.c.l.b16 %v574
        %v930 = vunpack.c.h.b16 %v574
        %v931 = vunpack.c.l.b16 %v575
        %v932 = vunpack.c.h.b16 %v575
        %v933 = vunpack.c.l.b16 %v576
        %v934 = vunpack.c.h.b16 %v576
        %v935 = vunpack.c.l.b16 %v577
        %v936 = vunpack.c.h.b16 %v577
        %v937 = vunpack.c.l.b16 %v578
        %v938 = vunpack.c.h.b16 %v578
        %v939 = vunpack.c.l.b16 %v579
        %v940 = vunpack.c.h.b16 %v579
        %v941 = vunpack.c.l.b16 %v580
        %v942 = vunpack.c.h.b16 %v580
        %v943 = vunpack.c.l.b16 %v581
        %v944 = vunpack.c.h.b16 %v581
        %v945 = vunpack.c.l.b16 %v582
        %v946 = vunpack.c.h.b16 %v582
        %v947 = vunpack.c.l.b16 %v583
        %v948 = vunpack.c.h.b16 %v583
        %v949 = vunpack.c.l.b16 %v584
        %v950 = vunpack.c.h.b16 %v584
        %v951 = vunpack.c.l.b16 %v585
        %v952 = vunpack.c.h.b16 %v585
        %v953 = vunpack.c.l.b16 %v586
        %v954 = vunpack.c.h.b16 %v586
        %v955 = vunpack.c.l.b16 %v587
        %v956 = vunpack.c.h.b16 %v587
        %v957 = vunpack.c.l.b16 %v588
        %v958 = vunpack.c.h.b16 %v588
        %v959 = vunpack.c.l.b16 %v589
        %v960 = vunpack.c.h.b16 %v589
        %v961 = vunpack.c.l.b16 %v590
        %v962 = vunpack.c.h.b16 %v590
        %v963 = vunpack.c.l.b16 %v591
        %v964 = vunpack.c.h.b16 %v591
        %v965 = vunpack.c.l.b16 %v592
        %v966 = vunpack.c.h.b16 %v592
        %v967 = vunpack.c.l.b16 %v593
        %v968 = vunpack.c.h.b16 %v593
        %v969 = vunpack.c.l.b16 %v594
        %v970 = vunpack.c.h.b16 %v594
        %v971 = vunpack.c.l.b16 %v595
        %v972 = vunpack.c.h.b16 %v595
        %v973 = vunpack.c.l.b16 %v596
        %v974 = vunpack.c.h.b16 %v596
        %v975 = vunpack.c.l.b16 %v597
        %v976 = vunpack.c.h.b16 %v597
        %v977 = vunpack.c.l.b16 %v598
        %v978 = vunpack.c.h.b16 %v598
        %v979 = vunpack.c.l.b16 %v599
        %v980 = vunpack.c.h.b16 %v599
        %v981 = vunpack.c.l.b16 %v600
        %v982 = vunpack.c.h.b16 %v600
        %v983 = vunpack.c.l.b16 %v601
        %v984 = vunpack.c.h.b16 %v601
        %v985 = vunpack.c.l.b16 %v602
        %v986 = vunpack.c.h.b16 %v602
        %v987 = vunpack.c.l.b16 %v603
        %v988 = vunpack.c.h.b16 %v603
        %v989 = vunpack.c.l.b16 %v604
        %v990 = vunpack.c.h.b16 %v604
        %v991 = vunpack.c.l.b16 %v605
        %v992 = vunpack.c.h.b16 %v605
        %v993 = vunpack.c.l.b16 %v606
        %v994 = vunpack.c.h.b16 %v606
        %v995 = vunpack.c.l.b16 %v607
        %v996 = vunpack.c.h.b16 %v607
        %v997 = vunpack.c.l.b16 %v608
        %v998 = vunpack.c.h.b16 %v608
        %v999 = vunpack.c.l.b16 %v609
        %v1000 = vunpack.c.h.b16 %v609
        %v1001 = vunpack.c.l.b16 %v610
        %v1002 = vunpack.c.h.b16 %v610
        %v1003 = vunpack.c.l.b16 %v611
        %v1004 = vunpack.c.h.b16 %v611
        %v1005 = vunpack.c.l.b16 %v612
        %v1006 = vunpack.c.h.b16 %v612
        %v1007 = vunpack.c.l.b16 %v613
        %v1008 = vunpack.c.h.b16 %v613
        %v1009 = vunpack.c.l.b16 %v614
        %v1010 = vunpack.c.h.b16 %v614
        %v1011 = vunpack.c.l.b16 %v615
        %v1012 = vunpack.c.h.b16 %v615
        %v1013 = vunpack.c.l.b16 %v616
        %v1014 = vunpack.c.h.b16 %v616
        %v1015 = vunpack.c.l.b16 %v617
        %v1016 = vunpack.c.h.b16 %v617
        %v1017 = vunpack.c.l.b16 %v618
        %v1018 = vunpack.c.h.b16 %v618
        %v1019 = vunpack.c.l.b16 %v619
        %v1020 = vunpack.c.h.b16 %v619
        %v1021 = vunpack.c.l.b16 %v620
        %v1022 = vunpack.c.h.b16 %v620
        %v1023 = vunpack.c.l.b16 %v621
        %v1024 = vunpack.c.h.b16 %v621
        %v1025 = vunpack.c.l.b16 %v622
        %v1026 = vunpack.c.h.b16 %v622
        %v1027 = vunpack.c.l.b16 %v623
        %v1028 = vunpack.c.h.b16 %v623
        %v1029 = vunpack.c.l.b16 %v624
        %v1030 = vunpack.c.h.b16 %v624
        %v1031 = vunpack.c.l.b16 %v625
        %v1032 = vunpack.c.h.b16 %v625
        %v1033 = vunpack.c.l.b16 %v626
        %v1034 = vunpack.c.h.b16 %v626
        %v1035 = vunpack.c.l.b16 %v627
        %v1036 = vunpack.c.h.b16 %v627
        %v1037 = vunpack.c.l.b16 %v628
        %v1038 = vunpack.c.h.b16 %v628
        %v1039 = vunpack.c.l.b16 %v629
        %v1040 = vunpack.c.h.b16 %v629
        %v1041 = vunpack.c.l.b16 %v630
        %v1042 = vunpack.c.h.b16 %v630
        %v1043 = vunpack.c.l.b16 %v631
        %v1044 = vunpack.c.h.b16 %v631
        %v1045 = vunpack.c.l.b16 %v632
        %v1046 = vunpack.c.h.b16 %v632
        %v1047 = vunpack.c.l.b16 %v633
        %v1048 = vunpack.c.h.b16 %v633
        %v1049 = vunpack.c.l.b16 %v634
        %v1050 = vunpack.c.h.b16 %v634
        %v1051 = vunpack.c.l.b16 %v635
        %v1052 = vunpack.c.h.b16 %v635
        %v1053 = vunpack.c.l.b16 %v636
        %v1054 = vunpack.c.h.b16 %v636
        %v1055 = vunpack.c.l.b16 %v637
        %v1056 = vunpack.c.h.b16 %v637
        %v1057 = vunpack.c.l.b16 %v638
        %v1058 = vunpack.c.h.b16 %v638
        %v1059 = vunpack.c.l.b16 %v639
        %v1060 = vunpack.c.h.b16 %v639
        %v1061 = vunpack.c.l.b16 %v640
        %v1062 = vunpack.c.h.b16 %v640
        %v1063 = vunpack.c.l.b16 %v641
        %v1064 = vunpack.c.h.b16 %v641
        %v1065 = vunpack.c.l.b16 %v642
        %v1066 = vunpack.c.h.b16 %v642
        %v1067 = vunpack.c.l.b16 %v643
        %v1068 = vunpack.c.h.b16 %v643
        %v1069 = vunpack.c.l.b16 %v644
        %v1070 = vunpack.c.h.b16 %v644
        %v1071 = vunpack.c.l.b16 %v645
        %v1072 = vunpack.c.h.b16 %v645
        %v1073 = vunpack.c.l.b16 %v646
        %v1074 = vunpack.c.h.b16 %v646
        %v1075 = vunpack.c.l.b16 %v647
        %v1076 = vunpack.c.h.b16 %v647
        %v1077 = vunpack.c.l.b16 %v648
        %v1078 = vunpack.c.h.b16 %v648
        %v1079 = vunpack.c.l.b16 %v649
        %v1080 = vunpack.c.h.b16 %v649
        %v1081 = vunpack.c.l.b16 %v650
        %v1082 = vunpack.c.h.b16 %v650
        %v1083 = vunpack.c.l.b16 %v651
        %v1084 = vunpack.c.h.b16 %v651
        %v1085 = vunpack.c.l.b16 %v652
        %v1086 = vunpack.c.h.b16 %v652
        %v1087 = vunpack.c.l.b16 %v653
        %v1088 = vunpack.c.h.b16 %v653
        %v1089 = vunpack.c.l.b16 %v654
        %v1090 = vunpack.c.h.b16 %v654
        %v1091 = vunpack.c.l.b16 %v655
        %v1092 = vunpack.c.h.b16 %v655
        %v1093 = vunpack.c.l.b16 %v656
        %v1094 = vunpack.c.h.b16 %v656
        %v1095 = vunpack.c.l.b16 %v657
        %v1096 = vunpack.c.h.b16 %v657
        %v1097 = vunpack.c.l.b16 %v658
        %v1098 = vunpack.c.h.b16 %v658
        %v1099 = vunpack.c.l.b16 %v659
        %v1100 = vunpack.c.h.b16 %v659
        %v1101 = vunpack.c.l.b16 %v660
        %v1102 = vunpack.c.h.b16 %v660
        %v1103 = vunpack.c.l.b16 %v661
        %v1104 = vunpack.c.h.b16 %v661
        %v1105 = vunpack.c.l.b16 %v662
        %v1106 = vunpack.c.h.b16 %v662
        %v1107 = vunpack.c.l.b16 %v663
        %v1108 = vunpack.c.h.b16 %v663
        %v1109 = vunpack.c.l.b16 %v664
        %v1110 = vunpack.c.h.b16 %v664
        %v1111 = vunpack.c.l.b16 %v665
        %v1112 = vunpack.c.h.b16 %v665
        %v1113 = vunpack.c.l.b16 %v666
        %v1114 = vunpack.c.h.b16 %v666
        %v1115 = vunpack.c.l.b16 %v667
        %v1116 = vunpack.c.h.b16 %v667
        %v1117 = vunpack.c.l.b16 %v668
        %v1118 = vunpack.c.h.b16 %v668
        %v1119 = vunpack.c.l.b16 %v669
        %v1120 = vunpack.c.h.b16 %v669
        %v1121 = vunpack.c.l.b16 %v670
        %v1122 = vunpack.c.h.b16 %v670
        %v1123 = vunpack.c.l.b16 %v671
        %v1124 = vunpack.c.h.b16 %v671
        %v1125 = vunpack.c.l.b16 %v672
        %v1126 = vunpack.c.h.b16 %v672
        %v1127 = vunpack.c.l.b16 %v673
        %v1128 = vunpack.c.h.b16 %v673
        %v1129 = vunpack.c.l.b16 %v674
        %v1130 = vunpack.c.h.b16 %v674
        %v1131 = vunpack.c.l.b16 %v675
        %v1132 = vunpack.c.h.b16 %v675
        %v1133 = vunpack.c.l.b16 %v676
        %v1134 = vunpack.c.h.b16 %v676
        %v1135 = vunpack.c.l.b16 %v677
        %v1136 = vunpack.c.h.b16 %v677
        %v1137 = vunpack.c.l.b16 %v678
        %v1138 = vunpack.c.h.b16 %v678
        %v1139 = vunpack.c.l.b16 %v679
        %v1140 = vunpack.c.h.b16 %v679
        %v1141 = vunpack.c.l.b16 %v680
        %v1142 = vunpack.c.h.b16 %v680
        %v1143 = vunpack.c.l.b16 %v681
        %v1144 = vunpack.c.h.b16 %v681
        %v1145 = vunpack.c.l.b16 %v682
        %v1146 = vunpack.c.h.b16 %v682
        %v1147 = vunpack.c.l.b16 %v683
        %v1148 = vunpack.c.h.b16 %v683
        %v1149 = vunpack.c.l.b16 %v684
        %v1150 = vunpack.c.h.b16 %v684
        %v1151 = vunpack.c.l.b16 %v685
        %v1152 = vunpack.c.h.b16 %v685
        %v1153 = vunpack.c.l.b16 %v686
        %v1154 = vunpack.c.h.b16 %v686
        %v1155 = vpack.c.b16 %v867, %v843
        %v1156 = vpack.c.b16 %v868, %v844
        %v1157 = vpack.c.b16 %v869, %v845
        %v1158 = vpack.c.b16 %v870, %v846
        %v1159 = vpack.c.b16 %v871, %v847
        %v1160 = vpack.c.b16 %v872, %v848
        %v1161 = vpack.c.b16 %v873, %v849
        %v1162 = vpack.c.b16 %v874, %v850
        %v1163 = vpack.c.b16 %v875, %v851
        %v1164 = vpack.c.b16 %v876, %v852
        %v1165 = vpack.c.b16 %v877, %v853
        %v1166 = vpack.c.b16 %v878, %v854
        %v1167 = vpack.c.b16 %v879, %v855
        %v1168 = vpack.c.b16 %v880, %v856
        %v1169 = vpack.c.b16 %v881, %v857
        %v1170 = vpack.c.b16 %v882, %v858
        %v1171 = vpack.c.b16 %v883, %v859
        %v1172 = vpack.c.b16 %v884, %v860
        %v1173 = vpack.c.b16 %v885, %v861
        %v1174 = vpack.c.b16 %v886, %v862
        %v1175 = vpack.c.b16 %v887, %v863
        %v1176 = vpack.c.b16 %v888, %v864
        %v1177 = vpack.c.b16 %v889, %v865
        %v1178 = vpack.c.b16 %v890, %v866
        %v1179 = vpack.c.b16 %v915, %v891
        %v1180 = vpack.c.b16 %v916, %v892
        %v1181 = vpack.c.b16 %v917, %v893
        %v1182 = vpack.c.b16 %v918, %v894
        %v1183 = vpack.c.b16 %v919, %v895
        %v1184 = vpack.c.b16 %v920, %v896
        %v1185 = vpack.c.b16 %v921, %v897
        %v1186 = vpack.c.b16 %v922, %v898
        %v1187 = vpack.c.b16 %v923, %v899
        %v1188 = vpack.c.b16 %v924, %v900
        %v1189 = vpack.c.b16 %v925, %v901
        %v1190 = vpack.c.b16 %v926, %v902
        %v1191 = vpack.c.b16 %v927, %v903
        %v1192 = vpack.c.b16 %v928, %v904
        %v1193 = vpack.c.b16 %v929, %v905
        %v1194 = vpack.c.b16 %v930, %v906
        %v1195 = vpack.c.b16 %v931, %v907
        %v1196 = vpack.c.b16 %v932, %v908
        %v1197 = vpack.c.b16 %v933, %v909
        %v1198 = vpack.c.b16 %v934, %v910
        %v1199 = vpack.c.b16 %v935, %v911
        %v1200 = vpack.c.b16 %v936, %v912
        %v1201 = vpack.c.b16 %v937, %v913
        %v1202 = vpack.c.b16 %v938, %v914
        %v1203 = vpack.c.b16 %v963, %v939
        %v1204 = vpack.c.b16 %v964, %v940
        %v1205 = vpack.c.b16 %v965, %v941
        %v1206 = vpack.c.b16 %v966, %v942
        %v1207 = vpack.c.b16 %v967, %v943
        %v1208 = vpack.c.b16 %v968, %v944
        %v1209 = vpack.c.b16 %v969, %v945
        %v1210 = vpack.c.b16 %v970, %v946
        %v1211 = vpack.c.b16 %v971, %v947
        %v1212 = vpack.c.b16 %v972, %v948
        %v1213 = vpack.c.b16 %v973, %v949
        %v1214 = vpack.c.b16 %v974, %v950
        %v1215 = vpack.c.b16 %v975, %v951
        %v1216 = vpack.c.b16 %v976, %v952
        %v1217 = vpack.c.b16 %v977, %v953
        %v1218 = vpack.c.b16 %v978, %v954
        %v1219 = vpack.c.b16 %v979, %v955
        %v1220 = vpack.c.b16 %v980, %v956
        %v1221 = vpack.c.b16 %v981, %v957
        %v1222 = vpack.c.b16 %v982, %v958
        %v1223 = vpack.c.b16 %v983, %v959
        %v1224 = vpack.c.b16 %v984, %v960
        %v1225 = vpack.c.b16 %v985, %v961
        %v1226 = vpack.c.b16 %v986, %v962
        %v1227 = vpack.c.b16 %v1011, %v987
        %v1228 = vpack.c.b16 %v1012, %v988
        %v1229 = vpack.c.b16 %v1013, %v989
        %v1230 = vpack.c.b16 %v1014, %v990
        %v1231 = vpack.c.b16 %v1015, %v991
        %v1232 = vpack.c.b16 %v1016, %v992
        %v1233 = vpack.c.b16 %v1017, %v993
        %v1234 = vpack.c.b16 %v1018, %v994
        %v1235 = vpack.c.b16 %v1019, %v995
        %v1236 = vpack.c.b16 %v1020, %v996
        %v1237 = vpack.c.b16 %v1021, %v997
        %v1238 = vpack.c.b16 %v1022, %v998
        %v1239 = vpack.c.b16 %v1023, %v999
        %v1240 = vpack.c.b16 %v1024, %v1000
        %v1241 = vpack.c.b16 %v1025, %v1001
        %v1242 = vpack.c.b16 %v1026, %v1002
        %v1243 = vpack.c.b16 %v1027, %v1003
        %v1244 = vpack.c.b16 %v1028, %v1004
        %v1245 = vpack.c.b16 %v1029, %v1005
        %v1246 = vpack.c.b16 %v1030, %v1006
        %v1247 = vpack.c.b16 %v1031, %v1007
        %v1248 = vpack.c.b16 %v1032, %v1008
        %v1249 = vpack.c.b16 %v1033, %v1009
        %v1250 = vpack.c.b16 %v1034, %v1010
        %v1251 = vpack.c.b16 %v1059, %v1035
        %v1252 = vpack.c.b16 %v1060, %v1036
        %v1253 = vpack.c.b16 %v1061, %v1037
        %v1254 = vpack.c.b16 %v1062, %v1038
        %v1255 = vpack.c.b16 %v1063, %v1039
        %v1256 = vpack.c.b16 %v1064, %v1040
        %v1257 = vpack.c.b16 %v1065, %v1041
        %v1258 = vpack.c.b16 %v1066, %v1042
        %v1259 = vpack.c.b16 %v1067, %v1043
        %v1260 = vpack.c.b16 %v1068, %v1044
        %v1261 = vpack.c.b16 %v1069, %v1045
        %v1262 = vpack.c.b16 %v1070, %v1046
        %v1263 = vpack.c.b16 %v1071, %v1047
        %v1264 = vpack.c.b16 %v1072, %v1048
        %v1265 = vpack.c.b16 %v1073, %v1049
        %v1266 = vpack.c.b16 %v1074, %v1050
        %v1267 = vpack.c.b16 %v1075, %v1051
        %v1268 = vpack.c.b16 %v1076, %v1052
        %v1269 = vpack.c.b16 %v1077, %v1053
        %v1270 = vpack.c.b16 %v1078, %v1054
        %v1271 = vpack.c.b16 %v1079, %v1055
        %v1272 = vpack.c.b16 %v1080, %v1056
        %v1273 = vpack.c.b16 %v1081, %v1057
        %v1274 = vpack.c.b16 %v1082, %v1058
        %v1275 = vpack.c.b16 %v1107, %v1083
        %v1276 = vpack.c.b16 %v1108, %v1084
        %v1277 = vpack.c.b16 %v1109, %v1085
        %v1278 = vpack.c.b16 %v1110, %v1086
        %v1279 = vpack.c.b16 %v1111, %v1087
        %v1280 = vpack.c.b16 %v1112, %v1088
        %v1281 = vpack.c.b16 %v1113, %v1089
        %v1282 = vpack.c.b16 %v1114, %v1090
        %v1283 = vpack.c.b16 %v1115, %v1091
        %v1284 = vpack.c.b16 %v1116, %v1092
        %v1285 = vpack.c.b16 %v1117, %v1093
        %v1286 = vpack.c.b16 %v1118, %v1094
        %v1287 = vpack.c.b16 %v1119, %v1095
        %v1288 = vpack.c.b16 %v1120, %v1096
        %v1289 = vpack.c.b16 %v1121, %v1097
        %v1290 = vpack.c.b16 %v1122, %v1098
        %v1291 = vpack.c.b16 %v1123, %v1099
        %v1292 = vpack.c.b16 %v1124, %v1100
        %v1293 = vpack.c.b16 %v1125, %v1101
        %v1294 = vpack.c.b16 %v1126, %v1102
        %v1295 = vpack.c.b16 %v1127, %v1103
        %v1296 = vpack.c.b16 %v1128, %v1104
        %v1297 = vpack.c.b16 %v1129, %v1105
        %v1298 = vpack.c.b16 %v1130, %v1106
        %v1299 = vpack.c.b16 %v1131, %v1131
        %v1300 = vpack.c.b16 %v1132, %v1132
        %v1301 = vpack.c.b16 %v1133, %v1133
        %v1302 = vpack.c.b16 %v1134, %v1134
        %v1303 = vpack.c.b16 %v1135, %v1135
        %v1304 = vpack.c.b16 %v1136, %v1136
        %v1305 = vpack.c.b16 %v1137, %v1137
        %v1306 = vpack.c.b16 %v1138, %v1138
        %v1307 = vpack.c.b16 %v1139, %v1139
        %v1308 = vpack.c.b16 %v1140, %v1140
        %v1309 = vpack.c.b16 %v1141, %v1141
        %v1310 = vpack.c.b16 %v1142, %v1142
        %v1311 = vpack.c.b16 %v1143, %v1143
        %v1312 = vpack.c.b16 %v1144, %v1144
        %v1313 = vpack.c.b16 %v1145, %v1145
        %v1314 = vpack.c.b16 %v1146, %v1146
        %v1315 = vpack.c.b16 %v1147, %v1147
        %v1316 = vpack.c.b16 %v1148, %v1148
        %v1317 = vpack.c.b16 %v1149, %v1149
        %v1318 = vpack.c.b16 %v1150, %v1150
        %v1319 = vpack.c.b16 %v1151, %v1151
        %v1320 = vpack.c.b16 %v1152, %v1152
        %v1321 = vpack.c.b16 %v1153, %v1153
        %v1322 = vpack.c.b16 %v1154, %v1154
        %vm1467 = vcmask 818176
        %v1469 = vsel %vm1467, %v530, 0
        %vm1471 = vcmask 1041408
        %v1473 = vsel %vm1471, %v1299, 0
        %v1476 = vsel %vm1471, %v1300, 0
        %v1479 = vsel %vm1471, %v1301, 0
        %v1482 = vsel %vm1471, %v1302, 0
        %v1485 = vsel %vm1471, %v1303, 0
        %v1488 = vsel %vm1471, %v1304, 0
        %v1491 = vsel %vm1471, %v1305, 0
        %v1494 = vsel %vm1471, %v1306, 0
        %v1497 = vsel %vm1471, %v1307, 0
        %v1500 = vsel %vm1471, %v1308, 0
        %v1503 = vsel %vm1471, %v1309, 0
        %v1506 = vsel %vm1471, %v1310, 0
        %v1509 = vsel %vm1471, %v1311, 0
        %v1512 = vsel %vm1471, %v1312, 0
        %v1515 = vsel %vm1471, %v1313, 0
        %v1518 = vsel %vm1471, %v1314, 0
        %v1521 = vsel %vm1471, %v1315, 0
        %v1524 = vsel %vm1471, %v1316, 0
        %v1527 = vsel %vm1471, %v1317, 0
        %v1530 = vsel %vm1471, %v1318, 0
        %v1533 = vsel %vm1471, %v1319, 0
        %v1536 = vsel %vm1471, %v1320, 0
        %v1539 = vsel %vm1471, %v1321, 0
        %v1542 = vsel %vm1471, %v1322, 0
        %1544 = vmatpush.bf16.msra.mxu0 0
        %1545 = vmatpush.bf16.msra.mxu0 %v1473
        %1546 = vmatpush.bf16.msra.mxu0 %v1275
        %1547 = vmatpush.bf16.msra.mxu0 %v1251
        %1548 = vmatpush.bf16.msra.mxu0 %v1227
        %1549 = vmatpush.bf16.msra.mxu0 %v1203
        %1550 = vmatpush.bf16.msra.mxu0 %v1179
        %1551 = vmatpush.bf16.msra.mxu0 %v1155
        %1552 = vmatmul.bf16.gmra.mxu0 %v1469
        %v1553 = vpop.f32.mrf.mxu0
        %v1554 = vadd.f32 0.0, %v1553
        %v1555 = vpop.f32.mrf.mxu0
        %1556 = vdwg.mxu0
        %1557 = vmatpush.bf16.msra.mxu0 0
        %1558 = vmatpush.bf16.msra.mxu0 %v1476
        %1559 = vmatpush.bf16.msra.mxu0 %v1276
        %1560 = vmatpush.bf16.msra.mxu0 %v1252
        %1561 = vmatpush.bf16.msra.mxu0 %v1228
        %1562 = vmatpush.bf16.msra.mxu0 %v1204
        %1563 = vmatpush.bf16.msra.mxu0 %v1180
        %1564 = vmatpush.bf16.msra.mxu0 %v1156
        %1565 = vmatmul.bf16.gmra.mxu0 %v1469
        %v1566 = vpop.f32.mrf.mxu0
        %v1567 = vadd.f32 0.0, %v1566
        %v1568 = vpop.f32.mrf.mxu0
        %1569 = vdwg.mxu0
        %1570 = vmatpush.bf16.msra.mxu0 0
        %1571 = vmatpush.bf16.msra.mxu0 %v1479
        %1572 = vmatpush.bf16.msra.mxu0 %v1277
        %1573 = vmatpush.bf16.msra.mxu0 %v1253
        %1574 = vmatpush.bf16.msra.mxu0 %v1229
        %1575 = vmatpush.bf16.msra.mxu0 %v1205
        %1576 = vmatpush.bf16.msra.mxu0 %v1181
        %1577 = vmatpush.bf16.msra.mxu0 %v1157
        %1578 = vmatmul.bf16.gmra.mxu0 %v1469
        %v1579 = vpop.f32.mrf.mxu0
        %v1580 = vadd.f32 0.0, %v1579
        %v1581 = vpop.f32.mrf.mxu0
        %1582 = vdwg.mxu0
        %1583 = vmatpush.bf16.msra.mxu0 0
        %1584 = vmatpush.bf16.msra.mxu0 %v1482
        %1585 = vmatpush.bf16.msra.mxu0 %v1278
        %1586 = vmatpush.bf16.msra.mxu0 %v1254
        %1587 = vmatpush.bf16.msra.mxu0 %v1230
        %1588 = vmatpush.bf16.msra.mxu0 %v1206
        %1589 = vmatpush.bf16.msra.mxu0 %v1182
        %1590 = vmatpush.bf16.msra.mxu0 %v1158
        %1591 = vmatmul.bf16.gmra.mxu0 %v1469
        %v1592 = vpop.f32.mrf.mxu0
        %v1593 = vadd.f32 0.0, %v1592
        %v1594 = vpop.f32.mrf.mxu0
        %1595 = vdwg.mxu0
        %1596 = vmatpush.bf16.msra.mxu0 0
        %1597 = vmatpush.bf16.msra.mxu0 %v1485
        %1598 = vmatpush.bf16.msra.mxu0 %v1279
        %1599 = vmatpush.bf16.msra.mxu0 %v1255
        %1600 = vmatpush.bf16.msra.mxu0 %v1231
        %1601 = vmatpush.bf16.msra.mxu0 %v1207
        %1602 = vmatpush.bf16.msra.mxu0 %v1183
        %1603 = vmatpush.bf16.msra.mxu0 %v1159
        %1604 = vmatmul.bf16.gmra.mxu0 %v1469
        %v1605 = vpop.f32.mrf.mxu0
        %v1606 = vadd.f32 0.0, %v1605
        %v1607 = vpop.f32.mrf.mxu0
        %1608 = vdwg.mxu0
        %1609 = vmatpush.bf16.msra.mxu0 0
        %1610 = vmatpush.bf16.msra.mxu0 %v1488
        %1611 = vmatpush.bf16.msra.mxu0 %v1280
        %1612 = vmatpush.bf16.msra.mxu0 %v1256
        %1613 = vmatpush.bf16.msra.mxu0 %v1232
        %1614 = vmatpush.bf16.msra.mxu0 %v1208
        %1615 = vmatpush.bf16.msra.mxu0 %v1184
        %1616 = vmatpush.bf16.msra.mxu0 %v1160
        %1617 = vmatmul.bf16.gmra.mxu0 %v1469
        %v1618 = vpop.f32.mrf.mxu0
        %v1619 = vadd.f32 0.0, %v1618
        %v1620 = vpop.f32.mrf.mxu0
        %1621 = vdwg.mxu0
        %1622 = vmatpush.bf16.msra.mxu0 0
        %1623 = vmatpush.bf16.msra.mxu0 %v1491
        %1624 = vmatpush.bf16.msra.mxu0 %v1281
        %1625 = vmatpush.bf16.msra.mxu0 %v1257
        %1626 = vmatpush.bf16.msra.mxu0 %v1233
        %1627 = vmatpush.bf16.msra.mxu0 %v1209
        %1628 = vmatpush.bf16.msra.mxu0 %v1185
        %1629 = vmatpush.bf16.msra.mxu0 %v1161
        %1630 = vmatmul.bf16.gmra.mxu0 %v1469
        %v1631 = vpop.f32.mrf.mxu0
        %v1632 = vadd.f32 0.0, %v1631
        %v1633 = vpop.f32.mrf.mxu0
        %1634 = vdwg.mxu0
        %1635 = vmatpush.bf16.msra.mxu0 0
        %1636 = vmatpush.bf16.msra.mxu0 %v1494
        %1637 = vmatpush.bf16.msra.mxu0 %v1282
        %1638 = vmatpush.bf16.msra.mxu0 %v1258
        %1639 = vmatpush.bf16.msra.mxu0 %v1234
        %1640 = vmatpush.bf16.msra.mxu0 %v1210
        %1641 = vmatpush.bf16.msra.mxu0 %v1186
        %1642 = vmatpush.bf16.msra.mxu0 %v1162
        %1643 = vmatmul.bf16.gmra.mxu0 %v1469
        %v1644 = vpop.f32.mrf.mxu0
        %v1645 = vadd.f32 0.0, %v1644
        %v1646 = vpop.f32.mrf.mxu0
        %1647 = vdwg.mxu0
        %1648 = vmatpush.bf16.msra.mxu0 0
        %1649 = vmatpush.bf16.msra.mxu0 %v1497
        %1650 = vmatpush.bf16.msra.mxu0 %v1283
        %1651 = vmatpush.bf16.msra.mxu0 %v1259
        %1652 = vmatpush.bf16.msra.mxu0 %v1235
        %1653 = vmatpush.bf16.msra.mxu0 %v1211
        %1654 = vmatpush.bf16.msra.mxu0 %v1187
        %1655 = vmatpush.bf16.msra.mxu0 %v1163
        %1656 = vmatmul.bf16.gmra.mxu0 %v1469
        %v1657 = vpop.f32.mrf.mxu0
        %v1658 = vadd.f32 0.0, %v1657
        %v1659 = vpop.f32.mrf.mxu0
        %1660 = vdwg.mxu0
        %1661 = vmatpush.bf16.msra.mxu0 0
        %1662 = vmatpush.bf16.msra.mxu0 %v1500
        %1663 = vmatpush.bf16.msra.mxu0 %v1284
        %1664 = vmatpush.bf16.msra.mxu0 %v1260
        %1665 = vmatpush.bf16.msra.mxu0 %v1236
        %1666 = vmatpush.bf16.msra.mxu0 %v1212
        %1667 = vmatpush.bf16.msra.mxu0 %v1188
        %1668 = vmatpush.bf16.msra.mxu0 %v1164
        %1669 = vmatmul.bf16.gmra.mxu0 %v1469
        %v1670 = vpop.f32.mrf.mxu0
        %v1671 = vadd.f32 0.0, %v1670
        %v1672 = vpop.f32.mrf.mxu0
        %1673 = vdwg.mxu0
        %1674 = vmatpush.bf16.msra.mxu0 0
        %1675 = vmatpush.bf16.msra.mxu0 %v1503
        %1676 = vmatpush.bf16.msra.mxu0 %v1285
        %1677 = vmatpush.bf16.msra.mxu0 %v1261
        %1678 = vmatpush.bf16.msra.mxu0 %v1237
        %1679 = vmatpush.bf16.msra.mxu0 %v1213
        %1680 = vmatpush.bf16.msra.mxu0 %v1189
        %1681 = vmatpush.bf16.msra.mxu0 %v1165
        %1682 = vmatmul.bf16.gmra.mxu0 %v1469
        %v1683 = vpop.f32.mrf.mxu0
        %v1684 = vadd.f32 0.0, %v1683
        %v1685 = vpop.f32.mrf.mxu0
        %1686 = vdwg.mxu0
        %1687 = vmatpush.bf16.msra.mxu0 0
        %1688 = vmatpush.bf16.msra.mxu0 %v1506
        %1689 = vmatpush.bf16.msra.mxu0 %v1286
        %1690 = vmatpush.bf16.msra.mxu0 %v1262
        %1691 = vmatpush.bf16.msra.mxu0 %v1238
        %1692 = vmatpush.bf16.msra.mxu0 %v1214
        %1693 = vmatpush.bf16.msra.mxu0 %v1190
        %1694 = vmatpush.bf16.msra.mxu0 %v1166
        %1695 = vmatmul.bf16.gmra.mxu0 %v1469
        %v1696 = vpop.f32.mrf.mxu0
        %v1697 = vadd.f32 0.0, %v1696
        %v1698 = vpop.f32.mrf.mxu0
        %1699 = vdwg.mxu0
        %1700 = vmatpush.bf16.msra.mxu0 0
        %1701 = vmatpush.bf16.msra.mxu0 %v1509
        %1702 = vmatpush.bf16.msra.mxu0 %v1287
        %1703 = vmatpush.bf16.msra.mxu0 %v1263
        %1704 = vmatpush.bf16.msra.mxu0 %v1239
        %1705 = vmatpush.bf16.msra.mxu0 %v1215
        %1706 = vmatpush.bf16.msra.mxu0 %v1191
        %1707 = vmatpush.bf16.msra.mxu0 %v1167
        %1708 = vmatmul.bf16.gmra.mxu0 %v1469
        %v1709 = vpop.f32.mrf.mxu0
        %v1710 = vadd.f32 0.0, %v1709
        %v1711 = vpop.f32.mrf.mxu0
        %1712 = vdwg.mxu0
        %1713 = vmatpush.bf16.msra.mxu0 0
        %1714 = vmatpush.bf16.msra.mxu0 %v1512
        %1715 = vmatpush.bf16.msra.mxu0 %v1288
        %1716 = vmatpush.bf16.msra.mxu0 %v1264
        %1717 = vmatpush.bf16.msra.mxu0 %v1240
        %1718 = vmatpush.bf16.msra.mxu0 %v1216
        %1719 = vmatpush.bf16.msra.mxu0 %v1192
        %1720 = vmatpush.bf16.msra.mxu0 %v1168
        %1721 = vmatmul.bf16.gmra.mxu0 %v1469
        %v1722 = vpop.f32.mrf.mxu0
        %v1723 = vadd.f32 0.0, %v1722
        %v1724 = vpop.f32.mrf.mxu0
        %1725 = vdwg.mxu0
        %1726 = vmatpush.bf16.msra.mxu0 0
        %1727 = vmatpush.bf16.msra.mxu0 %v1515
        %1728 = vmatpush.bf16.msra.mxu0 %v1289
        %1729 = vmatpush.bf16.msra.mxu0 %v1265
        %1730 = vmatpush.bf16.msra.mxu0 %v1241
        %1731 = vmatpush.bf16.msra.mxu0 %v1217
        %1732 = vmatpush.bf16.msra.mxu0 %v1193
        %1733 = vmatpush.bf16.msra.mxu0 %v1169
        %1734 = vmatmul.bf16.gmra.mxu0 %v1469
        %v1735 = vpop.f32.mrf.mxu0
        %v1736 = vadd.f32 0.0, %v1735
        %v1737 = vpop.f32.mrf.mxu0
        %1738 = vdwg.mxu0
        %1739 = vmatpush.bf16.msra.mxu0 0
        %1740 = vmatpush.bf16.msra.mxu0 %v1518
        %1741 = vmatpush.bf16.msra.mxu0 %v1290
        %1742 = vmatpush.bf16.msra.mxu0 %v1266
        %1743 = vmatpush.bf16.msra.mxu0 %v1242
        %1744 = vmatpush.bf16.msra.mxu0 %v1218
        %1745 = vmatpush.bf16.msra.mxu0 %v1194
        %1746 = vmatpush.bf16.msra.mxu0 %v1170
        %1747 = vmatmul.bf16.gmra.mxu0 %v1469
        %v1748 = vpop.f32.mrf.mxu0
        %v1749 = vadd.f32 0.0, %v1748
        %v1750 = vpop.f32.mrf.mxu0
        %1751 = vdwg.mxu0
        %1752 = vmatpush.bf16.msra.mxu0 0
        %1753 = vmatpush.bf16.msra.mxu0 %v1521
        %1754 = vmatpush.bf16.msra.mxu0 %v1291
        %1755 = vmatpush.bf16.msra.mxu0 %v1267
        %1756 = vmatpush.bf16.msra.mxu0 %v1243
        %1757 = vmatpush.bf16.msra.mxu0 %v1219
        %1758 = vmatpush.bf16.msra.mxu0 %v1195
        %1759 = vmatpush.bf16.msra.mxu0 %v1171
        %1760 = vmatmul.bf16.gmra.mxu0 %v1469
        %v1761 = vpop.f32.mrf.mxu0
        %v1762 = vadd.f32 0.0, %v1761
        %v1763 = vpop.f32.mrf.mxu0
        %1764 = vdwg.mxu0
        %1765 = vmatpush.bf16.msra.mxu0 0
        %1766 = vmatpush.bf16.msra.mxu0 %v1524
        %1767 = vmatpush.bf16.msra.mxu0 %v1292
        %1768 = vmatpush.bf16.msra.mxu0 %v1268
        %1769 = vmatpush.bf16.msra.mxu0 %v1244
        %1770 = vmatpush.bf16.msra.mxu0 %v1220
        %1771 = vmatpush.bf16.msra.mxu0 %v1196
        %1772 = vmatpush.bf16.msra.mxu0 %v1172
        %1773 = vmatmul.bf16.gmra.mxu0 %v1469
        %v1774 = vpop.f32.mrf.mxu0
        %v1775 = vadd.f32 0.0, %v1774
        %v1776 = vpop.f32.mrf.mxu0
        %1777 = vdwg.mxu0
        %1778 = vmatpush.bf16.msra.mxu0 0
        %1779 = vmatpush.bf16.msra.mxu0 %v1527
        %1780 = vmatpush.bf16.msra.mxu0 %v1293
        %1781 = vmatpush.bf16.msra.mxu0 %v1269
        %1782 = vmatpush.bf16.msra.mxu0 %v1245
        %1783 = vmatpush.bf16.msra.mxu0 %v1221
        %1784 = vmatpush.bf16.msra.mxu0 %v1197
        %1785 = vmatpush.bf16.msra.mxu0 %v1173
        %1786 = vmatmul.bf16.gmra.mxu0 %v1469
        %v1787 = vpop.f32.mrf.mxu0
        %v1788 = vadd.f32 0.0, %v1787
        %v1789 = vpop.f32.mrf.mxu0
        %1790 = vdwg.mxu0
        %1791 = vmatpush.bf16.msra.mxu0 0
        %1792 = vmatpush.bf16.msra.mxu0 %v1530
        %1793 = vmatpush.bf16.msra.mxu0 %v1294
        %1794 = vmatpush.bf16.msra.mxu0 %v1270
        %1795 = vmatpush.bf16.msra.mxu0 %v1246
        %1796 = vmatpush.bf16.msra.mxu0 %v1222
        %1797 = vmatpush.bf16.msra.mxu0 %v1198
        %1798 = vmatpush.bf16.msra.mxu0 %v1174
        %1799 = vmatmul.bf16.gmra.mxu0 %v1469
        %v1800 = vpop.f32.mrf.mxu0
        %v1801 = vadd.f32 0.0, %v1800
        %v1802 = vpop.f32.mrf.mxu0
        %1803 = vdwg.mxu0
        %1804 = vmatpush.bf16.msra.mxu0 0
        %1805 = vmatpush.bf16.msra.mxu0 %v1533
        %1806 = vmatpush.bf16.msra.mxu0 %v1295
        %1807 = vmatpush.bf16.msra.mxu0 %v1271
        %1808 = vmatpush.bf16.msra.mxu0 %v1247
        %1809 = vmatpush.bf16.msra.mxu0 %v1223
        %1810 = vmatpush.bf16.msra.mxu0 %v1199
        %1811 = vmatpush.bf16.msra.mxu0 %v1175
        %1812 = vmatmul.bf16.gmra.mxu0 %v1469
        %v1813 = vpop.f32.mrf.mxu0
        %v1814 = vadd.f32 0.0, %v1813
        %v1815 = vpop.f32.mrf.mxu0
        %1816 = vdwg.mxu0
        %1817 = vmatpush.bf16.msra.mxu0 0
        %1818 = vmatpush.bf16.msra.mxu0 %v1536
        %1819 = vmatpush.bf16.msra.mxu0 %v1296
        %1820 = vmatpush.bf16.msra.mxu0 %v1272
        %1821 = vmatpush.bf16.msra.mxu0 %v1248
        %1822 = vmatpush.bf16.msra.mxu0 %v1224
        %1823 = vmatpush.bf16.msra.mxu0 %v1200
        %1824 = vmatpush.bf16.msra.mxu0 %v1176
        %1825 = vmatmul.bf16.gmra.mxu0 %v1469
        %v1826 = vpop.f32.mrf.mxu0
        %v1827 = vadd.f32 0.0, %v1826
        %v1828 = vpop.f32.mrf.mxu0
        %1829 = vdwg.mxu0
        %1830 = vmatpush.bf16.msra.mxu0 0
        %1831 = vmatpush.bf16.msra.mxu0 %v1539
        %1832 = vmatpush.bf16.msra.mxu0 %v1297
        %1833 = vmatpush.bf16.msra.mxu0 %v1273
        %1834 = vmatpush.bf16.msra.mxu0 %v1249
        %1835 = vmatpush.bf16.msra.mxu0 %v1225
        %1836 = vmatpush.bf16.msra.mxu0 %v1201
        %1837 = vmatpush.bf16.msra.mxu0 %v1177
        %1838 = vmatmul.bf16.gmra.mxu0 %v1469
        %v1839 = vpop.f32.mrf.mxu0
        %v1840 = vadd.f32 0.0, %v1839
        %v1841 = vpop.f32.mrf.mxu0
        %1842 = vdwg.mxu0
        %1843 = vmatpush.bf16.msra.mxu0 0
        %1844 = vmatpush.bf16.msra.mxu0 %v1542
        %1845 = vmatpush.bf16.msra.mxu0 %v1298
        %1846 = vmatpush.bf16.msra.mxu0 %v1274
        %1847 = vmatpush.bf16.msra.mxu0 %v1250
        %1848 = vmatpush.bf16.msra.mxu0 %v1226
        %1849 = vmatpush.bf16.msra.mxu0 %v1202
        %1850 = vmatpush.bf16.msra.mxu0 %v1178
        %1851 = vmatmul.bf16.gmra.mxu0 %v1469
        %v1852 = vpop.f32.mrf.mxu0
        %v1853 = vadd.f32 0.0, %v1852
        %v1854 = vpop.f32.mrf.mxu0
        %1855 = vdwg.mxu0
        %v1856 = vmax.f32 %v1554, %v1632
        %v1857 = vmax.f32 %v1567, %v1645
        %v1858 = vmax.f32 %v1580, %v1658
        %v1859 = vmax.f32 %v1593, %v1671
        %v1860 = vmax.f32 %v1606, %v1684
        %v1861 = vmax.f32 %v1619, %v1697
        %v1862 = vmax.f32 %v1710, %v1788
        %v1863 = vmax.f32 %v1723, %v1801
        %v1864 = vmax.f32 %v1736, %v1814
        %v1865 = vmax.f32 %v1749, %v1827
        %v1866 = vmax.f32 %v1762, %v1840
        %v1867 = vmax.f32 %v1775, %v1853
        %v1868 = vmax.f32 %v1856, %v1862
        %v1869 = vmax.f32 %v1857, %v1863
        %v1870 = vmax.f32 %v1858, %v1864
        %v1871 = vmax.f32 %v1859, %v1865
        %v1872 = vmax.f32 %v1860, %v1866
        %v1873 = vmax.f32 %v1861, %v1867
        %v1874 = vld [vmem:[%s2] sm:$0xff]
        %v1875 = vld [vmem:[%s2 + $0x8] sm:$0xff]
        %v1876 = vld [vmem:[%s2 + $0x10] sm:$0xff]
        %v1877 = vld [vmem:[%s2 + $0x18] sm:$0xff]
        %v1878 = vld [vmem:[%s2 + $0x20] sm:$0xff]
        %v1879 = vld [vmem:[%s2 + $0x28] sm:$0xff]
        %v1880 = vadd.f32 %v1868, %v1874
        %v1881 = vadd.f32 %v1869, %v1875
        %v1882 = vadd.f32 %v1870, %v1876
        %v1883 = vadd.f32 %v1871, %v1877
        %v1884 = vadd.f32 %v1872, %v1878
        %v1885 = vadd.f32 %v1873, %v1879
        %v1886 = vmax.f32 %v1880, 0.0
        %v1887 = vmax.f32 %v1881, 0.0
        %v1888 = vmax.f32 %v1882, 0.0
        %v1889 = vmax.f32 %v1883, 0.0
        %v1890 = vmax.f32 %v1884, 0.0
        %v1891 = vmax.f32 %v1885, 0.0
        %v1892 = vpack.c.bf16 %v1887, %v1886
        %v1893 = vpack.c.bf16 %v1889, %v1888
        %v1894 = vpack.c.bf16 %v1891, %v1890
        %1895 = vst [vmem:[%s527] sm:$0xff] %v1892
        %1896 = vst [vmem:[%s527 + $0x8] sm:$0xff] %v1893
        %1897 = vst [vmem:[%s527 + $0x10] sm:$0xff] %v1894
        %s1898 = smul.u32 6, %s19
        %p1899 = scmp.lt.s32.totalorder %s18, 1
        %s1900 = scalar_select %p1899, %s18, 1
        %p1901 = scmp.lt.s32.totalorder %s1898, 11
        %s1902 = scalar_select %p1901, %s1898, 11
        %s1903 = smul.addr %s1900, 12
        %s1904 = sadd.s32 %s1902, %s1903
        %s1905 = smul.addr %s1904, 4
        %s1906 = scalar_lea.vmem %s3, %s1905
        // Predicated region
        $region56: #{value_net_forward.2} parent=50 // pred_check
          %p1907 = pneg %p116
        $region57: #{value_net_forward.2} parent=50 // pred_check_branch
          %1909 = sbr.rel (%p1907) target = $region59
        $region58: #{value_net_forward.2} parent=50 // pred_region
          %s1910 = smul.u32 6, %s19
        $region59: #{value_net_forward.2} parent=50 // pred_fallthru
          _
      $region51: #{value_net_forward.2} parent=5 // pred_fallthru
        _
      %p1911 = scmp.le.s32.totalorder 2, %s9
      // Predicated region
      $region60: #{value_net_forward.2} parent=5 // pred_check
        %p1912 = pneg %p1911
      $region61: #{value_net_forward.2} parent=5 // pred_check_branch
        %1914 = sbr.rel (%p1912) target = $region63
      $region62: #{value_net_forward.2} parent=5 // pred_region
        %s1915 = ssub.s32 %s9, 2
        // Predicated region
        $region64: #{value_net_forward.2} parent=62 // pred_check
          %p1916 = pneg %p122
        $region65: #{value_net_forward.2} parent=62 // pred_check_branch
          %1918 = sbr.rel (%p1916) target = $region67
        $region66: #{value_net_forward.2} parent=62 // pred_region
          %s1919 = smul.u32 6, %s21
          %p1920 = scmp.lt.s32.totalorder %s20, 1
          %s1921 = scalar_select %p1920, %s20, 1
          %p1922 = scmp.lt.s32.totalorder %s1919, 11
          %s1923 = scalar_select %p1922, %s1919, 11
          %s1924 = smul.addr %s1921, 12
          %s1925 = sadd.s32 %s1923, %s1924
          %s1926 = smul.addr %s1925, 4
          %s1927 = scalar_lea.vmem %s3, %s1926
        $region67: #{value_net_forward.2} parent=62 // pred_fallthru
          _
      $region63: #{value_net_forward.2} parent=5 // pred_fallthru
        _
    $region6: #{value_net_forward.2} parent=1 // loop_footer
      %s13 = sadd.s32 1, %s9
    $region7: #{value_net_forward.2} parent=1 // loop_footer_branch
      %8 = sbr.rel target = $region3
    $region8: #{value_net_forward.2} parent=1 // loop_exit
      _

// kernel: value_net_forward.3
$region0: #{value_net_forward.3}
  #allocation0 [shape = 'u32[]', space=smem, size = 0x4, offset = 0x4, fixed_abs, tag = 'smem constant byte address 0x4 - core index']
  #allocation1 [shape = 'u32[72,128]{1,0:T(1,128)}', space=vmem, size = 0x9000, scoped, tag = 'internal scratch']
  %s0 = inlined_call_operand.vmem [shape: bf16[2,150,1024], index: 0, kind: input, shape index: {}]
  %s1 = inlined_call_operand.vmem [shape: bf16[16,150], index: 1, kind: input, shape index: {}]
  %s2 = inlined_call_operand.vmem [shape: f32[16,256], index: 2, kind: input, shape index: {}]
  %s3 = inlined_call_operand.vmem [shape: bf16[256,2048], index: 3, kind: input, shape index: {}]
  %s4 = inlined_call_operand.vmem [shape: f32[1,128], index: 4, kind: input, shape index: {}]
  %s5 = inlined_call_operand.vmem [shape: bf16[128,128], index: 5, kind: input, shape index: {}]
  %s6 = inlined_call_operand.vmem [shape: f32[1,128], index: 6, kind: input, shape index: {}]
  %s7 = inlined_call_operand.vmem [shape: bf16[128,128], index: 7, kind: input, shape index: {}]
  %s8 = inlined_call_operand.vmem [shape: f32[1,128], index: 8, kind: input, shape index: {}]
  %s9 = inlined_call_operand.vmem [shape: f32[2,1,128], index: 9, kind: output, shape index: {}]
  %s10 = sld [smem:[#allocation0]]
  $region69: #{value_net_forward.3} parent=0
    _
  %s12 = ssub.s32 1, %s10
  %s13 = scalar_select 0, %s12, %s10
  loop: start=0, step=1, limit=4
  $region2: #{value_net_forward.3} parent=0 // loop_pre_header
    _
  $region3: #{value_net_forward.3} parent=0 // loop_header
    %s15 = sphi 0, %s19
    %p16 = scmp.ge.s32.totalorder %s15, 4
    %s25 = sphi 0, %s27
    %s28 = sphi 0, %s25
    %s29 = sphi 0, %s28
    %s45 = sphi 0, %s29
    %s49 = sphi 0, %s49
    %s51 = sphi 0, %s49
    %s52 = sphi 0, %s51
    %s66 = sphi 0, %s52
    %s70 = sphi 0, %s70
    %s72 = sphi 0, %s70
    %s73 = sphi 0, %s72
    %s87 = sphi 0, %s73
    %s91 = sphi 0, %s91
    %s93 = sphi 0, %s91
    %s94 = sphi 0, %s93
    %s108 = sphi 0, %s94
    %s112 = sphi 0, %s112
    %s114 = sphi 0, %s112
    %s115 = sphi 0, %s114
    %s129 = sphi 0, %s115
    %s133 = sphi 0, %s133
    %s135 = sphi 0, %s133
    %s136 = sphi 0, %s135
    %s150 = sphi 0, %s136
    %s154 = sphi 0, %s154
    %s156 = sphi 0, %s154
    %s157 = sphi 0, %s156
    %s171 = sphi 0, %s157
    %s175 = sphi 0, %s175
    %s177 = sphi 0, %s175
    %s178 = sphi 0, %s177
    %s192 = sphi 0, %s178
    %s196 = sphi 0, %s196
    %s198 = sphi 0, %s196
    %s199 = sphi 0, %s198
    %s213 = sphi 0, %s199
    %s219 = sphi 0, %s221
    %s222 = sphi 0, %s219
    %s223 = sphi 0, %s222
    %s239 = sphi 0, %s223
  $region4: #{value_net_forward.3} parent=0 // loop_header_branch
    %18 = sbr.rel (%p16) target = $region8
  $region5: #{value_net_forward.3} parent=0 // loop_body
    %s20 = ssub.s32 %s15, 1
    %s21 = ssub.s32 %s15, 2
    %s22 = sadd.s32 %s15, 1
    %s23 = ssub.s32 %s15, %s22
    %p24 = scmp.eq.s32.totalorder %s23, 0
    %s26 = sadd.s32 %s25, 1
    %s27 = scalar_select %p24, %s25, %s26
    %p30 = pneg %p24
    %p31 = scmp.eq.s32.totalorder %s15, 1
    %p32 = por %p30, %p31
    %p33 = scmp.ne.s32.totalorder %s25, %s28
    %p34 = scmp.eq.s32.totalorder %s15, 0
    %p35 = por %p33, %p34
    %p36 = scmp.ne.s32.totalorder %s25, %s28
    %p37 = scmp.eq.s32.totalorder %s20, 1
    %p38 = por %p36, %p37
    %p39 = scmp.ne.s32.totalorder %s28, %s29
    %p40 = scmp.eq.s32.totalorder %s20, 0
    %p41 = por %p39, %p40
    %p42 = scmp.ne.s32.totalorder %s28, %s29
    %p43 = scmp.eq.s32.totalorder %s21, 1
    %p44 = por %p42, %p43
    %p46 = scmp.ne.s32.totalorder %s29, %s45
    %p47 = scmp.eq.s32.totalorder %s21, 0
    %p48 = por %p46, %p47
    %s50 = sadd.s32 %s49, 1
    %p53 = scmp.eq.s32.totalorder %s15, 1
    %p54 = scmp.ne.s32.totalorder %s49, %s51
    %p55 = scmp.eq.s32.totalorder %s15, 0
    %p56 = por %p54, %p55
    %p57 = scmp.ne.s32.totalorder %s49, %s51
    %p58 = scmp.eq.s32.totalorder %s20, 1
    %p59 = por %p57, %p58
    %p60 = scmp.ne.s32.totalorder %s51, %s52
    %p61 = scmp.eq.s32.totalorder %s20, 0
    %p62 = por %p60, %p61
    %p63 = scmp.ne.s32.totalorder %s51, %s52
    %p64 = scmp.eq.s32.totalorder %s21, 1
    %p65 = por %p63, %p64
    %p67 = scmp.ne.s32.totalorder %s52, %s66
    %p68 = scmp.eq.s32.totalorder %s21, 0
    %p69 = por %p67, %p68
    %s71 = sadd.s32 %s70, 1
    %p74 = scmp.eq.s32.totalorder %s15, 1
    %p75 = scmp.ne.s32.totalorder %s70, %s72
    %p76 = scmp.eq.s32.totalorder %s15, 0
    %p77 = por %p75, %p76
    %p78 = scmp.ne.s32.totalorder %s70, %s72
    %p79 = scmp.eq.s32.totalorder %s20, 1
    %p80 = por %p78, %p79
    %p81 = scmp.ne.s32.totalorder %s72, %s73
    %p82 = scmp.eq.s32.totalorder %s20, 0
    %p83 = por %p81, %p82
    %p84 = scmp.ne.s32.totalorder %s72, %s73
    %p85 = scmp.eq.s32.totalorder %s21, 1
    %p86 = por %p84, %p85
    %p88 = scmp.ne.s32.totalorder %s73, %s87
    %p89 = scmp.eq.s32.totalorder %s21, 0
    %p90 = por %p88, %p89
    %s92 = sadd.s32 %s91, 1
    %p95 = scmp.eq.s32.totalorder %s15, 1
    %p96 = scmp.ne.s32.totalorder %s91, %s93
    %p97 = scmp.eq.s32.totalorder %s15, 0
    %p98 = por %p96, %p97
    %p99 = scmp.ne.s32.totalorder %s91, %s93
    %p100 = scmp.eq.s32.totalorder %s20, 1
    %p101 = por %p99, %p100
    %p102 = scmp.ne.s32.totalorder %s93, %s94
    %p103 = scmp.eq.s32.totalorder %s20, 0
    %p104 = por %p102, %p103
    %p105 = scmp.ne.s32.totalorder %s93, %s94
    %p106 = scmp.eq.s32.totalorder %s21, 1
    %p107 = por %p105, %p106
    %p109 = scmp.ne.s32.totalorder %s94, %s108
    %p110 = scmp.eq.s32.totalorder %s21, 0
    %p111 = por %p109, %p110
    %s113 = sadd.s32 %s112, 1
    %p116 = scmp.eq.s32.totalorder %s15, 1
    %p117 = scmp.ne.s32.totalorder %s112, %s114
    %p118 = scmp.eq.s32.totalorder %s15, 0
    %p119 = por %p117, %p118
    %p120 = scmp.ne.s32.totalorder %s112, %s114
    %p121 = scmp.eq.s32.totalorder %s20, 1
    %p122 = por %p120, %p121
    %p123 = scmp.ne.s32.totalorder %s114, %s115
    %p124 = scmp.eq.s32.totalorder %s20, 0
    %p125 = por %p123, %p124
    %p126 = scmp.ne.s32.totalorder %s114, %s115
    %p127 = scmp.eq.s32.totalorder %s21, 1
    %p128 = por %p126, %p127
    %p130 = scmp.ne.s32.totalorder %s115, %s129
    %p131 = scmp.eq.s32.totalorder %s21, 0
    %p132 = por %p130, %p131
    %s134 = sadd.s32 %s133, 1
    %p137 = scmp.eq.s32.totalorder %s15, 1
    %p138 = scmp.ne.s32.totalorder %s133, %s135
    %p139 = scmp.eq.s32.totalorder %s15, 0
    %p140 = por %p138, %p139
    %p141 = scmp.ne.s32.totalorder %s133, %s135
    %p142 = scmp.eq.s32.totalorder %s20, 1
    %p143 = por %p141, %p142
    %p144 = scmp.ne.s32.totalorder %s135, %s136
    %p145 = scmp.eq.s32.totalorder %s20, 0
    %p146 = por %p144, %p145
    %p147 = scmp.ne.s32.totalorder %s135, %s136
    %p148 = scmp.eq.s32.totalorder %s21, 1
    %p149 = por %p147, %p148
    %p151 = scmp.ne.s32.totalorder %s136, %s150
    %p152 = scmp.eq.s32.totalorder %s21, 0
    %p153 = por %p151, %p152
    %s155 = sadd.s32 %s154, 1
    %p158 = scmp.eq.s32.totalorder %s15, 1
    %p159 = scmp.ne.s32.totalorder %s154, %s156
    %p160 = scmp.eq.s32.totalorder %s15, 0
    %p161 = por %p159, %p160
    %p162 = scmp.ne.s32.totalorder %s154, %s156
    %p163 = scmp.eq.s32.totalorder %s20, 1
    %p164 = por %p162, %p163
    %p165 = scmp.ne.s32.totalorder %s156, %s157
    %p166 = scmp.eq.s32.totalorder %s20, 0
    %p167 = por %p165, %p166
    %p168 = scmp.ne.s32.totalorder %s156, %s157
    %p169 = scmp.eq.s32.totalorder %s21, 1
    %p170 = por %p168, %p169
    %p172 = scmp.ne.s32.totalorder %s157, %s171
    %p173 = scmp.eq.s32.totalorder %s21, 0
    %p174 = por %p172, %p173
    %s176 = sadd.s32 %s175, 1
    %p179 = scmp.eq.s32.totalorder %s15, 1
    %p180 = scmp.ne.s32.totalorder %s175, %s177
    %p181 = scmp.eq.s32.totalorder %s15, 0
    %p182 = por %p180, %p181
    %p183 = scmp.ne.s32.totalorder %s175, %s177
    %p184 = scmp.eq.s32.totalorder %s20, 1
    %p185 = por %p183, %p184
    %p186 = scmp.ne.s32.totalorder %s177, %s178
    %p187 = scmp.eq.s32.totalorder %s20, 0
    %p188 = por %p186, %p187
    %p189 = scmp.ne.s32.totalorder %s177, %s178
    %p190 = scmp.eq.s32.totalorder %s21, 1
    %p191 = por %p189, %p190
    %p193 = scmp.ne.s32.totalorder %s178, %s192
    %p194 = scmp.eq.s32.totalorder %s21, 0
    %p195 = por %p193, %p194
    %s197 = sadd.s32 %s196, 1
    %p200 = scmp.eq.s32.totalorder %s15, 1
    %p201 = scmp.ne.s32.totalorder %s196, %s198
    %p202 = scmp.eq.s32.totalorder %s15, 0
    %p203 = por %p201, %p202
    %p204 = scmp.ne.s32.totalorder %s196, %s198
    %p205 = scmp.eq.s32.totalorder %s20, 1
    %p206 = por %p204, %p205
    %p207 = scmp.ne.s32.totalorder %s198, %s199
    %p208 = scmp.eq.s32.totalorder %s20, 0
    %p209 = por %p207, %p208
    %p210 = scmp.ne.s32.totalorder %s198, %s199
    %p211 = scmp.eq.s32.totalorder %s21, 1
    %p212 = por %p210, %p211
    %p214 = scmp.ne.s32.totalorder %s199, %s213
    %p215 = scmp.eq.s32.totalorder %s21, 0
    %p216 = por %p214, %p215
    %s217 = ssub.s32 %s15, %s22
    %p218 = scmp.eq.s32.totalorder %s217, 0
    %s220 = sadd.s32 %s219, 1
    %s221 = scalar_select %p218, %s219, %s220
    %p224 = pneg %p218
    %p225 = scmp.eq.s32.totalorder %s15, 1
    %p226 = por %p224, %p225
    %p227 = scmp.ne.s32.totalorder %s219, %s222
    %p228 = scmp.eq.s32.totalorder %s15, 0
    %p229 = por %p227, %p228
    %p230 = scmp.ne.s32.totalorder %s219, %s222
    %p231 = scmp.eq.s32.totalorder %s20, 1
    %p232 = por %p230, %p231
    %p233 = scmp.ne.s32.totalorder %s222, %s223
    %p234 = scmp.eq.s32.totalorder %s20, 0
    %p235 = por %p233, %p234
    %p236 = scmp.ne.s32.totalorder %s222, %s223
    %p237 = scmp.eq.s32.totalorder %s21, 1
    %p238 = por %p236, %p237
    %p240 = scmp.ne.s32.totalorder %s223, %s239
    %p241 = scmp.eq.s32.totalorder %s21, 0
    %p242 = por %p240, %p241
    %p243 = scmp.le.s32.totalorder 1, %s15
    %p244 = scmp.lt.s32.totalorder %s15, 3
    %p245 = pnand %p243, %p244
    %p246 = pneg %p245
    // Predicated region
    $region9: #{value_net_forward.3} parent=5 // pred_check
      _
    $region10: #{value_net_forward.3} parent=5 // pred_check_branch
      %248 = sbr.rel (%p245) target = $region12
    $region11: #{value_net_forward.3} parent=5 // pred_region
      %s249 = ssub.s32 %s15, 1
      // Predicated region
      $region13: #{value_net_forward.3} parent=11 // pred_check
        %p250 = pneg %p62
      $region14: #{value_net_forward.3} parent=11 // pred_check_branch
        %252 = sbr.rel (%p250) target = $region16
      $region15: #{value_net_forward.3} parent=11 // pred_region
        _
      $region16: #{value_net_forward.3} parent=11 // pred_fallthru
        _
      // Predicated region
      $region17: #{value_net_forward.3} parent=11 // pred_check
        %p253 = pneg %p83
      $region18: #{value_net_forward.3} parent=11 // pred_check_branch
        %255 = sbr.rel (%p253) target = $region20
      $region19: #{value_net_forward.3} parent=11 // pred_region
        _
      $region20: #{value_net_forward.3} parent=11 // pred_fallthru
        _
      // Predicated region
      $region21: #{value_net_forward.3} parent=11 // pred_check
        %p256 = pneg %p104
      $region22: #{value_net_forward.3} parent=11 // pred_check_branch
        %258 = sbr.rel (%p256) target = $region24
      $region23: #{value_net_forward.3} parent=11 // pred_region
        _
      $region24: #{value_net_forward.3} parent=11 // pred_fallthru
        _
      // Predicated region
      $region25: #{value_net_forward.3} parent=11 // pred_check
        %p259 = pneg %p125
      $region26: #{value_net_forward.3} parent=11 // pred_check_branch
        %261 = sbr.rel (%p259) target = $region28
      $region27: #{value_net_forward.3} parent=11 // pred_region
        _
      $region28: #{value_net_forward.3} parent=11 // pred_fallthru
        _
      // Predicated region
      $region29: #{value_net_forward.3} parent=11 // pred_check
        %p262 = pneg %p146
      $region30: #{value_net_forward.3} parent=11 // pred_check_branch
        %264 = sbr.rel (%p262) target = $region32
      $region31: #{value_net_forward.3} parent=11 // pred_region
        _
      $region32: #{value_net_forward.3} parent=11 // pred_fallthru
        _
      // Predicated region
      $region33: #{value_net_forward.3} parent=11 // pred_check
        %p265 = pneg %p167
      $region34: #{value_net_forward.3} parent=11 // pred_check_branch
        %267 = sbr.rel (%p265) target = $region36
      $region35: #{value_net_forward.3} parent=11 // pred_region
        _
      $region36: #{value_net_forward.3} parent=11 // pred_fallthru
        _
      // Predicated region
      $region37: #{value_net_forward.3} parent=11 // pred_check
        %p268 = pneg %p188
      $region38: #{value_net_forward.3} parent=11 // pred_check_branch
        %270 = sbr.rel (%p268) target = $region40
      $region39: #{value_net_forward.3} parent=11 // pred_region
        _
      $region40: #{value_net_forward.3} parent=11 // pred_fallthru
        _
      // Predicated region
      $region41: #{value_net_forward.3} parent=11 // pred_check
        %p271 = pneg %p209
      $region42: #{value_net_forward.3} parent=11 // pred_check_branch
        %273 = sbr.rel (%p271) target = $region44
      $region43: #{value_net_forward.3} parent=11 // pred_region
        _
      $region44: #{value_net_forward.3} parent=11 // pred_fallthru
        _
    $region12: #{value_net_forward.3} parent=5 // pred_fallthru
      _
    %p274 = scmp.lt.s32.totalorder %s15, 2
    // Predicated region
    $region45: #{value_net_forward.3} parent=5 // pred_check
      %p275 = pneg %p274
    $region46: #{value_net_forward.3} parent=5 // pred_check_branch
      %277 = sbr.rel (%p275) target = $region48
    $region47: #{value_net_forward.3} parent=5 // pred_region
      // Predicated region
      $region49: #{value_net_forward.3} parent=47 // pred_check
        %p278 = pneg %p35
      $region50: #{value_net_forward.3} parent=47 // pred_check_branch
        %280 = sbr.rel (%p278) target = $region52
      $region51: #{value_net_forward.3} parent=47 // pred_region
        %p281 = scmp.lt.s32.totalorder %s15, 1
        %s282 = scalar_select %p281, %s15, 1
        %s283 = smul.addr %s282, 152
        %s284 = smul.addr %s283, 4
        %s285 = scalar_lea.vmem %s0, %s284
      $region52: #{value_net_forward.3} parent=47 // pred_fallthru
        _
    $region48: #{value_net_forward.3} parent=5 // pred_fallthru
      _
    %p286 = scmp.le.s32.totalorder 1, %s15
    %p287 = scmp.lt.s32.totalorder %s15, 3
    %p288 = pnand %p286, %p287
    %p289 = pneg %p288
    // Predicated region
    $region53: #{value_net_forward.3} parent=5 // pred_check
      _
    $region54: #{value_net_forward.3} parent=5 // pred_check_branch
      %291 = sbr.rel (%p288) target = $region56
    $region55: #{value_net_forward.3} parent=5 // pred_region
      %s292 = ssub.s32 %s15, 1
      %p293 = scmp.lt.s32.totalorder %s20, 1
      %s294 = scalar_select %p293, %s20, 1
      %s295 = smul.addr %s294, 152
      %s296 = smul.addr %s295, 4
      %s297 = scalar_lea.vmem %s0, %s296
      %p298 = pneg %p41
      %p299 = pneg %p38
      %p300 = pneg %p62
      %p301 = pneg %p59
      %p302 = pneg %p83
      %p303 = pneg %p80
      %p304 = pneg %p104
      %p305 = pneg %p101
      %p306 = pneg %p125
      %p307 = pneg %p122
      %p308 = pneg %p146
      %p309 = pneg %p143
      %p310 = pneg %p167
      %p311 = pneg %p164
      %p312 = pneg %p188
      %p313 = pneg %p185
      %p314 = pneg %p209
      %p315 = pneg %p206
      %p316 = pneg %p235
      %p317 = pneg %p232
      %p318 = scmp.lt.s32.totalorder %s20, 1
      %s319 = scalar_select %p318, %s20, 1
      %s320 = scalar_lea.vmem %s9, %s319
      %p321 = scmp.lt.s32.totalorder %s20, 1
      %s322 = scalar_select %p321, %s20, 1
      %s323 = smul.addr %s322, 152
      %s324 = smul.addr %s323, 4
      %s325 = scalar_lea.vmem %s0, %s324
      %p326 = scmp.lt.s32.totalorder %s20, 1
      %s327 = scalar_select %p326, %s20, 1
      %s328 = scalar_lea.vmem %s9, %s327
      %v330 = vld [vmem:[%s1] sm:$0xff]
      %v331 = vld [vmem:[%s1 + $0x8] sm:$0xff]
      %v332 = vld [vmem:[%s325] sm:$0xff]
      %v333 = vld [vmem:[%s325 + $0x8] sm:$0xff]
      %v334 = vld [vmem:[%s325 + $0x10] sm:$0xff]
      %v335 = vld [vmem:[%s325 + $0x18] sm:$0xff]
      %v336 = vld [vmem:[%s325 + $0x20] sm:$0xff]
      %v337 = vld [vmem:[%s325 + $0x28] sm:$0xff]
      %v338 = vld [vmem:[%s325 + $0x30] sm:$0xff]
      %v339 = vld [vmem:[%s325 + $0x38] sm:$0xff]
      %v340 = vld [vmem:[%s325 + $0x40] sm:$0xff]
      %v341 = vld [vmem:[%s325 + $0x48] sm:$0xff]
      %v342 = vld [vmem:[%s325 + $0x50] sm:$0xff]
      %v343 = vld [vmem:[%s325 + $0x58] sm:$0xff]
      %v344 = vld [vmem:[%s325 + $0x60] sm:$0xff]
      %v345 = vld [vmem:[%s325 + $0x68] sm:$0xff]
      %v346 = vld [vmem:[%s325 + $0x70] sm:$0xff]
      %v347 = vld [vmem:[%s325 + $0x78] sm:$0xff]
      %v348 = vld [vmem:[%s325 + $0x80] sm:$0xff]
      %v349 = vld [vmem:[%s325 + $0x88] sm:$0xff]
      %v350 = vld [vmem:[%s325 + $0x90] sm:$0xff]
      %v351 = vld [vmem:[%s325 + $0x98] sm:$0xff]
      %v352 = vld [vmem:[%s325 + $0xa0] sm:$0xff]
      %v353 = vld [vmem:[%s325 + $0xa8] sm:$0xff]
      %v354 = vld [vmem:[%s325 + $0xb0] sm:$0xff]
      %v355 = vld [vmem:[%s325 + $0xb8] sm:$0xff]
      %v356 = vld [vmem:[%s325 + $0xc0] sm:$0xff]
      %v357 = vld [vmem:[%s325 + $0xc8] sm:$0xff]
      %v358 = vld [vmem:[%s325 + $0xd0] sm:$0xff]
      %v359 = vld [vmem:[%s325 + $0xd8] sm:$0xff]
      %v360 = vld [vmem:[%s325 + $0xe0] sm:$0xff]
      %v361 = vld [vmem:[%s325 + $0xe8] sm:$0xff]
      %v362 = vld [vmem:[%s325 + $0xf0] sm:$0xff]
      %v363 = vld [vmem:[%s325 + $0xf8] sm:$0xff]
      %v364 = vld [vmem:[%s325 + $0x100] sm:$0xff]
      %v365 = vld [vmem:[%s325 + $0x108] sm:$0xff]
      %v366 = vld [vmem:[%s325 + $0x110] sm:$0xff]
      %v367 = vld [vmem:[%s325 + $0x118] sm:$0xff]
      %v368 = vld [vmem:[%s325 + $0x120] sm:$0xff]
      %v369 = vld [vmem:[%s325 + $0x128] sm:$0xff]
      %v370 = vld [vmem:[%s325 + $0x130] sm:$0xff]
      %v371 = vld [vmem:[%s325 + $0x138] sm:$0xff]
      %v372 = vld [vmem:[%s325 + $0x140] sm:$0xff]
      %v373 = vld [vmem:[%s325 + $0x148] sm:$0xff]
      %v374 = vld [vmem:[%s325 + $0x150] sm:$0xff]
      %v375 = vld [vmem:[%s325 + $0x158] sm:$0xff]
      %v376 = vld [vmem:[%s325 + $0x160] sm:$0xff]
      %v377 = vld [vmem:[%s325 + $0x168] sm:$0xff]
      %v378 = vld [vmem:[%s325 + $0x170] sm:$0xff]
      %v379 = vld [vmem:[%s325 + $0x178] sm:$0xff]
      %v380 = vld [vmem:[%s325 + $0x180] sm:$0xff]
      %v381 = vld [vmem:[%s325 + $0x188] sm:$0xff]
      %v382 = vld [vmem:[%s325 + $0x190] sm:$0xff]
      %v383 = vld [vmem:[%s325 + $0x198] sm:$0xff]
      %v384 = vld [vmem:[%s325 + $0x1a0] sm:$0xff]
      %v385 = vld [vmem:[%s325 + $0x1a8] sm:$0xff]
      %v386 = vld [vmem:[%s325 + $0x1b0] sm:$0xff]
      %v387 = vld [vmem:[%s325 + $0x1b8] sm:$0xff]
      %v388 = vld [vmem:[%s325 + $0x1c0] sm:$0xff]
      %v389 = vld [vmem:[%s325 + $0x1c8] sm:$0xff]
      %v390 = vld [vmem:[%s325 + $0x1d0] sm:$0xff]
      %v391 = vld [vmem:[%s325 + $0x1d8] sm:$0xff]
      %v392 = vld [vmem:[%s325 + $0x1e0] sm:$0xff]
      %v393 = vld [vmem:[%s325 + $0x1e8] sm:$0xff]
      %v394 = vld [vmem:[%s325 + $0x1f0] sm:$0xff]
      %v395 = vld [vmem:[%s325 + $0x1f8] sm:$0xff]
      %v396 = vld [vmem:[%s325 + $0x200] sm:$0xff]
      %v397 = vld [vmem:[%s325 + $0x208] sm:$0xff]
      %v398 = vld [vmem:[%s325 + $0x210] sm:$0xff]
      %v399 = vld [vmem:[%s325 + $0x218] sm:$0xff]
      %v400 = vld [vmem:[%s325 + $0x220] sm:$0xff]
      %v401 = vld [vmem:[%s325 + $0x228] sm:$0xff]
      %v402 = vld [vmem:[%s325 + $0x230] sm:$0xff]
      %v403 = vld [vmem:[%s325 + $0x238] sm:$0xff]
      %v404 = vld [vmem:[%s325 + $0x240] sm:$0x77]
      %v405 = vld [vmem:[%s325 + $0x248] sm:$0x77]
      %v406 = vld [vmem:[%s325 + $0x250] sm:$0x77]
      %v407 = vld [vmem:[%s325 + $0x258] sm:$0x77]
      %v410 = vunpack.c.l.b16 %v330
      %v411 = vunpack.c.h.b16 %v330
      %v412 = vunpack.c.l.b16 %v331
      %v413 = vunpack.c.h.b16 %v331
      %v414 = vpack.c.b16 %v412, %v410
      %v415 = vpack.c.b16 %v413, %v411
      %v493 = vunpack.c.l.b16 %v332
      %v494 = vunpack.c.h.b16 %v332
      %v495 = vunpack.c.l.b16 %v333
      %v496 = vunpack.c.h.b16 %v333
      %v497 = vunpack.c.l.b16 %v334
      %v498 = vunpack.c.h.b16 %v334
      %v499 = vunpack.c.l.b16 %v335
      %v500 = vunpack.c.h.b16 %v335
      %v501 = vunpack.c.l.b16 %v336
      %v502 = vunpack.c.h.b16 %v336
      %v503 = vunpack.c.l.b16 %v337
      %v504 = vunpack.c.h.b16 %v337
      %v505 = vunpack.c.l.b16 %v338
      %v506 = vunpack.c.h.b16 %v338
      %v507 = vunpack.c.l.b16 %v339
      %v508 = vunpack.c.h.b16 %v339
      %v509 = vunpack.c.l.b16 %v340
      %v510 = vunpack.c.h.b16 %v340
      %v511 = vunpack.c.l.b16 %v341
      %v512 = vunpack.c.h.b16 %v341
      %v513 = vunpack.c.l.b16 %v342
      %v514 = vunpack.c.h.b16 %v342
      %v515 = vunpack.c.l.b16 %v343
      %v516 = vunpack.c.h.b16 %v343
      %v517 = vunpack.c.l.b16 %v344
      %v518 = vunpack.c.h.b16 %v344
      %v519 = vunpack.c.l.b16 %v345
      %v520 = vunpack.c.h.b16 %v345
      %v521 = vunpack.c.l.b16 %v346
      %v522 = vunpack.c.h.b16 %v346
      %v523 = vunpack.c.l.b16 %v347
      %v524 = vunpack.c.h.b16 %v347
      %v525 = vunpack.c.l.b16 %v348
      %v526 = vunpack.c.h.b16 %v348
      %v527 = vunpack.c.l.b16 %v349
      %v528 = vunpack.c.h.b16 %v349
      %v529 = vunpack.c.l.b16 %v350
      %v530 = vunpack.c.h.b16 %v350
      %v531 = vunpack.c.l.b16 %v351
      %v532 = vunpack.c.h.b16 %v351
      %v533 = vunpack.c.l.b16 %v352
      %v534 = vunpack.c.h.b16 %v352
      %v535 = vunpack.c.l.b16 %v353
      %v536 = vunpack.c.h.b16 %v353
      %v537 = vunpack.c.l.b16 %v354
      %v538 = vunpack.c.h.b16 %v354
      %v539 = vunpack.c.l.b16 %v355
      %v540 = vunpack.c.h.b16 %v355
      %v541 = vunpack.c.l.b16 %v356
      %v542 = vunpack.c.h.b16 %v356
      %v543 = vunpack.c.l.b16 %v357
      %v544 = vunpack.c.h.b16 %v357
      %v545 = vunpack.c.l.b16 %v358
      %v546 = vunpack.c.h.b16 %v358
      %v547 = vunpack.c.l.b16 %v359
      %v548 = vunpack.c.h.b16 %v359
      %v549 = vunpack.c.l.b16 %v360
      %v550 = vunpack.c.h.b16 %v360
      %v551 = vunpack.c.l.b16 %v361
      %v552 = vunpack.c.h.b16 %v361
      %v553 = vunpack.c.l.b16 %v362
      %v554 = vunpack.c.h.b16 %v362
      %v555 = vunpack.c.l.b16 %v363
      %v556 = vunpack.c.h.b16 %v363
      %v557 = vunpack.c.l.b16 %v364
      %v558 = vunpack.c.h.b16 %v364
      %v559 = vunpack.c.l.b16 %v365
      %v560 = vunpack.c.h.b16 %v365
      %v561 = vunpack.c.l.b16 %v366
      %v562 = vunpack.c.h.b16 %v366
      %v563 = vunpack.c.l.b16 %v367
      %v564 = vunpack.c.h.b16 %v367
      %v565 = vunpack.c.l.b16 %v368
      %v566 = vunpack.c.h.b16 %v368
      %v567 = vunpack.c.l.b16 %v369
      %v568 = vunpack.c.h.b16 %v369
      %v569 = vunpack.c.l.b16 %v370
      %v570 = vunpack.c.h.b16 %v370
      %v571 = vunpack.c.l.b16 %v371
      %v572 = vunpack.c.h.b16 %v371
      %v573 = vunpack.c.l.b16 %v372
      %v574 = vunpack.c.h.b16 %v372
      %v575 = vunpack.c.l.b16 %v373
      %v576 = vunpack.c.h.b16 %v373
      %v577 = vunpack.c.l.b16 %v374
      %v578 = vunpack.c.h.b16 %v374
      %v579 = vunpack.c.l.b16 %v375
      %v580 = vunpack.c.h.b16 %v375
      %v581 = vunpack.c.l.b16 %v376
      %v582 = vunpack.c.h.b16 %v376
      %v583 = vunpack.c.l.b16 %v377
      %v584 = vunpack.c.h.b16 %v377
      %v585 = vunpack.c.l.b16 %v378
      %v586 = vunpack.c.h.b16 %v378
      %v587 = vunpack.c.l.b16 %v379
      %v588 = vunpack.c.h.b16 %v379
      %v589 = vunpack.c.l.b16 %v380
      %v590 = vunpack.c.h.b16 %v380
      %v591 = vunpack.c.l.b16 %v381
      %v592 = vunpack.c.h.b16 %v381
      %v593 = vunpack.c.l.b16 %v382
      %v594 = vunpack.c.h.b16 %v382
      %v595 = vunpack.c.l.b16 %v383
      %v596 = vunpack.c.h.b16 %v383
      %v597 = vunpack.c.l.b16 %v384
      %v598 = vunpack.c.h.b16 %v384
      %v599 = vunpack.c.l.b16 %v385
      %v600 = vunpack.c.h.b16 %v385
      %v601 = vunpack.c.l.b16 %v386
      %v602 = vunpack.c.h.b16 %v386
      %v603 = vunpack.c.l.b16 %v387
      %v604 = vunpack.c.h.b16 %v387
      %v605 = vunpack.c.l.b16 %v388
      %v606 = vunpack.c.h.b16 %v388
      %v607 = vunpack.c.l.b16 %v389
      %v608 = vunpack.c.h.b16 %v389
      %v609 = vunpack.c.l.b16 %v390
      %v610 = vunpack.c.h.b16 %v390
      %v611 = vunpack.c.l.b16 %v391
      %v612 = vunpack.c.h.b16 %v391
      %v613 = vunpack.c.l.b16 %v392
      %v614 = vunpack.c.h.b16 %v392
      %v615 = vunpack.c.l.b16 %v393
      %v616 = vunpack.c.h.b16 %v393
      %v617 = vunpack.c.l.b16 %v394
      %v618 = vunpack.c.h.b16 %v394
      %v619 = vunpack.c.l.b16 %v395
      %v620 = vunpack.c.h.b16 %v395
      %v621 = vunpack.c.l.b16 %v396
      %v622 = vunpack.c.h.b16 %v396
      %v623 = vunpack.c.l.b16 %v397
      %v624 = vunpack.c.h.b16 %v397
      %v625 = vunpack.c.l.b16 %v398
      %v626 = vunpack.c.h.b16 %v398
      %v627 = vunpack.c.l.b16 %v399
      %v628 = vunpack.c.h.b16 %v399
      %v629 = vunpack.c.l.b16 %v400
      %v630 = vunpack.c.h.b16 %v400
      %v631 = vunpack.c.l.b16 %v401
      %v632 = vunpack.c.h.b16 %v401
      %v633 = vunpack.c.l.b16 %v402
      %v634 = vunpack.c.h.b16 %v402
      %v635 = vunpack.c.l.b16 %v403
      %v636 = vunpack.c.h.b16 %v403
      %v637 = vunpack.c.l.b16 %v404
      %v638 = vunpack.c.h.b16 %v404
      %v639 = vunpack.c.l.b16 %v405
      %v640 = vunpack.c.h.b16 %v405
      %v641 = vunpack.c.l.b16 %v406
      %v642 = vunpack.c.h.b16 %v406
      %v643 = vunpack.c.l.b16 %v407
      %v644 = vunpack.c.h.b16 %v407
      %v645 = vpack.c.b16 %v501, %v493
      %v646 = vpack.c.b16 %v502, %v494
      %v647 = vpack.c.b16 %v503, %v495
      %v648 = vpack.c.b16 %v504, %v496
      %v649 = vpack.c.b16 %v505, %v497
      %v650 = vpack.c.b16 %v506, %v498
      %v651 = vpack.c.b16 %v507, %v499
      %v652 = vpack.c.b16 %v508, %v500
      %v653 = vpack.c.b16 %v517, %v509
      %v654 = vpack.c.b16 %v518, %v510
      %v655 = vpack.c.b16 %v519, %v511
      %v656 = vpack.c.b16 %v520, %v512
      %v657 = vpack.c.b16 %v521, %v513
      %v658 = vpack.c.b16 %v522, %v514
      %v659 = vpack.c.b16 %v523, %v515
      %v660 = vpack.c.b16 %v524, %v516
      %v661 = vpack.c.b16 %v533, %v525
      %v662 = vpack.c.b16 %v534, %v526
      %v663 = vpack.c.b16 %v535, %v527
      %v664 = vpack.c.b16 %v536, %v528
      %v665 = vpack.c.b16 %v537, %v529
      %v666 = vpack.c.b16 %v538, %v530
      %v667 = vpack.c.b16 %v539, %v531
      %v668 = vpack.c.b16 %v540, %v532
      %v669 = vpack.c.b16 %v549, %v541
      %v670 = vpack.c.b16 %v550, %v542
      %v671 = vpack.c.b16 %v551, %v543
      %v672 = vpack.c.b16 %v552, %v544
      %v673 = vpack.c.b16 %v553, %v545
      %v674 = vpack.c.b16 %v554, %v546
      %v675 = vpack.c.b16 %v555, %v547
      %v676 = vpack.c.b16 %v556, %v548
      %v677 = vpack.c.b16 %v565, %v557
      %v678 = vpack.c.b16 %v566, %v558
      %v679 = vpack.c.b16 %v567, %v559
      %v680 = vpack.c.b16 %v568, %v560
      %v681 = vpack.c.b16 %v569, %v561
      %v682 = vpack.c.b16 %v570, %v562
      %v683 = vpack.c.b16 %v571, %v563
      %v684 = vpack.c.b16 %v572, %v564
      %v685 = vpack.c.b16 %v581, %v573
      %v686 = vpack.c.b16 %v582, %v574
      %v687 = vpack.c.b16 %v583, %v575
      %v688 = vpack.c.b16 %v584, %v576
      %v689 = vpack.c.b16 %v585, %v577
      %v690 = vpack.c.b16 %v586, %v578
      %v691 = vpack.c.b16 %v587, %v579
      %v692 = vpack.c.b16 %v588, %v580
      %v693 = vpack.c.b16 %v597, %v589
      %v694 = vpack.c.b16 %v598, %v590
      %v695 = vpack.c.b16 %v599, %v591
      %v696 = vpack.c.b16 %v600, %v592
      %v697 = vpack.c.b16 %v601, %v593
      %v698 = vpack.c.b16 %v602, %v594
      %v699 = vpack.c.b16 %v603, %v595
      %v700 = vpack.c.b16 %v604, %v596
      %v701 = vpack.c.b16 %v613, %v605
      %v702 = vpack.c.b16 %v614, %v606
      %v703 = vpack.c.b16 %v615, %v607
      %v704 = vpack.c.b16 %v616, %v608
      %v705 = vpack.c.b16 %v617, %v609
      %v706 = vpack.c.b16 %v618, %v610
      %v707 = vpack.c.b16 %v619, %v611
      %v708 = vpack.c.b16 %v620, %v612
      %v709 = vpack.c.b16 %v629, %v621
      %v710 = vpack.c.b16 %v630, %v622
      %v711 = vpack.c.b16 %v631, %v623
      %v712 = vpack.c.b16 %v632, %v624
      %v713 = vpack.c.b16 %v633, %v625
      %v714 = vpack.c.b16 %v634, %v626
      %v715 = vpack.c.b16 %v635, %v627
      %v716 = vpack.c.b16 %v636, %v628
      %v717 = vpack.c.b16 %v637, %v637
      %v718 = vpack.c.b16 %v638, %v638
      %v719 = vpack.c.b16 %v639, %v639
      %v720 = vpack.c.b16 %v640, %v640
      %v721 = vpack.c.b16 %v641, %v641
      %v722 = vpack.c.b16 %v642, %v642
      %v723 = vpack.c.b16 %v643, %v643
      %v724 = vpack.c.b16 %v644, %v644
      %vm797 = vcmask 179200
      %v799 = vsel %vm797, %v415, 0
      %vm801 = vcmask 1042432
      %v803 = vsel %vm801, %v717, 0
      %v806 = vsel %vm801, %v718, 0
      %v809 = vsel %vm801, %v719, 0
      %v812 = vsel %vm801, %v720, 0
      %v815 = vsel %vm801, %v721, 0
      %v818 = vsel %vm801, %v722, 0
      %v821 = vsel %vm801, %v723, 0
      %v824 = vsel %vm801, %v724, 0
      %826 = vmatpush.bf16.msra.mxu0 %v701
      %827 = vmatpush.bf16.msra.mxu0 %v693
      %828 = vmatpush.bf16.msra.mxu0 %v685
      %829 = vmatpush.bf16.msra.mxu0 %v677
      %830 = vmatpush.bf16.msra.mxu0 %v669
      %831 = vmatpush.bf16.msra.mxu0 %v661
      %832 = vmatpush.bf16.msra.mxu0 %v653
      %833 = vmatpush.bf16.msra.mxu0 %v645
      %834 = vmatmul.bf16.gmra.mxu0 %v414
      %v835 = vpop.f32.mrf.mxu0
      %v836 = vadd.f32 0.0, %v835
      %v837 = vpop.f32.mrf.mxu0
      %v838 = vadd.f32 0.0, %v837
      %839 = vdwg.mxu0
      %840 = vmatpush.bf16.msra.mxu0 0
      %841 = vmatpush.bf16.msra.mxu0 0
      %842 = vmatpush.bf16.msra.mxu0 0
      %843 = vmatpush.bf16.msra.mxu0 0
      %844 = vmatpush.bf16.msra.mxu0 0
      %845 = vmatpush.bf16.msra.mxu0 0
      %846 = vmatpush.bf16.msra.mxu0 %v803
      %847 = vmatpush.bf16.msra.mxu0 %v709
      %848 = vmatmul.bf16.gmra.mxu0 %v799
      %v849 = vpop.f32.mrf.mxu0
      %v850 = vadd.f32 %v836, %v849
      %v851 = vpop.f32.mrf.mxu0
      %v852 = vadd.f32 %v838, %v851
      %853 = vdwg.mxu0
      %854 = vmatpush.bf16.msra.mxu0 %v702
      %855 = vmatpush.bf16.msra.mxu0 %v694
      %856 = vmatpush.bf16.msra.mxu0 %v686
      %857 = vmatpush.bf16.msra.mxu0 %v678
      %858 = vmatpush.bf16.msra.mxu0 %v670
      %859 = vmatpush.bf16.msra.mxu0 %v662
      %860 = vmatpush.bf16.msra.mxu0 %v654
      %861 = vmatpush.bf16.msra.mxu0 %v646
      %862 = vmatmul.bf16.gmra.mxu0 %v414
      %v863 = vpop.f32.mrf.mxu0
      %v864 = vadd.f32 0.0, %v863
      %v865 = vpop.f32.mrf.mxu0
      %v866 = vadd.f32 0.0, %v865
      %867 = vdwg.mxu0
      %868 = vmatpush.bf16.msra.mxu0 0
      %869 = vmatpush.bf16.msra.mxu0 0
      %870 = vmatpush.bf16.msra.mxu0 0
      %871 = vmatpush.bf16.msra.mxu0 0
      %872 = vmatpush.bf16.msra.mxu0 0
      %873 = vmatpush.bf16.msra.mxu0 0
      %874 = vmatpush.bf16.msra.mxu0 %v806
      %875 = vmatpush.bf16.msra.mxu0 %v710
      %876 = vmatmul.bf16.gmra.mxu0 %v799
      %v877 = vpop.f32.mrf.mxu0
      %v878 = vadd.f32 %v864, %v877
      %v879 = vpop.f32.mrf.mxu0
      %v880 = vadd.f32 %v866, %v879
      %881 = vdwg.mxu0
      %882 = vmatpush.bf16.msra.mxu0 %v703
      %883 = vmatpush.bf16.msra.mxu0 %v695
      %884 = vmatpush.bf16.msra.mxu0 %v687
      %885 = vmatpush.bf16.msra.mxu0 %v679
      %886 = vmatpush.bf16.msra.mxu0 %v671
      %887 = vmatpush.bf16.msra.mxu0 %v663
      %888 = vmatpush.bf16.msra.mxu0 %v655
      %889 = vmatpush.bf16.msra.mxu0 %v647
      %890 = vmatmul.bf16.gmra.mxu0 %v414
      %v891 = vpop.f32.mrf.mxu0
      %v892 = vadd.f32 0.0, %v891
      %v893 = vpop.f32.mrf.mxu0
      %v894 = vadd.f32 0.0, %v893
      %895 = vdwg.mxu0
      %896 = vmatpush.bf16.msra.mxu0 0
      %897 = vmatpush.bf16.msra.mxu0 0
      %898 = vmatpush.bf16.msra.mxu0 0
      %899 = vmatpush.bf16.msra.mxu0 0
      %900 = vmatpush.bf16.msra.mxu0 0
      %901 = vmatpush.bf16.msra.mxu0 0
      %902 = vmatpush.bf16.msra.mxu0 %v809
      %903 = vmatpush.bf16.msra.mxu0 %v711
      %904 = vmatmul.bf16.gmra.mxu0 %v799
      %v905 = vpop.f32.mrf.mxu0
      %v906 = vadd.f32 %v892, %v905
      %v907 = vpop.f32.mrf.mxu0
      %v908 = vadd.f32 %v894, %v907
      %909 = vdwg.mxu0
      %910 = vmatpush.bf16.msra.mxu0 %v704
      %911 = vmatpush.bf16.msra.mxu0 %v696
      %912 = vmatpush.bf16.msra.mxu0 %v688
      %913 = vmatpush.bf16.msra.mxu0 %v680
      %914 = vmatpush.bf16.msra.mxu0 %v672
      %915 = vmatpush.bf16.msra.mxu0 %v664
      %916 = vmatpush.bf16.msra.mxu0 %v656
      %917 = vmatpush.bf16.msra.mxu0 %v648
      %918 = vmatmul.bf16.gmra.mxu0 %v414
      %v919 = vpop.f32.mrf.mxu0
      %v920 = vadd.f32 0.0, %v919
      %v921 = vpop.f32.mrf.mxu0
      %v922 = vadd.f32 0.0, %v921
      %923 = vdwg.mxu0
      %924 = vmatpush.bf16.msra.mxu0 0
      %925 = vmatpush.bf16.msra.mxu0 0
      %926 = vmatpush.bf16.msra.mxu0 0
      %927 = vmatpush.bf16.msra.mxu0 0
      %928 = vmatpush.bf16.msra.mxu0 0
      %929 = vmatpush.bf16.msra.mxu0 0
      %930 = vmatpush.bf16.msra.mxu0 %v812
      %931 = vmatpush.bf16.msra.mxu0 %v712
      %932 = vmatmul.bf16.gmra.mxu0 %v799
      %v933 = vpop.f32.mrf.mxu0
      %v934 = vadd.f32 %v920, %v933
      %v935 = vpop.f32.mrf.mxu0
      %v936 = vadd.f32 %v922, %v935
      %937 = vdwg.mxu0
      %938 = vmatpush.bf16.msra.mxu0 %v705
      %939 = vmatpush.bf16.msra.mxu0 %v697
      %940 = vmatpush.bf16.msra.mxu0 %v689
      %941 = vmatpush.bf16.msra.mxu0 %v681
      %942 = vmatpush.bf16.msra.mxu0 %v673
      %943 = vmatpush.bf16.msra.mxu0 %v665
      %944 = vmatpush.bf16.msra.mxu0 %v657
      %945 = vmatpush.bf16.msra.mxu0 %v649
      %946 = vmatmul.bf16.gmra.mxu0 %v414
      %v947 = vpop.f32.mrf.mxu0
      %v948 = vadd.f32 0.0, %v947
      %v949 = vpop.f32.mrf.mxu0
      %v950 = vadd.f32 0.0, %v949
      %951 = vdwg.mxu0
      %952 = vmatpush.bf16.msra.mxu0 0
      %953 = vmatpush.bf16.msra.mxu0 0
      %954 = vmatpush.bf16.msra.mxu0 0
      %955 = vmatpush.bf16.msra.mxu0 0
      %956 = vmatpush.bf16.msra.mxu0 0
      %957 = vmatpush.bf16.msra.mxu0 0
      %958 = vmatpush.bf16.msra.mxu0 %v815
      %959 = vmatpush.bf16.msra.mxu0 %v713
      %960 = vmatmul.bf16.gmra.mxu0 %v799
      %v961 = vpop.f32.mrf.mxu0
      %v962 = vadd.f32 %v948, %v961
      %v963 = vpop.f32.mrf.mxu0
      %v964 = vadd.f32 %v950, %v963
      %965 = vdwg.mxu0
      %966 = vmatpush.bf16.msra.mxu0 %v706
      %967 = vmatpush.bf16.msra.mxu0 %v698
      %968 = vmatpush.bf16.msra.mxu0 %v690
      %969 = vmatpush.bf16.msra.mxu0 %v682
      %970 = vmatpush.bf16.msra.mxu0 %v674
      %971 = vmatpush.bf16.msra.mxu0 %v666
      %972 = vmatpush.bf16.msra.mxu0 %v658
      %973 = vmatpush.bf16.msra.mxu0 %v650
      %974 = vmatmul.bf16.gmra.mxu0 %v414
      %v975 = vpop.f32.mrf.mxu0
      %v976 = vadd.f32 0.0, %v975
      %v977 = vpop.f32.mrf.mxu0
      %v978 = vadd.f32 0.0, %v977
      %979 = vdwg.mxu0
      %980 = vmatpush.bf16.msra.mxu0 0
      %981 = vmatpush.bf16.msra.mxu0 0
      %982 = vmatpush.bf16.msra.mxu0 0
      %983 = vmatpush.bf16.msra.mxu0 0
      %984 = vmatpush.bf16.msra.mxu0 0
      %985 = vmatpush.bf16.msra.mxu0 0
      %986 = vmatpush.bf16.msra.mxu0 %v818
      %987 = vmatpush.bf16.msra.mxu0 %v714
      %988 = vmatmul.bf16.gmra.mxu0 %v799
      %v989 = vpop.f32.mrf.mxu0
      %v990 = vadd.f32 %v976, %v989
      %v991 = vpop.f32.mrf.mxu0
      %v992 = vadd.f32 %v978, %v991
      %993 = vdwg.mxu0
      %994 = vmatpush.bf16.msra.mxu0 %v707
      %995 = vmatpush.bf16.msra.mxu0 %v699
      %996 = vmatpush.bf16.msra.mxu0 %v691
      %997 = vmatpush.bf16.msra.mxu0 %v683
      %998 = vmatpush.bf16.msra.mxu0 %v675
      %999 = vmatpush.bf16.msra.mxu0 %v667
      %1000 = vmatpush.bf16.msra.mxu0 %v659
      %1001 = vmatpush.bf16.msra.mxu0 %v651
      %1002 = vmatmul.bf16.gmra.mxu0 %v414
      %v1003 = vpop.f32.mrf.mxu0
      %v1004 = vadd.f32 0.0, %v1003
      %v1005 = vpop.f32.mrf.mxu0
      %v1006 = vadd.f32 0.0, %v1005
      %1007 = vdwg.mxu0
      %1008 = vmatpush.bf16.msra.mxu0 0
      %1009 = vmatpush.bf16.msra.mxu0 0
      %1010 = vmatpush.bf16.msra.mxu0 0
      %1011 = vmatpush.bf16.msra.mxu0 0
      %1012 = vmatpush.bf16.msra.mxu0 0
      %1013 = vmatpush.bf16.msra.mxu0 0
      %1014 = vmatpush.bf16.msra.mxu0 %v821
      %1015 = vmatpush.bf16.msra.mxu0 %v715
      %1016 = vmatmul.bf16.gmra.mxu0 %v799
      %v1017 = vpop.f32.mrf.mxu0
      %v1018 = vadd.f32 %v1004, %v1017
      %v1019 = vpop.f32.mrf.mxu0
      %v1020 = vadd.f32 %v1006, %v1019
      %1021 = vdwg.mxu0
      %1022 = vmatpush.bf16.msra.mxu0 %v708
      %1023 = vmatpush.bf16.msra.mxu0 %v700
      %1024 = vmatpush.bf16.msra.mxu0 %v692
      %1025 = vmatpush.bf16.msra.mxu0 %v684
      %1026 = vmatpush.bf16.msra.mxu0 %v676
      %1027 = vmatpush.bf16.msra.mxu0 %v668
      %1028 = vmatpush.bf16.msra.mxu0 %v660
      %1029 = vmatpush.bf16.msra.mxu0 %v652
      %1030 = vmatmul.bf16.gmra.mxu0 %v414
      %v1031 = vpop.f32.mrf.mxu0
      %v1032 = vadd.f32 0.0, %v1031
      %v1033 = vpop.f32.mrf.mxu0
      %v1034 = vadd.f32 0.0, %v1033
      %1035 = vdwg.mxu0
      %1036 = vmatpush.bf16.msra.mxu0 0
      %1037 = vmatpush.bf16.msra.mxu0 0
      %1038 = vmatpush.bf16.msra.mxu0 0
      %1039 = vmatpush.bf16.msra.mxu0 0
      %1040 = vmatpush.bf16.msra.mxu0 0
      %1041 = vmatpush.bf16.msra.mxu0 0
      %1042 = vmatpush.bf16.msra.mxu0 %v824
      %1043 = vmatpush.bf16.msra.mxu0 %v716
      %1044 = vmatmul.bf16.gmra.mxu0 %v799
      %v1045 = vpop.f32.mrf.mxu0
      %v1046 = vadd.f32 %v1032, %v1045
      %v1047 = vpop.f32.mrf.mxu0
      %v1048 = vadd.f32 %v1034, %v1047
      %1049 = vdwg.mxu0
      %v1050 = vmax.f32 %v850, %v906
      %v1051 = vmax.f32 %v878, %v934
      %v1052 = vmax.f32 %v852, %v908
      %v1053 = vmax.f32 %v880, %v936
      %v1054 = vmax.f32 %v962, %v1018
      %v1055 = vmax.f32 %v990, %v1046
      %v1056 = vmax.f32 %v964, %v1020
      %v1057 = vmax.f32 %v992, %v1048
      %v1058 = vmax.f32 %v1050, %v1054
      %v1059 = vmax.f32 %v1051, %v1055
      %v1060 = vmax.f32 %v1052, %v1056
      %v1061 = vmax.f32 %v1053, %v1057
      %v1062 = vld [vmem:[%s2] sm:$0xff]
      %v1063 = vld [vmem:[%s2 + $0x8] sm:$0xff]
      %v1064 = vld [vmem:[%s2 + $0x10] sm:$0xff]
      %v1065 = vld [vmem:[%s2 + $0x18] sm:$0xff]
      %v1066 = vadd.f32 %v1058, %v1062
      %v1067 = vadd.f32 %v1059, %v1063
      %v1068 = vadd.f32 %v1060, %v1064
      %v1069 = vadd.f32 %v1061, %v1065
      %v1070 = vmax.f32 %v1066, 0.0
      %v1071 = vmax.f32 %v1067, 0.0
      %v1072 = vmax.f32 %v1068, 0.0
      %v1073 = vmax.f32 %v1069, 0.0
      %v1074 = vpack.c.bf16 %v1072, %v1070
      %v1075 = vpack.c.bf16 %v1073, %v1071
      %v1076 = vld [vmem:[%s3] sm:$0xff]
      %v1077 = vld [vmem:[%s3 + $0x8] sm:$0xff]
      %v1078 = vld [vmem:[%s3 + $0x10] sm:$0xff]
      %v1079 = vld [vmem:[%s3 + $0x18] sm:$0xff]
      %v1080 = vld [vmem:[%s3 + $0x20] sm:$0xff]
      %v1081 = vld [vmem:[%s3 + $0x28] sm:$0xff]
      %v1082 = vld [vmem:[%s3 + $0x30] sm:$0xff]
      %v1083 = vld [vmem:[%s3 + $0x38] sm:$0xff]
      %v1084 = vld [vmem:[%s3 + $0x40] sm:$0xff]
      %v1085 = vld [vmem:[%s3 + $0x48] sm:$0xff]
      %v1086 = vld [vmem:[%s3 + $0x50] sm:$0xff]
      %v1087 = vld [vmem:[%s3 + $0x58] sm:$0xff]
      %v1088 = vld [vmem:[%s3 + $0x60] sm:$0xff]
      %v1089 = vld [vmem:[%s3 + $0x68] sm:$0xff]
      %v1090 = vld [vmem:[%s3 + $0x70] sm:$0xff]
      %v1091 = vld [vmem:[%s3 + $0x78] sm:$0xff]
      %v1092 = vld [vmem:[%s3 + $0x80] sm:$0xff]
      %v1093 = vld [vmem:[%s3 + $0x88] sm:$0xff]
      %v1094 = vld [vmem:[%s3 + $0x90] sm:$0xff]
      %v1095 = vld [vmem:[%s3 + $0x98] sm:$0xff]
      %v1096 = vld [vmem:[%s3 + $0xa0] sm:$0xff]
      %v1097 = vld [vmem:[%s3 + $0xa8] sm:$0xff]
      %v1098 = vld [vmem:[%s3 + $0xb0] sm:$0xff]
      %v1099 = vld [vmem:[%s3 + $0xb8] sm:$0xff]
      %v1100 = vld [vmem:[%s3 + $0xc0] sm:$0xff]
      %v1101 = vld [vmem:[%s3 + $0xc8] sm:$0xff]
      %v1102 = vld [vmem:[%s3 + $0xd0] sm:$0xff]
      %v1103 = vld [vmem:[%s3 + $0xd8] sm:$0xff]
      %v1104 = vld [vmem:[%s3 + $0xe0] sm:$0xff]
      %v1105 = vld [vmem:[%s3 + $0xe8] sm:$0xff]
      %v1106 = vld [vmem:[%s3 + $0xf0] sm:$0xff]
      %v1107 = vld [vmem:[%s3 + $0xf8] sm:$0xff]
      %v1108 = vld [vmem:[%s3 + $0x100] sm:$0xff]
      %v1109 = vld [vmem:[%s3 + $0x108] sm:$0xff]
      %v1110 = vld [vmem:[%s3 + $0x110] sm:$0xff]
      %v1111 = vld [vmem:[%s3 + $0x118] sm:$0xff]
      %v1112 = vld [vmem:[%s3 + $0x120] sm:$0xff]
      %v1113 = vld [vmem:[%s3 + $0x128] sm:$0xff]
      %v1114 = vld [vmem:[%s3 + $0x130] sm:$0xff]
      %v1115 = vld [vmem:[%s3 + $0x138] sm:$0xff]
      %v1116 = vld [vmem:[%s3 + $0x140] sm:$0xff]
      %v1117 = vld [vmem:[%s3 + $0x148] sm:$0xff]
      %v1118 = vld [vmem:[%s3 + $0x150] sm:$0xff]
      %v1119 = vld [vmem:[%s3 + $0x158] sm:$0xff]
      %v1120 = vld [vmem:[%s3 + $0x160] sm:$0xff]
      %v1121 = vld [vmem:[%s3 + $0x168] sm:$0xff]
      %v1122 = vld [vmem:[%s3 + $0x170] sm:$0xff]
      %v1123 = vld [vmem:[%s3 + $0x178] sm:$0xff]
      %v1124 = vld [vmem:[%s3 + $0x180] sm:$0xff]
      %v1125 = vld [vmem:[%s3 + $0x188] sm:$0xff]
      %v1126 = vld [vmem:[%s3 + $0x190] sm:$0xff]
      %v1127 = vld [vmem:[%s3 + $0x198] sm:$0xff]
      %v1128 = vld [vmem:[%s3 + $0x1a0] sm:$0xff]
      %v1129 = vld [vmem:[%s3 + $0x1a8] sm:$0xff]
      %v1130 = vld [vmem:[%s3 + $0x1b0] sm:$0xff]
      %v1131 = vld [vmem:[%s3 + $0x1b8] sm:$0xff]
      %v1132 = vld [vmem:[%s3 + $0x1c0] sm:$0xff]
      %v1133 = vld [vmem:[%s3 + $0x1c8] sm:$0xff]
      %v1134 = vld [vmem:[%s3 + $0x1d0] sm:$0xff]
      %v1135 = vld [vmem:[%s3 + $0x1d8] sm:$0xff]
      %v1136 = vld [vmem:[%s3 + $0x1e0] sm:$0xff]
      %v1137 = vld [vmem:[%s3 + $0x1e8] sm:$0xff]
      %v1138 = vld [vmem:[%s3 + $0x1f0] sm:$0xff]
      %v1139 = vld [vmem:[%s3 + $0x1f8] sm:$0xff]
      %v1140 = vld [vmem:[%s3 + $0x200] sm:$0xff]
      %v1141 = vld [vmem:[%s3 + $0x208] sm:$0xff]
      %v1142 = vld [vmem:[%s3 + $0x210] sm:$0xff]
      %v1143 = vld [vmem:[%s3 + $0x218] sm:$0xff]
      %v1144 = vld [vmem:[%s3 + $0x220] sm:$0xff]
      %v1145 = vld [vmem:[%s3 + $0x228] sm:$0xff]
      %v1146 = vld [vmem:[%s3 + $0x230] sm:$0xff]
      %v1147 = vld [vmem:[%s3 + $0x238] sm:$0xff]
      %v1148 = vld [vmem:[%s3 + $0x240] sm:$0xff]
      %v1149 = vld [vmem:[%s3 + $0x248] sm:$0xff]
      %v1150 = vld [vmem:[%s3 + $0x250] sm:$0xff]
      %v1151 = vld [vmem:[%s3 + $0x258] sm:$0xff]
      %v1152 = vld [vmem:[%s3 + $0x260] sm:$0xff]
      %v1153 = vld [vmem:[%s3 + $0x268] sm:$0xff]
      %v1154 = vld [vmem:[%s3 + $0x270] sm:$0xff]
      %v1155 = vld [vmem:[%s3 + $0x278] sm:$0xff]
      %v1156 = vld [vmem:[%s3 + $0x280] sm:$0xff]
      %v1157 = vld [vmem:[%s3 + $0x288] sm:$0xff]
      %v1158 = vld [vmem:[%s3 + $0x290] sm:$0xff]
      %v1159 = vld [vmem:[%s3 + $0x298] sm:$0xff]
      %v1160 = vld [vmem:[%s3 + $0x2a0] sm:$0xff]
      %v1161 = vld [vmem:[%s3 + $0x2a8] sm:$0xff]
      %v1162 = vld [vmem:[%s3 + $0x2b0] sm:$0xff]
      %v1163 = vld [vmem:[%s3 + $0x2b8] sm:$0xff]
      %v1164 = vld [vmem:[%s3 + $0x2c0] sm:$0xff]
      %v1165 = vld [vmem:[%s3 + $0x2c8] sm:$0xff]
      %v1166 = vld [vmem:[%s3 + $0x2d0] sm:$0xff]
      %v1167 = vld [vmem:[%s3 + $0x2d8] sm:$0xff]
      %v1168 = vld [vmem:[%s3 + $0x2e0] sm:$0xff]
      %v1169 = vld [vmem:[%s3 + $0x2e8] sm:$0xff]
      %v1170 = vld [vmem:[%s3 + $0x2f0] sm:$0xff]
      %v1171 = vld [vmem:[%s3 + $0x2f8] sm:$0xff]
      %v1172 = vld [vmem:[%s3 + $0x300] sm:$0xff]
      %v1173 = vld [vmem:[%s3 + $0x308] sm:$0xff]
      %v1174 = vld [vmem:[%s3 + $0x310] sm:$0xff]
      %v1175 = vld [vmem:[%s3 + $0x318] sm:$0xff]
      %v1176 = vld [vmem:[%s3 + $0x320] sm:$0xff]
      %v1177 = vld [vmem:[%s3 + $0x328] sm:$0xff]
      %v1178 = vld [vmem:[%s3 + $0x330] sm:$0xff]
      %v1179 = vld [vmem:[%s3 + $0x338] sm:$0xff]
      %v1180 = vld [vmem:[%s3 + $0x340] sm:$0xff]
      %v1181 = vld [vmem:[%s3 + $0x348] sm:$0xff]
      %v1182 = vld [vmem:[%s3 + $0x350] sm:$0xff]
      %v1183 = vld [vmem:[%s3 + $0x358] sm:$0xff]
      %v1184 = vld [vmem:[%s3 + $0x360] sm:$0xff]
      %v1185 = vld [vmem:[%s3 + $0x368] sm:$0xff]
      %v1186 = vld [vmem:[%s3 + $0x370] sm:$0xff]
      %v1187 = vld [vmem:[%s3 + $0x378] sm:$0xff]
      %v1188 = vld [vmem:[%s3 + $0x380] sm:$0xff]
      %v1189 = vld [vmem:[%s3 + $0x388] sm:$0xff]
      %v1190 = vld [vmem:[%s3 + $0x390] sm:$0xff]
      %v1191 = vld [vmem:[%s3 + $0x398] sm:$0xff]
      %v1192 = vld [vmem:[%s3 + $0x3a0] sm:$0xff]
      %v1193 = vld [vmem:[%s3 + $0x3a8] sm:$0xff]
      %v1194 = vld [vmem:[%s3 + $0x3b0] sm:$0xff]
      %v1195 = vld [vmem:[%s3 + $0x3b8] sm:$0xff]
      %v1196 = vld [vmem:[%s3 + $0x3c0] sm:$0xff]
      %v1197 = vld [vmem:[%s3 + $0x3c8] sm:$0xff]
      %v1198 = vld [vmem:[%s3 + $0x3d0] sm:$0xff]
      %v1199 = vld [vmem:[%s3 + $0x3d8] sm:$0xff]
      %v1200 = vld [vmem:[%s3 + $0x3e0] sm:$0xff]
      %v1201 = vld [vmem:[%s3 + $0x3e8] sm:$0xff]
      %v1202 = vld [vmem:[%s3 + $0x3f0] sm:$0xff]
      %v1203 = vld [vmem:[%s3 + $0x3f8] sm:$0xff]
      %v1204 = vld [vmem:[%s3 + $0x400] sm:$0xff]
      %v1205 = vld [vmem:[%s3 + $0x408] sm:$0xff]
      %v1206 = vld [vmem:[%s3 + $0x410] sm:$0xff]
      %v1207 = vld [vmem:[%s3 + $0x418] sm:$0xff]
      %v1208 = vld [vmem:[%s3 + $0x420] sm:$0xff]
      %v1209 = vld [vmem:[%s3 + $0x428] sm:$0xff]
      %v1210 = vld [vmem:[%s3 + $0x430] sm:$0xff]
      %v1211 = vld [vmem:[%s3 + $0x438] sm:$0xff]
      %v1212 = vld [vmem:[%s3 + $0x440] sm:$0xff]
      %v1213 = vld [vmem:[%s3 + $0x448] sm:$0xff]
      %v1214 = vld [vmem:[%s3 + $0x450] sm:$0xff]
      %v1215 = vld [vmem:[%s3 + $0x458] sm:$0xff]
      %v1216 = vld [vmem:[%s3 + $0x460] sm:$0xff]
      %v1217 = vld [vmem:[%s3 + $0x468] sm:$0xff]
      %v1218 = vld [vmem:[%s3 + $0x470] sm:$0xff]
      %v1219 = vld [vmem:[%s3 + $0x478] sm:$0xff]
      %v1220 = vld [vmem:[%s3 + $0x480] sm:$0xff]
      %v1221 = vld [vmem:[%s3 + $0x488] sm:$0xff]
      %v1222 = vld [vmem:[%s3 + $0x490] sm:$0xff]
      %v1223 = vld [vmem:[%s3 + $0x498] sm:$0xff]
      %v1224 = vld [vmem:[%s3 + $0x4a0] sm:$0xff]
      %v1225 = vld [vmem:[%s3 + $0x4a8] sm:$0xff]
      %v1226 = vld [vmem:[%s3 + $0x4b0] sm:$0xff]
      %v1227 = vld [vmem:[%s3 + $0x4b8] sm:$0xff]
      %v1228 = vld [vmem:[%s3 + $0x4c0] sm:$0xff]
      %v1229 = vld [vmem:[%s3 + $0x4c8] sm:$0xff]
      %v1230 = vld [vmem:[%s3 + $0x4d0] sm:$0xff]
      %v1231 = vld [vmem:[%s3 + $0x4d8] sm:$0xff]
      %v1232 = vld [vmem:[%s3 + $0x4e0] sm:$0xff]
      %v1233 = vld [vmem:[%s3 + $0x4e8] sm:$0xff]
      %v1234 = vld [vmem:[%s3 + $0x4f0] sm:$0xff]
      %v1235 = vld [vmem:[%s3 + $0x4f8] sm:$0xff]
      %v1236 = vld [vmem:[%s3 + $0x500] sm:$0xff]
      %v1237 = vld [vmem:[%s3 + $0x508] sm:$0xff]
      %v1238 = vld [vmem:[%s3 + $0x510] sm:$0xff]
      %v1239 = vld [vmem:[%s3 + $0x518] sm:$0xff]
      %v1240 = vld [vmem:[%s3 + $0x520] sm:$0xff]
      %v1241 = vld [vmem:[%s3 + $0x528] sm:$0xff]
      %v1242 = vld [vmem:[%s3 + $0x530] sm:$0xff]
      %v1243 = vld [vmem:[%s3 + $0x538] sm:$0xff]
      %v1244 = vld [vmem:[%s3 + $0x540] sm:$0xff]
      %v1245 = vld [vmem:[%s3 + $0x548] sm:$0xff]
      %v1246 = vld [vmem:[%s3 + $0x550] sm:$0xff]
      %v1247 = vld [vmem:[%s3 + $0x558] sm:$0xff]
      %v1248 = vld [vmem:[%s3 + $0x560] sm:$0xff]
      %v1249 = vld [vmem:[%s3 + $0x568] sm:$0xff]
      %v1250 = vld [vmem:[%s3 + $0x570] sm:$0xff]
      %v1251 = vld [vmem:[%s3 + $0x578] sm:$0xff]
      %v1252 = vld [vmem:[%s3 + $0x580] sm:$0xff]
      %v1253 = vld [vmem:[%s3 + $0x588] sm:$0xff]
      %v1254 = vld [vmem:[%s3 + $0x590] sm:$0xff]
      %v1255 = vld [vmem:[%s3 + $0x598] sm:$0xff]
      %v1256 = vld [vmem:[%s3 + $0x5a0] sm:$0xff]
      %v1257 = vld [vmem:[%s3 + $0x5a8] sm:$0xff]
      %v1258 = vld [vmem:[%s3 + $0x5b0] sm:$0xff]
      %v1259 = vld [vmem:[%s3 + $0x5b8] sm:$0xff]
      %v1260 = vld [vmem:[%s3 + $0x5c0] sm:$0xff]
      %v1261 = vld [vmem:[%s3 + $0x5c8] sm:$0xff]
      %v1262 = vld [vmem:[%s3 + $0x5d0] sm:$0xff]
      %v1263 = vld [vmem:[%s3 + $0x5d8] sm:$0xff]
      %v1264 = vld [vmem:[%s3 + $0x5e0] sm:$0xff]
      %v1265 = vld [vmem:[%s3 + $0x5e8] sm:$0xff]
      %v1266 = vld [vmem:[%s3 + $0x5f0] sm:$0xff]
      %v1267 = vld [vmem:[%s3 + $0x5f8] sm:$0xff]
      %v1268 = vld [vmem:[%s3 + $0x600] sm:$0xff]
      %v1269 = vld [vmem:[%s3 + $0x608] sm:$0xff]
      %v1270 = vld [vmem:[%s3 + $0x610] sm:$0xff]
      %v1271 = vld [vmem:[%s3 + $0x618] sm:$0xff]
      %v1272 = vld [vmem:[%s3 + $0x620] sm:$0xff]
      %v1273 = vld [vmem:[%s3 + $0x628] sm:$0xff]
      %v1274 = vld [vmem:[%s3 + $0x630] sm:$0xff]
      %v1275 = vld [vmem:[%s3 + $0x638] sm:$0xff]
      %v1276 = vld [vmem:[%s3 + $0x640] sm:$0xff]
      %v1277 = vld [vmem:[%s3 + $0x648] sm:$0xff]
      %v1278 = vld [vmem:[%s3 + $0x650] sm:$0xff]
      %v1279 = vld [vmem:[%s3 + $0x658] sm:$0xff]
      %v1280 = vld [vmem:[%s3 + $0x660] sm:$0xff]
      %v1281 = vld [vmem:[%s3 + $0x668] sm:$0xff]
      %v1282 = vld [vmem:[%s3 + $0x670] sm:$0xff]
      %v1283 = vld [vmem:[%s3 + $0x678] sm:$0xff]
      %v1284 = vld [vmem:[%s3 + $0x680] sm:$0xff]
      %v1285 = vld [vmem:[%s3 + $0x688] sm:$0xff]
      %v1286 = vld [vmem:[%s3 + $0x690] sm:$0xff]
      %v1287 = vld [vmem:[%s3 + $0x698] sm:$0xff]
      %v1288 = vld [vmem:[%s3 + $0x6a0] sm:$0xff]
      %v1289 = vld [vmem:[%s3 + $0x6a8] sm:$0xff]
      %v1290 = vld [vmem:[%s3 + $0x6b0] sm:$0xff]
      %v1291 = vld [vmem:[%s3 + $0x6b8] sm:$0xff]
      %v1292 = vld [vmem:[%s3 + $0x6c0] sm:$0xff]
      %v1293 = vld [vmem:[%s3 + $0x6c8] sm:$0xff]
      %v1294 = vld [vmem:[%s3 + $0x6d0] sm:$0xff]
      %v1295 = vld [vmem:[%s3 + $0x6d8] sm:$0xff]
      %v1296 = vld [vmem:[%s3 + $0x6e0] sm:$0xff]
      %v1297 = vld [vmem:[%s3 + $0x6e8] sm:$0xff]
      %v1298 = vld [vmem:[%s3 + $0x6f0] sm:$0xff]
      %v1299 = vld [vmem:[%s3 + $0x6f8] sm:$0xff]
      %v1300 = vld [vmem:[%s3 + $0x700] sm:$0xff]
      %v1301 = vld [vmem:[%s3 + $0x708] sm:$0xff]
      %v1302 = vld [vmem:[%s3 + $0x710] sm:$0xff]
      %v1303 = vld [vmem:[%s3 + $0x718] sm:$0xff]
      %v1304 = vld [vmem:[%s3 + $0x720] sm:$0xff]
      %v1305 = vld [vmem:[%s3 + $0x728] sm:$0xff]
      %v1306 = vld [vmem:[%s3 + $0x730] sm:$0xff]
      %v1307 = vld [vmem:[%s3 + $0x738] sm:$0xff]
      %v1308 = vld [vmem:[%s3 + $0x740] sm:$0xff]
      %v1309 = vld [vmem:[%s3 + $0x748] sm:$0xff]
      %v1310 = vld [vmem:[%s3 + $0x750] sm:$0xff]
      %v1311 = vld [vmem:[%s3 + $0x758] sm:$0xff]
      %v1312 = vld [vmem:[%s3 + $0x760] sm:$0xff]
      %v1313 = vld [vmem:[%s3 + $0x768] sm:$0xff]
      %v1314 = vld [vmem:[%s3 + $0x770] sm:$0xff]
      %v1315 = vld [vmem:[%s3 + $0x778] sm:$0xff]
      %v1316 = vld [vmem:[%s3 + $0x780] sm:$0xff]
      %v1317 = vld [vmem:[%s3 + $0x788] sm:$0xff]
      %v1318 = vld [vmem:[%s3 + $0x790] sm:$0xff]
      %v1319 = vld [vmem:[%s3 + $0x798] sm:$0xff]
      %v1320 = vld [vmem:[%s3 + $0x7a0] sm:$0xff]
      %v1321 = vld [vmem:[%s3 + $0x7a8] sm:$0xff]
      %v1322 = vld [vmem:[%s3 + $0x7b0] sm:$0xff]
      %v1323 = vld [vmem:[%s3 + $0x7b8] sm:$0xff]
      %v1324 = vld [vmem:[%s3 + $0x7c0] sm:$0xff]
      %v1325 = vld [vmem:[%s3 + $0x7c8] sm:$0xff]
      %v1326 = vld [vmem:[%s3 + $0x7d0] sm:$0xff]
      %v1327 = vld [vmem:[%s3 + $0x7d8] sm:$0xff]
      %v1328 = vld [vmem:[%s3 + $0x7e0] sm:$0xff]
      %v1329 = vld [vmem:[%s3 + $0x7e8] sm:$0xff]
      %v1330 = vld [vmem:[%s3 + $0x7f0] sm:$0xff]
      %v1331 = vld [vmem:[%s3 + $0x7f8] sm:$0xff]
      %v1588 = vunpack.c.l.b16 %v1076
      %v1589 = vunpack.c.h.b16 %v1076
      %v1590 = vunpack.c.l.b16 %v1077
      %v1591 = vunpack.c.h.b16 %v1077
      %v1592 = vunpack.c.l.b16 %v1078
      %v1593 = vunpack.c.h.b16 %v1078
      %v1594 = vunpack.c.l.b16 %v1079
      %v1595 = vunpack.c.h.b16 %v1079
      %v1596 = vunpack.c.l.b16 %v1080
      %v1597 = vunpack.c.h.b16 %v1080
      %v1598 = vunpack.c.l.b16 %v1081
      %v1599 = vunpack.c.h.b16 %v1081
      %v1600 = vunpack.c.l.b16 %v1082
      %v1601 = vunpack.c.h.b16 %v1082
      %v1602 = vunpack.c.l.b16 %v1083
      %v1603 = vunpack.c.h.b16 %v1083
      %v1604 = vunpack.c.l.b16 %v1084
      %v1605 = vunpack.c.h.b16 %v1084
      %v1606 = vunpack.c.l.b16 %v1085
      %v1607 = vunpack.c.h.b16 %v1085
      %v1608 = vunpack.c.l.b16 %v1086
      %v1609 = vunpack.c.h.b16 %v1086
      %v1610 = vunpack.c.l.b16 %v1087
      %v1611 = vunpack.c.h.b16 %v1087
      %v1612 = vunpack.c.l.b16 %v1088
      %v1613 = vunpack.c.h.b16 %v1088
      %v1614 = vunpack.c.l.b16 %v1089
      %v1615 = vunpack.c.h.b16 %v1089
      %v1616 = vunpack.c.l.b16 %v1090
      %v1617 = vunpack.c.h.b16 %v1090
      %v1618 = vunpack.c.l.b16 %v1091
      %v1619 = vunpack.c.h.b16 %v1091
      %v1620 = vunpack.c.l.b16 %v1092
      %v1621 = vunpack.c.h.b16 %v1092
      %v1622 = vunpack.c.l.b16 %v1093
      %v1623 = vunpack.c.h.b16 %v1093
      %v1624 = vunpack.c.l.b16 %v1094
      %v1625 = vunpack.c.h.b16 %v1094
      %v1626 = vunpack.c.l.b16 %v1095
      %v1627 = vunpack.c.h.b16 %v1095
      %v1628 = vunpack.c.l.b16 %v1096
      %v1629 = vunpack.c.h.b16 %v1096
      %v1630 = vunpack.c.l.b16 %v1097
      %v1631 = vunpack.c.h.b16 %v1097
      %v1632 = vunpack.c.l.b16 %v1098
      %v1633 = vunpack.c.h.b16 %v1098
      %v1634 = vunpack.c.l.b16 %v1099
      %v1635 = vunpack.c.h.b16 %v1099
      %v1636 = vunpack.c.l.b16 %v1100
      %v1637 = vunpack.c.h.b16 %v1100
      %v1638 = vunpack.c.l.b16 %v1101
      %v1639 = vunpack.c.h.b16 %v1101
      %v1640 = vunpack.c.l.b16 %v1102
      %v1641 = vunpack.c.h.b16 %v1102
      %v1642 = vunpack.c.l.b16 %v1103
      %v1643 = vunpack.c.h.b16 %v1103
      %v1644 = vunpack.c.l.b16 %v1104
      %v1645 = vunpack.c.h.b16 %v1104
      %v1646 = vunpack.c.l.b16 %v1105
      %v1647 = vunpack.c.h.b16 %v1105
      %v1648 = vunpack.c.l.b16 %v1106
      %v1649 = vunpack.c.h.b16 %v1106
      %v1650 = vunpack.c.l.b16 %v1107
      %v1651 = vunpack.c.h.b16 %v1107
      %v1652 = vunpack.c.l.b16 %v1108
      %v1653 = vunpack.c.h.b16 %v1108
      %v1654 = vunpack.c.l.b16 %v1109
      %v1655 = vunpack.c.h.b16 %v1109
      %v1656 = vunpack.c.l.b16 %v1110
      %v1657 = vunpack.c.h.b16 %v1110
      %v1658 = vunpack.c.l.b16 %v1111
      %v1659 = vunpack.c.h.b16 %v1111
      %v1660 = vunpack.c.l.b16 %v1112
      %v1661 = vunpack.c.h.b16 %v1112
      %v1662 = vunpack.c.l.b16 %v1113
      %v1663 = vunpack.c.h.b16 %v1113
      %v1664 = vunpack.c.l.b16 %v1114
      %v1665 = vunpack.c.h.b16 %v1114
      %v1666 = vunpack.c.l.b16 %v1115
      %v1667 = vunpack.c.h.b16 %v1115
      %v1668 = vunpack.c.l.b16 %v1116
      %v1669 = vunpack.c.h.b16 %v1116
      %v1670 = vunpack.c.l.b16 %v1117
      %v1671 = vunpack.c.h.b16 %v1117
      %v1672 = vunpack.c.l.b16 %v1118
      %v1673 = vunpack.c.h.b16 %v1118
      %v1674 = vunpack.c.l.b16 %v1119
      %v1675 = vunpack.c.h.b16 %v1119
      %v1676 = vunpack.c.l.b16 %v1120
      %v1677 = vunpack.c.h.b16 %v1120
      %v1678 = vunpack.c.l.b16 %v1121
      %v1679 = vunpack.c.h.b16 %v1121
      %v1680 = vunpack.c.l.b16 %v1122
      %v1681 = vunpack.c.h.b16 %v1122
      %v1682 = vunpack.c.l.b16 %v1123
      %v1683 = vunpack.c.h.b16 %v1123
      %v1684 = vunpack.c.l.b16 %v1124
      %v1685 = vunpack.c.h.b16 %v1124
      %v1686 = vunpack.c.l.b16 %v1125
      %v1687 = vunpack.c.h.b16 %v1125
      %v1688 = vunpack.c.l.b16 %v1126
      %v1689 = vunpack.c.h.b16 %v1126
      %v1690 = vunpack.c.l.b16 %v1127
      %v1691 = vunpack.c.h.b16 %v1127
      %v1692 = vunpack.c.l.b16 %v1128
      %v1693 = vunpack.c.h.b16 %v1128
      %v1694 = vunpack.c.l.b16 %v1129
      %v1695 = vunpack.c.h.b16 %v1129
      %v1696 = vunpack.c.l.b16 %v1130
      %v1697 = vunpack.c.h.b16 %v1130
      %v1698 = vunpack.c.l.b16 %v1131
      %v1699 = vunpack.c.h.b16 %v1131
      %v1700 = vunpack.c.l.b16 %v1132
      %v1701 = vunpack.c.h.b16 %v1132
      %v1702 = vunpack.c.l.b16 %v1133
      %v1703 = vunpack.c.h.b16 %v1133
      %v1704 = vunpack.c.l.b16 %v1134
      %v1705 = vunpack.c.h.b16 %v1134
      %v1706 = vunpack.c.l.b16 %v1135
      %v1707 = vunpack.c.h.b16 %v1135
      %v1708 = vunpack.c.l.b16 %v1136
      %v1709 = vunpack.c.h.b16 %v1136
      %v1710 = vunpack.c.l.b16 %v1137
      %v1711 = vunpack.c.h.b16 %v1137
      %v1712 = vunpack.c.l.b16 %v1138
      %v1713 = vunpack.c.h.b16 %v1138
      %v1714 = vunpack.c.l.b16 %v1139
      %v1715 = vunpack.c.h.b16 %v1139
      %v1716 = vunpack.c.l.b16 %v1140
      %v1717 = vunpack.c.h.b16 %v1140
      %v1718 = vunpack.c.l.b16 %v1141
      %v1719 = vunpack.c.h.b16 %v1141
      %v1720 = vunpack.c.l.b16 %v1142
      %v1721 = vunpack.c.h.b16 %v1142
      %v1722 = vunpack.c.l.b16 %v1143
      %v1723 = vunpack.c.h.b16 %v1143
      %v1724 = vunpack.c.l.b16 %v1144
      %v1725 = vunpack.c.h.b16 %v1144
      %v1726 = vunpack.c.l.b16 %v1145
      %v1727 = vunpack.c.h.b16 %v1145
      %v1728 = vunpack.c.l.b16 %v1146
      %v1729 = vunpack.c.h.b16 %v1146
      %v1730 = vunpack.c.l.b16 %v1147
      %v1731 = vunpack.c.h.b16 %v1147
      %v1732 = vunpack.c.l.b16 %v1148
      %v1733 = vunpack.c.h.b16 %v1148
      %v1734 = vunpack.c.l.b16 %v1149
      %v1735 = vunpack.c.h.b16 %v1149
      %v1736 = vunpack.c.l.b16 %v1150
      %v1737 = vunpack.c.h.b16 %v1150
      %v1738 = vunpack.c.l.b16 %v1151
      %v1739 = vunpack.c.h.b16 %v1151
      %v1740 = vunpack.c.l.b16 %v1152
      %v1741 = vunpack.c.h.b16 %v1152
      %v1742 = vunpack.c.l.b16 %v1153
      %v1743 = vunpack.c.h.b16 %v1153
      %v1744 = vunpack.c.l.b16 %v1154
      %v1745 = vunpack.c.h.b16 %v1154
      %v1746 = vunpack.c.l.b16 %v1155
      %v1747 = vunpack.c.h.b16 %v1155
      %v1748 = vunpack.c.l.b16 %v1156
      %v1749 = vunpack.c.h.b16 %v1156
      %v1750 = vunpack.c.l.b16 %v1157
      %v1751 = vunpack.c.h.b16 %v1157
      %v1752 = vunpack.c.l.b16 %v1158
      %v1753 = vunpack.c.h.b16 %v1158
      %v1754 = vunpack.c.l.b16 %v1159
      %v1755 = vunpack.c.h.b16 %v1159
      %v1756 = vunpack.c.l.b16 %v1160
      %v1757 = vunpack.c.h.b16 %v1160
      %v1758 = vunpack.c.l.b16 %v1161
      %v1759 = vunpack.c.h.b16 %v1161
      %v1760 = vunpack.c.l.b16 %v1162
      %v1761 = vunpack.c.h.b16 %v1162
      %v1762 = vunpack.c.l.b16 %v1163
      %v1763 = vunpack.c.h.b16 %v1163
      %v1764 = vunpack.c.l.b16 %v1164
      %v1765 = vunpack.c.h.b16 %v1164
      %v1766 = vunpack.c.l.b16 %v1165
      %v1767 = vunpack.c.h.b16 %v1165
      %v1768 = vunpack.c.l.b16 %v1166
      %v1769 = vunpack.c.h.b16 %v1166
      %v1770 = vunpack.c.l.b16 %v1167
      %v1771 = vunpack.c.h.b16 %v1167
      %v1772 = vunpack.c.l.b16 %v1168
      %v1773 = vunpack.c.h.b16 %v1168
      %v1774 = vunpack.c.l.b16 %v1169
      %v1775 = vunpack.c.h.b16 %v1169
      %v1776 = vunpack.c.l.b16 %v1170
      %v1777 = vunpack.c.h.b16 %v1170
      %v1778 = vunpack.c.l.b16 %v1171
      %v1779 = vunpack.c.h.b16 %v1171
      %v1780 = vunpack.c.l.b16 %v1172
      %v1781 = vunpack.c.h.b16 %v1172
      %v1782 = vunpack.c.l.b16 %v1173
      %v1783 = vunpack.c.h.b16 %v1173
      %v1784 = vunpack.c.l.b16 %v1174
      %v1785 = vunpack.c.h.b16 %v1174
      %v1786 = vunpack.c.l.b16 %v1175
      %v1787 = vunpack.c.h.b16 %v1175
      %v1788 = vunpack.c.l.b16 %v1176
      %v1789 = vunpack.c.h.b16 %v1176
      %v1790 = vunpack.c.l.b16 %v1177
      %v1791 = vunpack.c.h.b16 %v1177
      %v1792 = vunpack.c.l.b16 %v1178
      %v1793 = vunpack.c.h.b16 %v1178
      %v1794 = vunpack.c.l.b16 %v1179
      %v1795 = vunpack.c.h.b16 %v1179
      %v1796 = vunpack.c.l.b16 %v1180
      %v1797 = vunpack.c.h.b16 %v1180
      %v1798 = vunpack.c.l.b16 %v1181
      %v1799 = vunpack.c.h.b16 %v1181
      %v1800 = vunpack.c.l.b16 %v1182
      %v1801 = vunpack.c.h.b16 %v1182
      %v1802 = vunpack.c.l.b16 %v1183
      %v1803 = vunpack.c.h.b16 %v1183
      %v1804 = vunpack.c.l.b16 %v1184
      %v1805 = vunpack.c.h.b16 %v1184
      %v1806 = vunpack.c.l.b16 %v1185
      %v1807 = vunpack.c.h.b16 %v1185
      %v1808 = vunpack.c.l.b16 %v1186
      %v1809 = vunpack.c.h.b16 %v1186
      %v1810 = vunpack.c.l.b16 %v1187
      %v1811 = vunpack.c.h.b16 %v1187
      %v1812 = vunpack.c.l.b16 %v1188
      %v1813 = vunpack.c.h.b16 %v1188
      %v1814 = vunpack.c.l.b16 %v1189
      %v1815 = vunpack.c.h.b16 %v1189
      %v1816 = vunpack.c.l.b16 %v1190
      %v1817 = vunpack.c.h.b16 %v1190
      %v1818 = vunpack.c.l.b16 %v1191
      %v1819 = vunpack.c.h.b16 %v1191
      %v1820 = vunpack.c.l.b16 %v1192
      %v1821 = vunpack.c.h.b16 %v1192
      %v1822 = vunpack.c.l.b16 %v1193
      %v1823 = vunpack.c.h.b16 %v1193
      %v1824 = vunpack.c.l.b16 %v1194
      %v1825 = vunpack.c.h.b16 %v1194
      %v1826 = vunpack.c.l.b16 %v1195
      %v1827 = vunpack.c.h.b16 %v1195
      %v1828 = vunpack.c.l.b16 %v1196
      %v1829 = vunpack.c.h.b16 %v1196
      %v1830 = vunpack.c.l.b16 %v1197
      %v1831 = vunpack.c.h.b16 %v1197
      %v1832 = vunpack.c.l.b16 %v1198
      %v1833 = vunpack.c.h.b16 %v1198
      %v1834 = vunpack.c.l.b16 %v1199
      %v1835 = vunpack.c.h.b16 %v1199
      %v1836 = vunpack.c.l.b16 %v1200
      %v1837 = vunpack.c.h.b16 %v1200
      %v1838 = vunpack.c.l.b16 %v1201
      %v1839 = vunpack.c.h.b16 %v1201
      %v1840 = vunpack.c.l.b16 %v1202
      %v1841 = vunpack.c.h.b16 %v1202
      %v1842 = vunpack.c.l.b16 %v1203
      %v1843 = vunpack.c.h.b16 %v1203
      %v1844 = vunpack.c.l.b16 %v1204
      %v1845 = vunpack.c.h.b16 %v1204
      %v1846 = vunpack.c.l.b16 %v1205
      %v1847 = vunpack.c.h.b16 %v1205
      %v1848 = vunpack.c.l.b16 %v1206
      %v1849 = vunpack.c.h.b16 %v1206
      %v1850 = vunpack.c.l.b16 %v1207
      %v1851 = vunpack.c.h.b16 %v1207
      %v1852 = vunpack.c.l.b16 %v1208
      %v1853 = vunpack.c.h.b16 %v1208
      %v1854 = vunpack.c.l.b16 %v1209
      %v1855 = vunpack.c.h.b16 %v1209
      %v1856 = vunpack.c.l.b16 %v1210
      %v1857 = vunpack.c.h.b16 %v1210
      %v1858 = vunpack.c.l.b16 %v1211
      %v1859 = vunpack.c.h.b16 %v1211
      %v1860 = vunpack.c.l.b16 %v1212
      %v1861 = vunpack.c.h.b16 %v1212
      %v1862 = vunpack.c.l.b16 %v1213
      %v1863 = vunpack.c.h.b16 %v1213
      %v1864 = vunpack.c.l.b16 %v1214
      %v1865 = vunpack.c.h.b16 %v1214
      %v1866 = vunpack.c.l.b16 %v1215
      %v1867 = vunpack.c.h.b16 %v1215
      %v1868 = vunpack.c.l.b16 %v1216
      %v1869 = vunpack.c.h.b16 %v1216
      %v1870 = vunpack.c.l.b16 %v1217
      %v1871 = vunpack.c.h.b16 %v1217
      %v1872 = vunpack.c.l.b16 %v1218
      %v1873 = vunpack.c.h.b16 %v1218
      %v1874 = vunpack.c.l.b16 %v1219
      %v1875 = vunpack.c.h.b16 %v1219
      %v1876 = vunpack.c.l.b16 %v1220
      %v1877 = vunpack.c.h.b16 %v1220
      %v1878 = vunpack.c.l.b16 %v1221
      %v1879 = vunpack.c.h.b16 %v1221
      %v1880 = vunpack.c.l.b16 %v1222
      %v1881 = vunpack.c.h.b16 %v1222
      %v1882 = vunpack.c.l.b16 %v1223
      %v1883 = vunpack.c.h.b16 %v1223
      %v1884 = vunpack.c.l.b16 %v1224
      %v1885 = vunpack.c.h.b16 %v1224
      %v1886 = vunpack.c.l.b16 %v1225
      %v1887 = vunpack.c.h.b16 %v1225
      %v1888 = vunpack.c.l.b16 %v1226
      %v1889 = vunpack.c.h.b16 %v1226
      %v1890 = vunpack.c.l.b16 %v1227
      %v1891 = vunpack.c.h.b16 %v1227
      %v1892 = vunpack.c.l.b16 %v1228
      %v1893 = vunpack.c.h.b16 %v1228
      %v1894 = vunpack.c.l.b16 %v1229
      %v1895 = vunpack.c.h.b16 %v1229
      %v1896 = vunpack.c.l.b16 %v1230
      %v1897 = vunpack.c.h.b16 %v1230
      %v1898 = vunpack.c.l.b16 %v1231
      %v1899 = vunpack.c.h.b16 %v1231
      %v1900 = vunpack.c.l.b16 %v1232
      %v1901 = vunpack.c.h.b16 %v1232
      %v1902 = vunpack.c.l.b16 %v1233
      %v1903 = vunpack.c.h.b16 %v1233
      %v1904 = vunpack.c.l.b16 %v1234
      %v1905 = vunpack.c.h.b16 %v1234
      %v1906 = vunpack.c.l.b16 %v1235
      %v1907 = vunpack.c.h.b16 %v1235
      %v1908 = vunpack.c.l.b16 %v1236
      %v1909 = vunpack.c.h.b16 %v1236
      %v1910 = vunpack.c.l.b16 %v1237
      %v1911 = vunpack.c.h.b16 %v1237
      %v1912 = vunpack.c.l.b16 %v1238
      %v1913 = vunpack.c.h.b16 %v1238
      %v1914 = vunpack.c.l.b16 %v1239
      %v1915 = vunpack.c.h.b16 %v1239
      %v1916 = vunpack.c.l.b16 %v1240
      %v1917 = vunpack.c.h.b16 %v1240
      %v1918 = vunpack.c.l.b16 %v1241
      %v1919 = vunpack.c.h.b16 %v1241
      %v1920 = vunpack.c.l.b16 %v1242
      %v1921 = vunpack.c.h.b16 %v1242
      %v1922 = vunpack.c.l.b16 %v1243
      %v1923 = vunpack.c.h.b16 %v1243
      %v1924 = vunpack.c.l.b16 %v1244
      %v1925 = vunpack.c.h.b16 %v1244
      %v1926 = vunpack.c.l.b16 %v1245
      %v1927 = vunpack.c.h.b16 %v1245
      %v1928 = vunpack.c.l.b16 %v1246
      %v1929 = vunpack.c.h.b16 %v1246
      %v1930 = vunpack.c.l.b16 %v1247
      %v1931 = vunpack.c.h.b16 %v1247
      %v1932 = vunpack.c.l.b16 %v1248
      %v1933 = vunpack.c.h.b16 %v1248
      %v1934 = vunpack.c.l.b16 %v1249
      %v1935 = vunpack.c.h.b16 %v1249
      %v1936 = vunpack.c.l.b16 %v1250
      %v1937 = vunpack.c.h.b16 %v1250
      %v1938 = vunpack.c.l.b16 %v1251
      %v1939 = vunpack.c.h.b16 %v1251
      %v1940 = vunpack.c.l.b16 %v1252
      %v1941 = vunpack.c.h.b16 %v1252
      %v1942 = vunpack.c.l.b16 %v1253
      %v1943 = vunpack.c.h.b16 %v1253
      %v1944 = vunpack.c.l.b16 %v1254
      %v1945 = vunpack.c.h.b16 %v1254
      %v1946 = vunpack.c.l.b16 %v1255
      %v1947 = vunpack.c.h.b16 %v1255
      %v1948 = vunpack.c.l.b16 %v1256
      %v1949 = vunpack.c.h.b16 %v1256
      %v1950 = vunpack.c.l.b16 %v1257
      %v1951 = vunpack.c.h.b16 %v1257
      %v1952 = vunpack.c.l.b16 %v1258
      %v1953 = vunpack.c.h.b16 %v1258
      %v1954 = vunpack.c.l.b16 %v1259
      %v1955 = vunpack.c.h.b16 %v1259
      %v1956 = vunpack.c.l.b16 %v1260
      %v1957 = vunpack.c.h.b16 %v1260
      %v1958 = vunpack.c.l.b16 %v1261
      %v1959 = vunpack.c.h.b16 %v1261
      %v1960 = vunpack.c.l.b16 %v1262
      %v1961 = vunpack.c.h.b16 %v1262
      %v1962 = vunpack.c.l.b16 %v1263
      %v1963 = vunpack.c.h.b16 %v1263
      %v1964 = vunpack.c.l.b16 %v1264
      %v1965 = vunpack.c.h.b16 %v1264
      %v1966 = vunpack.c.l.b16 %v1265
      %v1967 = vunpack.c.h.b16 %v1265
      %v1968 = vunpack.c.l.b16 %v1266
      %v1969 = vunpack.c.h.b16 %v1266
      %v1970 = vunpack.c.l.b16 %v1267
      %v1971 = vunpack.c.h.b16 %v1267
      %v1972 = vunpack.c.l.b16 %v1268
      %v1973 = vunpack.c.h.b16 %v1268
      %v1974 = vunpack.c.l.b16 %v1269
      %v1975 = vunpack.c.h.b16 %v1269
      %v1976 = vunpack.c.l.b16 %v1270
      %v1977 = vunpack.c.h.b16 %v1270
      %v1978 = vunpack.c.l.b16 %v1271
      %v1979 = vunpack.c.h.b16 %v1271
      %v1980 = vunpack.c.l.b16 %v1272
      %v1981 = vunpack.c.h.b16 %v1272
      %v1982 = vunpack.c.l.b16 %v1273
      %v1983 = vunpack.c.h.b16 %v1273
      %v1984 = vunpack.c.l.b16 %v1274
      %v1985 = vunpack.c.h.b16 %v1274
      %v1986 = vunpack.c.l.b16 %v1275
      %v1987 = vunpack.c.h.b16 %v1275
      %v1988 = vunpack.c.l.b16 %v1276
      %v1989 = vunpack.c.h.b16 %v1276
      %v1990 = vunpack.c.l.b16 %v1277
      %v1991 = vunpack.c.h.b16 %v1277
      %v1992 = vunpack.c.l.b16 %v1278
      %v1993 = vunpack.c.h.b16 %v1278
      %v1994 = vunpack.c.l.b16 %v1279
      %v1995 = vunpack.c.h.b16 %v1279
      %v1996 = vunpack.c.l.b16 %v1280
      %v1997 = vunpack.c.h.b16 %v1280
      %v1998 = vunpack.c.l.b16 %v1281
      %v1999 = vunpack.c.h.b16 %v1281
      %v2000 = vunpack.c.l.b16 %v1282
      %v2001 = vunpack.c.h.b16 %v1282
      %v2002 = vunpack.c.l.b16 %v1283
      %v2003 = vunpack.c.h.b16 %v1283
      %v2004 = vunpack.c.l.b16 %v1284
      %v2005 = vunpack.c.h.b16 %v1284
      %v2006 = vunpack.c.l.b16 %v1285
      %v2007 = vunpack.c.h.b16 %v1285
      %v2008 = vunpack.c.l.b16 %v1286
      %v2009 = vunpack.c.h.b16 %v1286
      %v2010 = vunpack.c.l.b16 %v1287
      %v2011 = vunpack.c.h.b16 %v1287
      %v2012 = vunpack.c.l.b16 %v1288
      %v2013 = vunpack.c.h.b16 %v1288
      %v2014 = vunpack.c.l.b16 %v1289
      %v2015 = vunpack.c.h.b16 %v1289
      %v2016 = vunpack.c.l.b16 %v1290
      %v2017 = vunpack.c.h.b16 %v1290
      %v2018 = vunpack.c.l.b16 %v1291
      %v2019 = vunpack.c.h.b16 %v1291
      %v2020 = vunpack.c.l.b16 %v1292
      %v2021 = vunpack.c.h.b16 %v1292
      %v2022 = vunpack.c.l.b16 %v1293
      %v2023 = vunpack.c.h.b16 %v1293
      %v2024 = vunpack.c.l.b16 %v1294
      %v2025 = vunpack.c.h.b16 %v1294
      %v2026 = vunpack.c.l.b16 %v1295
      %v2027 = vunpack.c.h.b16 %v1295
      %v2028 = vunpack.c.l.b16 %v1296
      %v2029 = vunpack.c.h.b16 %v1296
      %v2030 = vunpack.c.l.b16 %v1297
      %v2031 = vunpack.c.h.b16 %v1297
      %v2032 = vunpack.c.l.b16 %v1298
      %v2033 = vunpack.c.h.b16 %v1298
      %v2034 = vunpack.c.l.b16 %v1299
      %v2035 = vunpack.c.h.b16 %v1299
      %v2036 = vunpack.c.l.b16 %v1300
      %v2037 = vunpack.c.h.b16 %v1300
      %v2038 = vunpack.c.l.b16 %v1301
      %v2039 = vunpack.c.h.b16 %v1301
      %v2040 = vunpack.c.l.b16 %v1302
      %v2041 = vunpack.c.h.b16 %v1302
      %v2042 = vunpack.c.l.b16 %v1303
      %v2043 = vunpack.c.h.b16 %v1303
      %v2044 = vunpack.c.l.b16 %v1304
      %v2045 = vunpack.c.h.b16 %v1304
      %v2046 = vunpack.c.l.b16 %v1305
      %v2047 = vunpack.c.h.b16 %v1305
      %v2048 = vunpack.c.l.b16 %v1306
      %v2049 = vunpack.c.h.b16 %v1306
      %v2050 = vunpack.c.l.b16 %v1307
      %v2051 = vunpack.c.h.b16 %v1307
      %v2052 = vunpack.c.l.b16 %v1308
      %v2053 = vunpack.c.h.b16 %v1308
      %v2054 = vunpack.c.l.b16 %v1309
      %v2055 = vunpack.c.h.b16 %v1309
      %v2056 = vunpack.c.l.b16 %v1310
      %v2057 = vunpack.c.h.b16 %v1310
      %v2058 = vunpack.c.l.b16 %v1311
      %v2059 = vunpack.c.h.b16 %v1311
      %v2060 = vunpack.c.l.b16 %v1312
      %v2061 = vunpack.c.h.b16 %v1312
      %v2062 = vunpack.c.l.b16 %v1313
      %v2063 = vunpack.c.h.b16 %v1313
      %v2064 = vunpack.c.l.b16 %v1314
      %v2065 = vunpack.c.h.b16 %v1314
      %v2066 = vunpack.c.l.b16 %v1315
      %v2067 = vunpack.c.h.b16 %v1315
      %v2068 = vunpack.c.l.b16 %v1316
      %v2069 = vunpack.c.h.b16 %v1316
      %v2070 = vunpack.c.l.b16 %v1317
      %v2071 = vunpack.c.h.b16 %v1317
      %v2072 = vunpack.c.l.b16 %v1318
      %v2073 = vunpack.c.h.b16 %v1318
      %v2074 = vunpack.c.l.b16 %v1319
      %v2075 = vunpack.c.h.b16 %v1319
      %v2076 = vunpack.c.l.b16 %v1320
      %v2077 = vunpack.c.h.b16 %v1320
      %v2078 = vunpack.c.l.b16 %v1321
      %v2079 = vunpack.c.h.b16 %v1321
      %v2080 = vunpack.c.l.b16 %v1322
      %v2081 = vunpack.c.h.b16 %v1322
      %v2082 = vunpack.c.l.b16 %v1323
      %v2083 = vunpack.c.h.b16 %v1323
      %v2084 = vunpack.c.l.b16 %v1324
      %v2085 = vunpack.c.h.b16 %v1324
      %v2086 = vunpack.c.l.b16 %v1325
      %v2087 = vunpack.c.h.b16 %v1325
      %v2088 = vunpack.c.l.b16 %v1326
      %v2089 = vunpack.c.h.b16 %v1326
      %v2090 = vunpack.c.l.b16 %v1327
      %v2091 = vunpack.c.h.b16 %v1327
      %v2092 = vunpack.c.l.b16 %v1328
      %v2093 = vunpack.c.h.b16 %v1328
      %v2094 = vunpack.c.l.b16 %v1329
      %v2095 = vunpack.c.h.b16 %v1329
      %v2096 = vunpack.c.l.b16 %v1330
      %v2097 = vunpack.c.h.b16 %v1330
      %v2098 = vunpack.c.l.b16 %v1331
      %v2099 = vunpack.c.h.b16 %v1331
      %v2100 = vpack.c.b16 %v1604, %v1588
      %v2101 = vpack.c.b16 %v1605, %v1589
      %v2102 = vpack.c.b16 %v1606, %v1590
      %v2103 = vpack.c.b16 %v1607, %v1591
      %v2104 = vpack.c.b16 %v1608, %v1592
      %v2105 = vpack.c.b16 %v1609, %v1593
      %v2106 = vpack.c.b16 %v1610, %v1594
      %v2107 = vpack.c.b16 %v1611, %v1595
      %v2108 = vpack.c.b16 %v1612, %v1596
      %v2109 = vpack.c.b16 %v1613, %v1597
      %v2110 = vpack.c.b16 %v1614, %v1598
      %v2111 = vpack.c.b16 %v1615, %v1599
      %v2112 = vpack.c.b16 %v1616, %v1600
      %v2113 = vpack.c.b16 %v1617, %v1601
      %v2114 = vpack.c.b16 %v1618, %v1602
      %v2115 = vpack.c.b16 %v1619, %v1603
      %v2116 = vpack.c.b16 %v1636, %v1620
      %v2117 = vpack.c.b16 %v1637, %v1621
      %v2118 = vpack.c.b16 %v1638, %v1622
      %v2119 = vpack.c.b16 %v1639, %v1623
      %v2120 = vpack.c.b16 %v1640, %v1624
      %v2121 = vpack.c.b16 %v1641, %v1625
      %v2122 = vpack.c.b16 %v1642, %v1626
      %v2123 = vpack.c.b16 %v1643, %v1627
      %v2124 = vpack.c.b16 %v1644, %v1628
      %v2125 = vpack.c.b16 %v1645, %v1629
      %v2126 = vpack.c.b16 %v1646, %v1630
      %v2127 = vpack.c.b16 %v1647, %v1631
      %v2128 = vpack.c.b16 %v1648, %v1632
      %v2129 = vpack.c.b16 %v1649, %v1633
      %v2130 = vpack.c.b16 %v1650, %v1634
      %v2131 = vpack.c.b16 %v1651, %v1635
      %v2132 = vpack.c.b16 %v1668, %v1652
      %v2133 = vpack.c.b16 %v1669, %v1653
      %v2134 = vpack.c.b16 %v1670, %v1654
      %v2135 = vpack.c.b16 %v1671, %v1655
      %v2136 = vpack.c.b16 %v1672, %v1656
      %v2137 = vpack.c.b16 %v1673, %v1657
      %v2138 = vpack.c.b16 %v1674, %v1658
      %v2139 = vpack.c.b16 %v1675, %v1659
      %v2140 = vpack.c.b16 %v1676, %v1660
      %v2141 = vpack.c.b16 %v1677, %v1661
      %v2142 = vpack.c.b16 %v1678, %v1662
      %v2143 = vpack.c.b16 %v1679, %v1663
      %v2144 = vpack.c.b16 %v1680, %v1664
      %v2145 = vpack.c.b16 %v1681, %v1665
      %v2146 = vpack.c.b16 %v1682, %v1666
      %v2147 = vpack.c.b16 %v1683, %v1667
      %v2148 = vpack.c.b16 %v1700, %v1684
      %v2149 = vpack.c.b16 %v1701, %v1685
      %v2150 = vpack.c.b16 %v1702, %v1686
      %v2151 = vpack.c.b16 %v1703, %v1687
      %v2152 = vpack.c.b16 %v1704, %v1688
      %v2153 = vpack.c.b16 %v1705, %v1689
      %v2154 = vpack.c.b16 %v1706, %v1690
      %v2155 = vpack.c.b16 %v1707, %v1691
      %v2156 = vpack.c.b16 %v1708, %v1692
      %v2157 = vpack.c.b16 %v1709, %v1693
      %v2158 = vpack.c.b16 %v1710, %v1694
      %v2159 = vpack.c.b16 %v1711, %v1695
      %v2160 = vpack.c.b16 %v1712, %v1696
      %v2161 = vpack.c.b16 %v1713, %v1697
      %v2162 = vpack.c.b16 %v1714, %v1698
      %v2163 = vpack.c.b16 %v1715, %v1699
      %v2164 = vpack.c.b16 %v1732, %v1716
      %v2165 = vpack.c.b16 %v1733, %v1717
      %v2166 = vpack.c.b16 %v1734, %v1718
      %v2167 = vpack.c.b16 %v1735, %v1719
      %v2168 = vpack.c.b16 %v1736, %v1720
      %v2169 = vpack.c.b16 %v1737, %v1721
      %v2170 = vpack.c.b16 %v1738, %v1722
      %v2171 = vpack.c.b16 %v1739, %v1723
      %v2172 = vpack.c.b16 %v1740, %v1724
      %v2173 = vpack.c.b16 %v1741, %v1725
      %v2174 = vpack.c.b16 %v1742, %v1726
      %v2175 = vpack.c.b16 %v1743, %v1727
      %v2176 = vpack.c.b16 %v1744, %v1728
      %v2177 = vpack.c.b16 %v1745, %v1729
      %v2178 = vpack.c.b16 %v1746, %v1730
      %v2179 = vpack.c.b16 %v1747, %v1731
      %v2180 = vpack.c.b16 %v1764, %v1748
      %v2181 = vpack.c.b16 %v1765, %v1749
      %v2182 = vpack.c.b16 %v1766, %v1750
      %v2183 = vpack.c.b16 %v1767, %v1751
      %v2184 = vpack.c.b16 %v1768, %v1752
      %v2185 = vpack.c.b16 %v1769, %v1753
      %v2186 = vpack.c.b16 %v1770, %v1754
      %v2187 = vpack.c.b16 %v1771, %v1755
      %v2188 = vpack.c.b16 %v1772, %v1756
      %v2189 = vpack.c.b16 %v1773, %v1757
      %v2190 = vpack.c.b16 %v1774, %v1758
      %v2191 = vpack.c.b16 %v1775, %v1759
      %v2192 = vpack.c.b16 %v1776, %v1760
      %v2193 = vpack.c.b16 %v1777, %v1761
      %v2194 = vpack.c.b16 %v1778, %v1762
      %v2195 = vpack.c.b16 %v1779, %v1763
      %v2196 = vpack.c.b16 %v1796, %v1780
      %v2197 = vpack.c.b16 %v1797, %v1781
      %v2198 = vpack.c.b16 %v1798, %v1782
      %v2199 = vpack.c.b16 %v1799, %v1783
      %v2200 = vpack.c.b16 %v1800, %v1784
      %v2201 = vpack.c.b16 %v1801, %v1785
      %v2202 = vpack.c.b16 %v1802, %v1786
      %v2203 = vpack.c.b16 %v1803, %v1787
      %v2204 = vpack.c.b16 %v1804, %v1788
      %v2205 = vpack.c.b16 %v1805, %v1789
      %v2206 = vpack.c.b16 %v1806, %v1790
      %v2207 = vpack.c.b16 %v1807, %v1791
      %v2208 = vpack.c.b16 %v1808, %v1792
      %v2209 = vpack.c.b16 %v1809, %v1793
      %v2210 = vpack.c.b16 %v1810, %v1794
      %v2211 = vpack.c.b16 %v1811, %v1795
      %v2212 = vpack.c.b16 %v1828, %v1812
      %v2213 = vpack.c.b16 %v1829, %v1813
      %v2214 = vpack.c.b16 %v1830, %v1814
      %v2215 = vpack.c.b16 %v1831, %v1815
      %v2216 = vpack.c.b16 %v1832, %v1816
      %v2217 = vpack.c.b16 %v1833, %v1817
      %v2218 = vpack.c.b16 %v1834, %v1818
      %v2219 = vpack.c.b16 %v1835, %v1819
      %v2220 = vpack.c.b16 %v1836, %v1820
      %v2221 = vpack.c.b16 %v1837, %v1821
      %v2222 = vpack.c.b16 %v1838, %v1822
      %v2223 = vpack.c.b16 %v1839, %v1823
      %v2224 = vpack.c.b16 %v1840, %v1824
      %v2225 = vpack.c.b16 %v1841, %v1825
      %v2226 = vpack.c.b16 %v1842, %v1826
      %v2227 = vpack.c.b16 %v1843, %v1827
      %v2228 = vpack.c.b16 %v1860, %v1844
      %v2229 = vpack.c.b16 %v1861, %v1845
      %v2230 = vpack.c.b16 %v1862, %v1846
      %v2231 = vpack.c.b16 %v1863, %v1847
      %v2232 = vpack.c.b16 %v1864, %v1848
      %v2233 = vpack.c.b16 %v1865, %v1849
      %v2234 = vpack.c.b16 %v1866, %v1850
      %v2235 = vpack.c.b16 %v1867, %v1851
      %v2236 = vpack.c.b16 %v1868, %v1852
      %v2237 = vpack.c.b16 %v1869, %v1853
      %v2238 = vpack.c.b16 %v1870, %v1854
      %v2239 = vpack.c.b16 %v1871, %v1855
      %v2240 = vpack.c.b16 %v1872, %v1856
      %v2241 = vpack.c.b16 %v1873, %v1857
      %v2242 = vpack.c.b16 %v1874, %v1858
      %v2243 = vpack.c.b16 %v1875, %v1859
      %v2244 = vpack.c.b16 %v1892, %v1876
      %v2245 = vpack.c.b16 %v1893, %v1877
      %v2246 = vpack.c.b16 %v1894, %v1878
      %v2247 = vpack.c.b16 %v1895, %v1879
      %v2248 = vpack.c.b16 %v1896, %v1880
      %v2249 = vpack.c.b16 %v1897, %v1881
      %v2250 = vpack.c.b16 %v1898, %v1882
      %v2251 = vpack.c.b16 %v1899, %v1883
      %v2252 = vpack.c.b16 %v1900, %v1884
      %v2253 = vpack.c.b16 %v1901, %v1885
      %v2254 = vpack.c.b16 %v1902, %v1886
      %v2255 = vpack.c.b16 %v1903, %v1887
      %v2256 = vpack.c.b16 %v1904, %v1888
      %v2257 = vpack.c.b16 %v1905, %v1889
      %v2258 = vpack.c.b16 %v1906, %v1890
      %v2259 = vpack.c.b16 %v1907, %v1891
      %v2260 = vpack.c.b16 %v1924, %v1908
      %v2261 = vpack.c.b16 %v1925, %v1909
      %v2262 = vpack.c.b16 %v1926, %v1910
      %v2263 = vpack.c.b16 %v1927, %v1911
      %v2264 = vpack.c.b16 %v1928, %v1912
      %v2265 = vpack.c.b16 %v1929, %v1913
      %v2266 = vpack.c.b16 %v1930, %v1914
      %v2267 = vpack.c.b16 %v1931, %v1915
      %v2268 = vpack.c.b16 %v1932, %v1916
      %v2269 = vpack.c.b16 %v1933, %v1917
      %v2270 = vpack.c.b16 %v1934, %v1918
      %v2271 = vpack.c.b16 %v1935, %v1919
      %v2272 = vpack.c.b16 %v1936, %v1920
      %v2273 = vpack.c.b16 %v1937, %v1921
      %v2274 = vpack.c.b16 %v1938, %v1922
      %v2275 = vpack.c.b16 %v1939, %v1923
      %v2276 = vpack.c.b16 %v1956, %v1940
      %v2277 = vpack.c.b16 %v1957, %v1941
      %v2278 = vpack.c.b16 %v1958, %v1942
      %v2279 = vpack.c.b16 %v1959, %v1943
      %v2280 = vpack.c.b16 %v1960, %v1944
      %v2281 = vpack.c.b16 %v1961, %v1945
      %v2282 = vpack.c.b16 %v1962, %v1946
      %v2283 = vpack.c.b16 %v1963, %v1947
      %v2284 = vpack.c.b16 %v1964, %v1948
      %v2285 = vpack.c.b16 %v1965, %v1949
      %v2286 = vpack.c.b16 %v1966, %v1950
      %v2287 = vpack.c.b16 %v1967, %v1951
      %v2288 = vpack.c.b16 %v1968, %v1952
      %v2289 = vpack.c.b16 %v1969, %v1953
      %v2290 = vpack.c.b16 %v1970, %v1954
      %v2291 = vpack.c.b16 %v1971, %v1955
      %v2292 = vpack.c.b16 %v1988, %v1972
      %v2293 = vpack.c.b16 %v1989, %v1973
      %v2294 = vpack.c.b16 %v1990, %v1974
      %v2295 = vpack.c.b16 %v1991, %v1975
      %v2296 = vpack.c.b16 %v1992, %v1976
      %v2297 = vpack.c.b16 %v1993, %v1977
      %v2298 = vpack.c.b16 %v1994, %v1978
      %v2299 = vpack.c.b16 %v1995, %v1979
      %v2300 = vpack.c.b16 %v1996, %v1980
      %v2301 = vpack.c.b16 %v1997, %v1981
      %v2302 = vpack.c.b16 %v1998, %v1982
      %v2303 = vpack.c.b16 %v1999, %v1983
      %v2304 = vpack.c.b16 %v2000, %v1984
      %v2305 = vpack.c.b16 %v2001, %v1985
      %v2306 = vpack.c.b16 %v2002, %v1986
      %v2307 = vpack.c.b16 %v2003, %v1987
      %v2308 = vpack.c.b16 %v2020, %v2004
      %v2309 = vpack.c.b16 %v2021, %v2005
      %v2310 = vpack.c.b16 %v2022, %v2006
      %v2311 = vpack.c.b16 %v2023, %v2007
      %v2312 = vpack.c.b16 %v2024, %v2008
      %v2313 = vpack.c.b16 %v2025, %v2009
      %v2314 = vpack.c.b16 %v2026, %v2010
      %v2315 = vpack.c.b16 %v2027, %v2011
      %v2316 = vpack.c.b16 %v2028, %v2012
      %v2317 = vpack.c.b16 %v2029, %v2013
      %v2318 = vpack.c.b16 %v2030, %v2014
      %v2319 = vpack.c.b16 %v2031, %v2015
      %v2320 = vpack.c.b16 %v2032, %v2016
      %v2321 = vpack.c.b16 %v2033, %v2017
      %v2322 = vpack.c.b16 %v2034, %v2018
      %v2323 = vpack.c.b16 %v2035, %v2019
      %v2324 = vpack.c.b16 %v2052, %v2036
      %v2325 = vpack.c.b16 %v2053, %v2037
      %v2326 = vpack.c.b16 %v2054, %v2038
      %v2327 = vpack.c.b16 %v2055, %v2039
      %v2328 = vpack.c.b16 %v2056, %v2040
      %v2329 = vpack.c.b16 %v2057, %v2041
      %v2330 = vpack.c.b16 %v2058, %v2042
      %v2331 = vpack.c.b16 %v2059, %v2043
      %v2332 = vpack.c.b16 %v2060, %v2044
      %v2333 = vpack.c.b16 %v2061, %v2045
      %v2334 = vpack.c.b16 %v2062, %v2046
      %v2335 = vpack.c.b16 %v2063, %v2047
      %v2336 = vpack.c.b16 %v2064, %v2048
      %v2337 = vpack.c.b16 %v2065, %v2049
      %v2338 = vpack.c.b16 %v2066, %v2050
      %v2339 = vpack.c.b16 %v2067, %v2051
      %v2340 = vpack.c.b16 %v2084, %v2068
      %v2341 = vpack.c.b16 %v2085, %v2069
      %v2342 = vpack.c.b16 %v2086, %v2070
      %v2343 = vpack.c.b16 %v2087, %v2071
      %v2344 = vpack.c.b16 %v2088, %v2072
      %v2345 = vpack.c.b16 %v2089, %v2073
      %v2346 = vpack.c.b16 %v2090, %v2074
      %v2347 = vpack.c.b16 %v2091, %v2075
      %v2348 = vpack.c.b16 %v2092, %v2076
      %v2349 = vpack.c.b16 %v2093, %v2077
      %v2350 = vpack.c.b16 %v2094, %v2078
      %v2351 = vpack.c.b16 %v2095, %v2079
      %v2352 = vpack.c.b16 %v2096, %v2080
      %v2353 = vpack.c.b16 %v2097, %v2081
      %v2354 = vpack.c.b16 %v2098, %v2082
      %v2355 = vpack.c.b16 %v2099, %v2083
      %2612 = vmatpush.bf16.msra.mxu0 %v2212
      %2613 = vmatpush.bf16.msra.mxu0 %v2196
      %2614 = vmatpush.bf16.msra.mxu0 %v2180
      %2615 = vmatpush.bf16.msra.mxu0 %v2164
      %2616 = vmatpush.bf16.msra.mxu0 %v2148
      %2617 = vmatpush.bf16.msra.mxu0 %v2132
      %2618 = vmatpush.bf16.msra.mxu0 %v2116
      %2619 = vmatpush.bf16.msra.mxu0 %v2100
      %2620 = vmatmul.bf16.gmra.mxu0 %v1074
      %v2621 = vpop.f32.mrf.mxu0
      %v2622 = vadd.f32 0.0, %v2621
      %v2623 = vpop.f32.mrf.mxu0
      %2624 = vdwg.mxu0
      %2625 = vmatpush.bf16.msra.mxu0 %v2340
      %2626 = vmatpush.bf16.msra.mxu0 %v2324
      %2627 = vmatpush.bf16.msra.mxu0 %v2308
      %2628 = vmatpush.bf16.msra.mxu0 %v2292
      %2629 = vmatpush.bf16.msra.mxu0 %v2276
      %2630 = vmatpush.bf16.msra.mxu0 %v2260
      %2631 = vmatpush.bf16.msra.mxu0 %v2244
      %2632 = vmatpush.bf16.msra.mxu0 %v2228
      %2633 = vmatmul.bf16.gmra.mxu0 %v1075
      %v2634 = vpop.f32.mrf.mxu0
      %v2635 = vadd.f32 %v2622, %v2634
      %v2636 = vpop.f32.mrf.mxu0
      %2637 = vdwg.mxu0
      %2638 = vmatpush.bf16.msra.mxu0 %v2213
      %2639 = vmatpush.bf16.msra.mxu0 %v2197
      %2640 = vmatpush.bf16.msra.mxu0 %v2181
      %2641 = vmatpush.bf16.msra.mxu0 %v2165
      %2642 = vmatpush.bf16.msra.mxu0 %v2149
      %2643 = vmatpush.bf16.msra.mxu0 %v2133
      %2644 = vmatpush.bf16.msra.mxu0 %v2117
      %2645 = vmatpush.bf16.msra.mxu0 %v2101
      %2646 = vmatmul.bf16.gmra.mxu0 %v1074
      %v2647 = vpop.f32.mrf.mxu0
      %v2648 = vadd.f32 0.0, %v2647
      %v2649 = vpop.f32.mrf.mxu0
      %2650 = vdwg.mxu0
      %2651 = vmatpush.bf16.msra.mxu0 %v2341
      %2652 = vmatpush.bf16.msra.mxu0 %v2325
      %2653 = vmatpush.bf16.msra.mxu0 %v2309
      %2654 = vmatpush.bf16.msra.mxu0 %v2293
      %2655 = vmatpush.bf16.msra.mxu0 %v2277
      %2656 = vmatpush.bf16.msra.mxu0 %v2261
      %2657 = vmatpush.bf16.msra.mxu0 %v2245
      %2658 = vmatpush.bf16.msra.mxu0 %v2229
      %2659 = vmatmul.bf16.gmra.mxu0 %v1075
      %v2660 = vpop.f32.mrf.mxu0
      %v2661 = vadd.f32 %v2648, %v2660
      %v2662 = vpop.f32.mrf.mxu0
      %2663 = vdwg.mxu0
      %2664 = vmatpush.bf16.msra.mxu0 %v2214
      %2665 = vmatpush.bf16.msra.mxu0 %v2198
      %2666 = vmatpush.bf16.msra.mxu0 %v2182
      %2667 = vmatpush.bf16.msra.mxu0 %v2166
      %2668 = vmatpush.bf16.msra.mxu0 %v2150
      %2669 = vmatpush.bf16.msra.mxu0 %v2134
      %2670 = vmatpush.bf16.msra.mxu0 %v2118
      %2671 = vmatpush.bf16.msra.mxu0 %v2102
      %2672 = vmatmul.bf16.gmra.mxu0 %v1074
      %v2673 = vpop.f32.mrf.mxu0
      %v2674 = vadd.f32 0.0, %v2673
      %v2675 = vpop.f32.mrf.mxu0
      %2676 = vdwg.mxu0
      %2677 = vmatpush.bf16.msra.mxu0 %v2342
      %2678 = vmatpush.bf16.msra.mxu0 %v2326
      %2679 = vmatpush.bf16.msra.mxu0 %v2310
      %2680 = vmatpush.bf16.msra.mxu0 %v2294
      %2681 = vmatpush.bf16.msra.mxu0 %v2278
      %2682 = vmatpush.bf16.msra.mxu0 %v2262
      %2683 = vmatpush.bf16.msra.mxu0 %v2246
      %2684 = vmatpush.bf16.msra.mxu0 %v2230
      %2685 = vmatmul.bf16.gmra.mxu0 %v1075
      %v2686 = vpop.f32.mrf.mxu0
      %v2687 = vadd.f32 %v2674, %v2686
      %v2688 = vpop.f32.mrf.mxu0
      %2689 = vdwg.mxu0
      %2690 = vmatpush.bf16.msra.mxu0 %v2215
      %2691 = vmatpush.bf16.msra.mxu0 %v2199
      %2692 = vmatpush.bf16.msra.mxu0 %v2183
      %2693 = vmatpush.bf16.msra.mxu0 %v2167
      %2694 = vmatpush.bf16.msra.mxu0 %v2151
      %2695 = vmatpush.bf16.msra.mxu0 %v2135
      %2696 = vmatpush.bf16.msra.mxu0 %v2119
      %2697 = vmatpush.bf16.msra.mxu0 %v2103
      %2698 = vmatmul.bf16.gmra.mxu0 %v1074
      %v2699 = vpop.f32.mrf.mxu0
      %v2700 = vadd.f32 0.0, %v2699
      %v2701 = vpop.f32.mrf.mxu0
      %2702 = vdwg.mxu0
      %2703 = vmatpush.bf16.msra.mxu0 %v2343
      %2704 = vmatpush.bf16.msra.mxu0 %v2327
      %2705 = vmatpush.bf16.msra.mxu0 %v2311
      %2706 = vmatpush.bf16.msra.mxu0 %v2295
      %2707 = vmatpush.bf16.msra.mxu0 %v2279
      %2708 = vmatpush.bf16.msra.mxu0 %v2263
      %2709 = vmatpush.bf16.msra.mxu0 %v2247
      %2710 = vmatpush.bf16.msra.mxu0 %v2231
      %2711 = vmatmul.bf16.gmra.mxu0 %v1075
      %v2712 = vpop.f32.mrf.mxu0
      %v2713 = vadd.f32 %v2700, %v2712
      %v2714 = vpop.f32.mrf.mxu0
      %2715 = vdwg.mxu0
      %2716 = vmatpush.bf16.msra.mxu0 %v2216
      %2717 = vmatpush.bf16.msra.mxu0 %v2200
      %2718 = vmatpush.bf16.msra.mxu0 %v2184
      %2719 = vmatpush.bf16.msra.mxu0 %v2168
      %2720 = vmatpush.bf16.msra.mxu0 %v2152
      %2721 = vmatpush.bf16.msra.mxu0 %v2136
      %2722 = vmatpush.bf16.msra.mxu0 %v2120
      %2723 = vmatpush.bf16.msra.mxu0 %v2104
      %2724 = vmatmul.bf16.gmra.mxu0 %v1074
      %v2725 = vpop.f32.mrf.mxu0
      %v2726 = vadd.f32 0.0, %v2725
      %v2727 = vpop.f32.mrf.mxu0
      %2728 = vdwg.mxu0
      %2729 = vmatpush.bf16.msra.mxu0 %v2344
      %2730 = vmatpush.bf16.msra.mxu0 %v2328
      %2731 = vmatpush.bf16.msra.mxu0 %v2312
      %2732 = vmatpush.bf16.msra.mxu0 %v2296
      %2733 = vmatpush.bf16.msra.mxu0 %v2280
      %2734 = vmatpush.bf16.msra.mxu0 %v2264
      %2735 = vmatpush.bf16.msra.mxu0 %v2248
      %2736 = vmatpush.bf16.msra.mxu0 %v2232
      %2737 = vmatmul.bf16.gmra.mxu0 %v1075
      %v2738 = vpop.f32.mrf.mxu0
      %v2739 = vadd.f32 %v2726, %v2738
      %v2740 = vpop.f32.mrf.mxu0
      %2741 = vdwg.mxu0
      %2742 = vmatpush.bf16.msra.mxu0 %v2217
      %2743 = vmatpush.bf16.msra.mxu0 %v2201
      %2744 = vmatpush.bf16.msra.mxu0 %v2185
      %2745 = vmatpush.bf16.msra.mxu0 %v2169
      %2746 = vmatpush.bf16.msra.mxu0 %v2153
      %2747 = vmatpush.bf16.msra.mxu0 %v2137
      %2748 = vmatpush.bf16.msra.mxu0 %v2121
      %2749 = vmatpush.bf16.msra.mxu0 %v2105
      %2750 = vmatmul.bf16.gmra.mxu0 %v1074
      %v2751 = vpop.f32.mrf.mxu0
      %v2752 = vadd.f32 0.0, %v2751
      %v2753 = vpop.f32.mrf.mxu0
      %2754 = vdwg.mxu0
      %2755 = vmatpush.bf16.msra.mxu0 %v2345
      %2756 = vmatpush.bf16.msra.mxu0 %v2329
      %2757 = vmatpush.bf16.msra.mxu0 %v2313
      %2758 = vmatpush.bf16.msra.mxu0 %v2297
      %2759 = vmatpush.bf16.msra.mxu0 %v2281
      %2760 = vmatpush.bf16.msra.mxu0 %v2265
      %2761 = vmatpush.bf16.msra.mxu0 %v2249
      %2762 = vmatpush.bf16.msra.mxu0 %v2233
      %2763 = vmatmul.bf16.gmra.mxu0 %v1075
      %v2764 = vpop.f32.mrf.mxu0
      %v2765 = vadd.f32 %v2752, %v2764
      %v2766 = vpop.f32.mrf.mxu0
      %2767 = vdwg.mxu0
      %2768 = vmatpush.bf16.msra.mxu0 %v2218
      %2769 = vmatpush.bf16.msra.mxu0 %v2202
      %2770 = vmatpush.bf16.msra.mxu0 %v2186
      %2771 = vmatpush.bf16.msra.mxu0 %v2170
      %2772 = vmatpush.bf16.msra.mxu0 %v2154
      %2773 = vmatpush.bf16.msra.mxu0 %v2138
      %2774 = vmatpush.bf16.msra.mxu0 %v2122
      %2775 = vmatpush.bf16.msra.mxu0 %v2106
      %2776 = vmatmul.bf16.gmra.mxu0 %v1074
      %v2777 = vpop.f32.mrf.mxu0
      %v2778 = vadd.f32 0.0, %v2777
      %v2779 = vpop.f32.mrf.mxu0
      %2780 = vdwg.mxu0
      %2781 = vmatpush.bf16.msra.mxu0 %v2346
      %2782 = vmatpush.bf16.msra.mxu0 %v2330
      %2783 = vmatpush.bf16.msra.mxu0 %v2314
      %2784 = vmatpush.bf16.msra.mxu0 %v2298
      %2785 = vmatpush.bf16.msra.mxu0 %v2282
      %2786 = vmatpush.bf16.msra.mxu0 %v2266
      %2787 = vmatpush.bf16.msra.mxu0 %v2250
      %2788 = vmatpush.bf16.msra.mxu0 %v2234
      %2789 = vmatmul.bf16.gmra.mxu0 %v1075
      %v2790 = vpop.f32.mrf.mxu0
      %v2791 = vadd.f32 %v2778, %v2790
      %v2792 = vpop.f32.mrf.mxu0
      %2793 = vdwg.mxu0
      %2794 = vmatpush.bf16.msra.mxu0 %v2219
      %2795 = vmatpush.bf16.msra.mxu0 %v2203
      %2796 = vmatpush.bf16.msra.mxu0 %v2187
      %2797 = vmatpush.bf16.msra.mxu0 %v2171
      %2798 = vmatpush.bf16.msra.mxu0 %v2155
      %2799 = vmatpush.bf16.msra.mxu0 %v2139
      %2800 = vmatpush.bf16.msra.mxu0 %v2123
      %2801 = vmatpush.bf16.msra.mxu0 %v2107
      %2802 = vmatmul.bf16.gmra.mxu0 %v1074
      %v2803 = vpop.f32.mrf.mxu0
      %v2804 = vadd.f32 0.0, %v2803
      %v2805 = vpop.f32.mrf.mxu0
      %2806 = vdwg.mxu0
      %2807 = vmatpush.bf16.msra.mxu0 %v2347
      %2808 = vmatpush.bf16.msra.mxu0 %v2331
      %2809 = vmatpush.bf16.msra.mxu0 %v2315
      %2810 = vmatpush.bf16.msra.mxu0 %v2299
      %2811 = vmatpush.bf16.msra.mxu0 %v2283
      %2812 = vmatpush.bf16.msra.mxu0 %v2267
      %2813 = vmatpush.bf16.msra.mxu0 %v2251
      %2814 = vmatpush.bf16.msra.mxu0 %v2235
      %2815 = vmatmul.bf16.gmra.mxu0 %v1075
      %v2816 = vpop.f32.mrf.mxu0
      %v2817 = vadd.f32 %v2804, %v2816
      %v2818 = vpop.f32.mrf.mxu0
      %2819 = vdwg.mxu0
      %2820 = vmatpush.bf16.msra.mxu0 %v2220
      %2821 = vmatpush.bf16.msra.mxu0 %v2204
      %2822 = vmatpush.bf16.msra.mxu0 %v2188
      %2823 = vmatpush.bf16.msra.mxu0 %v2172
      %2824 = vmatpush.bf16.msra.mxu0 %v2156
      %2825 = vmatpush.bf16.msra.mxu0 %v2140
      %2826 = vmatpush.bf16.msra.mxu0 %v2124
      %2827 = vmatpush.bf16.msra.mxu0 %v2108
      %2828 = vmatmul.bf16.gmra.mxu0 %v1074
      %v2829 = vpop.f32.mrf.mxu0
      %v2830 = vpop.f32.mrf.mxu0
      %v2831 = vadd.f32 0.0, %v2830
      %2832 = vdwg.mxu0
      %2833 = vmatpush.bf16.msra.mxu0 %v2348
      %2834 = vmatpush.bf16.msra.mxu0 %v2332
      %2835 = vmatpush.bf16.msra.mxu0 %v2316
      %2836 = vmatpush.bf16.msra.mxu0 %v2300
      %2837 = vmatpush.bf16.msra.mxu0 %v2284
      %2838 = vmatpush.bf16.msra.mxu0 %v2268
      %2839 = vmatpush.bf16.msra.mxu0 %v2252
      %2840 = vmatpush.bf16.msra.mxu0 %v2236
      %2841 = vmatmul.bf16.gmra.mxu0 %v1075
      %v2842 = vpop.f32.mrf.mxu0
      %v2843 = vpop.f32.mrf.mxu0
      %v2844 = vadd.f32 %v2831, %v2843
      %2845 = vdwg.mxu0
      %2846 = vmatpush.bf16.msra.mxu0 %v2221
      %2847 = vmatpush.bf16.msra.mxu0 %v2205
      %2848 = vmatpush.bf16.msra.mxu0 %v2189
      %2849 = vmatpush.bf16.msra.mxu0 %v2173
      %2850 = vmatpush.bf16.msra.mxu0 %v2157
      %2851 = vmatpush.bf16.msra.mxu0 %v2141
      %2852 = vmatpush.bf16.msra.mxu0 %v2125
      %2853 = vmatpush.bf16.msra.mxu0 %v2109
      %2854 = vmatmul.bf16.gmra.mxu0 %v1074
      %v2855 = vpop.f32.mrf.mxu0
      %v2856 = vpop.f32.mrf.mxu0
      %v2857 = vadd.f32 0.0, %v2856
      %2858 = vdwg.mxu0
      %2859 = vmatpush.bf16.msra.mxu0 %v2349
      %2860 = vmatpush.bf16.msra.mxu0 %v2333
      %2861 = vmatpush.bf16.msra.mxu0 %v2317
      %2862 = vmatpush.bf16.msra.mxu0 %v2301
      %2863 = vmatpush.bf16.msra.mxu0 %v2285
      %2864 = vmatpush.bf16.msra.mxu0 %v2269
      %2865 = vmatpush.bf16.msra.mxu0 %v2253
      %2866 = vmatpush.bf16.msra.mxu0 %v2237
      %2867 = vmatmul.bf16.gmra.mxu0 %v1075
      %v2868 = vpop.f32.mrf.mxu0
      %v2869 = vpop.f32.mrf.mxu0
      %v2870 = vadd.f32 %v2857, %v2869
      %2871 = vdwg.mxu0
      %2872 = vmatpush.bf16.msra.mxu0 %v2222
      %2873 = vmatpush.bf16.msra.mxu0 %v2206
      %2874 = vmatpush.bf16.msra.mxu0 %v2190
      %2875 = vmatpush.bf16.msra.mxu0 %v2174
      %2876 = vmatpush.bf16.msra.mxu0 %v2158
      %2877 = vmatpush.bf16.msra.mxu0 %v2142
      %2878 = vmatpush.bf16.msra.mxu0 %v2126
      %2879 = vmatpush.bf16.msra.mxu0 %v2110
      %2880 = vmatmul.bf16.gmra.mxu0 %v1074
      %v2881 = vpop.f32.mrf.mxu0
      %v2882 = vpop.f32.mrf.mxu0
      %v2883 = vadd.f32 0.0, %v2882
      %2884 = vdwg.mxu0
      %2885 = vmatpush.bf16.msra.mxu0 %v2350
      %2886 = vmatpush.bf16.msra.mxu0 %v2334
      %2887 = vmatpush.bf16.msra.mxu0 %v2318
      %2888 = vmatpush.bf16.msra.mxu0 %v2302
      %2889 = vmatpush.bf16.msra.mxu0 %v2286
      %2890 = vmatpush.bf16.msra.mxu0 %v2270
      %2891 = vmatpush.bf16.msra.mxu0 %v2254
      %2892 = vmatpush.bf16.msra.mxu0 %v2238
      %2893 = vmatmul.bf16.gmra.mxu0 %v1075
      %v2894 = vpop.f32.mrf.mxu0
      %v2895 = vpop.f32.mrf.mxu0
      %v2896 = vadd.f32 %v2883, %v2895
      %2897 = vdwg.mxu0
      %2898 = vmatpush.bf16.msra.mxu0 %v2223
      %2899 = vmatpush.bf16.msra.mxu0 %v2207
      %2900 = vmatpush.bf16.msra.mxu0 %v2191
      %2901 = vmatpush.bf16.msra.mxu0 %v2175
      %2902 = vmatpush.bf16.msra.mxu0 %v2159
      %2903 = vmatpush.bf16.msra.mxu0 %v2143
      %2904 = vmatpush.bf16.msra.mxu0 %v2127
      %2905 = vmatpush.bf16.msra.mxu0 %v2111
      %2906 = vmatmul.bf16.gmra.mxu0 %v1074
      %v2907 = vpop.f32.mrf.mxu0
      %v2908 = vpop.f32.mrf.mxu0
      %v2909 = vadd.f32 0.0, %v2908
      %2910 = vdwg.mxu0
      %2911 = vmatpush.bf16.msra.mxu0 %v2351
      %2912 = vmatpush.bf16.msra.mxu0 %v2335
      %2913 = vmatpush.bf16.msra.mxu0 %v2319
      %2914 = vmatpush.bf16.msra.mxu0 %v2303
      %2915 = vmatpush.bf16.msra.mxu0 %v2287
      %2916 = vmatpush.bf16.msra.mxu0 %v2271
      %2917 = vmatpush.bf16.msra.mxu0 %v2255
      %2918 = vmatpush.bf16.msra.mxu0 %v2239
      %2919 = vmatmul.bf16.gmra.mxu0 %v1075
      %v2920 = vpop.f32.mrf.mxu0
      %v2921 = vpop.f32.mrf.mxu0
      %v2922 = vadd.f32 %v2909, %v2921
      %2923 = vdwg.mxu0
      %2924 = vmatpush.bf16.msra.mxu0 %v2224
      %2925 = vmatpush.bf16.msra.mxu0 %v2208
      %2926 = vmatpush.bf16.msra.mxu0 %v2192
      %2927 = vmatpush.bf16.msra.mxu0 %v2176
      %2928 = vmatpush.bf16.msra.mxu0 %v2160
      %2929 = vmatpush.bf16.msra.mxu0 %v2144
      %2930 = vmatpush.bf16.msra.mxu0 %v2128
      %2931 = vmatpush.bf16.msra.mxu0 %v2112
      %2932 = vmatmul.bf16.gmra.mxu0 %v1074
      %v2933 = vpop.f32.mrf.mxu0
      %v2934 = vpop.f32.mrf.mxu0
      %v2935 = vadd.f32 0.0, %v2934
      %2936 = vdwg.mxu0
      %2937 = vmatpush.bf16.msra.mxu0 %v2352
      %2938 = vmatpush.bf16.msra.mxu0 %v2336
      %2939 = vmatpush.bf16.msra.mxu0 %v2320
      %2940 = vmatpush.bf16.msra.mxu0 %v2304
      %2941 = vmatpush.bf16.msra.mxu0 %v2288
      %2942 = vmatpush.bf16.msra.mxu0 %v2272
      %2943 = vmatpush.bf16.msra.mxu0 %v2256
      %2944 = vmatpush.bf16.msra.mxu0 %v2240
      %2945 = vmatmul.bf16.gmra.mxu0 %v1075
      %v2946 = vpop.f32.mrf.mxu0
      %v2947 = vpop.f32.mrf.mxu0
      %v2948 = vadd.f32 %v2935, %v2947
      %2949 = vdwg.mxu0
      %2950 = vmatpush.bf16.msra.mxu0 %v2225
      %2951 = vmatpush.bf16.msra.mxu0 %v2209
      %2952 = vmatpush.bf16.msra.mxu0 %v2193
      %2953 = vmatpush.bf16.msra.mxu0 %v2177
      %2954 = vmatpush.bf16.msra.mxu0 %v2161
      %2955 = vmatpush.bf16.msra.mxu0 %v2145
      %2956 = vmatpush.bf16.msra.mxu0 %v2129
      %2957 = vmatpush.bf16.msra.mxu0 %v2113
      %2958 = vmatmul.bf16.gmra.mxu0 %v1074
      %v2959 = vpop.f32.mrf.mxu0
      %v2960 = vpop.f32.mrf.mxu0
      %v2961 = vadd.f32 0.0, %v2960
      %2962 = vdwg.mxu0
      %2963 = vmatpush.bf16.msra.mxu0 %v2353
      %2964 = vmatpush.bf16.msra.mxu0 %v2337
      %2965 = vmatpush.bf16.msra.mxu0 %v2321
      %2966 = vmatpush.bf16.msra.mxu0 %v2305
      %2967 = vmatpush.bf16.msra.mxu0 %v2289
      %2968 = vmatpush.bf16.msra.mxu0 %v2273
      %2969 = vmatpush.bf16.msra.mxu0 %v2257
      %2970 = vmatpush.bf16.msra.mxu0 %v2241
      %2971 = vmatmul.bf16.gmra.mxu0 %v1075
      %v2972 = vpop.f32.mrf.mxu0
      %v2973 = vpop.f32.mrf.mxu0
      %v2974 = vadd.f32 %v2961, %v2973
      %2975 = vdwg.mxu0
      %2976 = vmatpush.bf16.msra.mxu0 %v2226
      %2977 = vmatpush.bf16.msra.mxu0 %v2210
      %2978 = vmatpush.bf16.msra.mxu0 %v2194
      %2979 = vmatpush.bf16.msra.mxu0 %v2178
      %2980 = vmatpush.bf16.msra.mxu0 %v2162
      %2981 = vmatpush.bf16.msra.mxu0 %v2146
      %2982 = vmatpush.bf16.msra.mxu0 %v2130
      %2983 = vmatpush.bf16.msra.mxu0 %v2114
      %2984 = vmatmul.bf16.gmra.mxu0 %v1074
      %v2985 = vpop.f32.mrf.mxu0
      %v2986 = vpop.f32.mrf.mxu0
      %v2987 = vadd.f32 0.0, %v2986
      %2988 = vdwg.mxu0
      %2989 = vmatpush.bf16.msra.mxu0 %v2354
      %2990 = vmatpush.bf16.msra.mxu0 %v2338
      %2991 = vmatpush.bf16.msra.mxu0 %v2322
      %2992 = vmatpush.bf16.msra.mxu0 %v2306
      %2993 = vmatpush.bf16.msra.mxu0 %v2290
      %2994 = vmatpush.bf16.msra.mxu0 %v2274
      %2995 = vmatpush.bf16.msra.mxu0 %v2258
      %2996 = vmatpush.bf16.msra.mxu0 %v2242
      %2997 = vmatmul.bf16.gmra.mxu0 %v1075
      %v2998 = vpop.f32.mrf.mxu0
      %v2999 = vpop.f32.mrf.mxu0
      %v3000 = vadd.f32 %v2987, %v2999
      %3001 = vdwg.mxu0
      %3002 = vmatpush.bf16.msra.mxu0 %v2227
      %3003 = vmatpush.bf16.msra.mxu0 %v2211
      %3004 = vmatpush.bf16.msra.mxu0 %v2195
      %3005 = vmatpush.bf16.msra.mxu0 %v2179
      %3006 = vmatpush.bf16.msra.mxu0 %v2163
      %3007 = vmatpush.bf16.msra.mxu0 %v2147
      %3008 = vmatpush.bf16.msra.mxu0 %v2131
      %3009 = vmatpush.bf16.msra.mxu0 %v2115
      %3010 = vmatmul.bf16.gmra.mxu0 %v1074
      %v3011 = vpop.f32.mrf.mxu0
      %v3012 = vpop.f32.mrf.mxu0
      %v3013 = vadd.f32 0.0, %v3012
      %3014 = vdwg.mxu0
      %3015 = vmatpush.bf16.msra.mxu0 %v2355
      %3016 = vmatpush.bf16.msra.mxu0 %v2339
      %3017 = vmatpush.bf16.msra.mxu0 %v2323
      %3018 = vmatpush.bf16.msra.mxu0 %v2307
      %3019 = vmatpush.bf16.msra.mxu0 %v2291
      %3020 = vmatpush.bf16.msra.mxu0 %v2275
      %3021 = vmatpush.bf16.msra.mxu0 %v2259
      %3022 = vmatpush.bf16.msra.mxu0 %v2243
      %3023 = vmatmul.bf16.gmra.mxu0 %v1075
      %v3024 = vpop.f32.mrf.mxu0
      %v3025 = vpop.f32.mrf.mxu0
      %v3026 = vadd.f32 %v3013, %v3025
      %3027 = vdwg.mxu0
      %v3029 = vrot.slane %v2661, 1
      %v3031 = vadd.f32 %v2635, %v3029
      %v3033 = vrot.slane %v2687, 2
      %v3035 = vadd.f32 %v3031, %v3033
      %v3037 = vrot.slane %v2713, 3
      %v3039 = vadd.f32 %v3035, %v3037
      %v3041 = vrot.slane %v2739, 4
      %v3043 = vadd.f32 %v3039, %v3041
      %v3045 = vrot.slane %v2765, 5
      %v3047 = vadd.f32 %v3043, %v3045
      %v3049 = vrot.slane %v2791, 6
      %v3051 = vadd.f32 %v3047, %v3049
      %v3053 = vrot.slane %v2817, 7
      %v3055 = vadd.f32 %v3051, %v3053
      %v3056 = vadd.f32 %v3055, %v2844
      %v3058 = vrot.slane %v2870, 1
      %v3060 = vadd.f32 %v3056, %v3058
      %v3062 = vrot.slane %v2896, 2
      %v3064 = vadd.f32 %v3060, %v3062
      %v3066 = vrot.slane %v2922, 3
      %v3068 = vadd.f32 %v3064, %v3066
      %v3070 = vrot.slane %v2948, 4
      %v3072 = vadd.f32 %v3068, %v3070
      %v3074 = vrot.slane %v2974, 5
      %v3076 = vadd.f32 %v3072, %v3074
      %v3078 = vrot.slane %v3000, 6
      %v3080 = vadd.f32 %v3076, %v3078
      %v3082 = vrot.slane %v3026, 7
      %v3084 = vadd.f32 %v3080, %v3082
      %v3085 = vld [vmem:[%s4] sm:$0x1]
      %v3086 = vadd.f32 %v3084, %v3085
      %v3087 = vmax.f32 %v3086, 0.0
      %v3088 = vpack.c.bf16 %v3087, %v3087
      %v3089 = vld [vmem:[%s5] sm:$0xf]
      %v3090 = vld [vmem:[%s5 + $0x4] sm:$0xf]
      %v3091 = vld [vmem:[%s5 + $0x8] sm:$0xf]
      %v3092 = vld [vmem:[%s5 + $0xc] sm:$0xf]
      %v3093 = vld [vmem:[%s5 + $0x10] sm:$0xf]
      %v3094 = vld [vmem:[%s5 + $0x14] sm:$0xf]
      %v3095 = vld [vmem:[%s5 + $0x18] sm:$0xf]
      %v3096 = vld [vmem:[%s5 + $0x1c] sm:$0xf]
      %v3097 = vld [vmem:[%s5 + $0x20] sm:$0xf]
      %v3098 = vld [vmem:[%s5 + $0x24] sm:$0xf]
      %v3099 = vld [vmem:[%s5 + $0x28] sm:$0xf]
      %v3100 = vld [vmem:[%s5 + $0x2c] sm:$0xf]
      %v3101 = vld [vmem:[%s5 + $0x30] sm:$0xf]
      %v3102 = vld [vmem:[%s5 + $0x34] sm:$0xf]
      %v3103 = vld [vmem:[%s5 + $0x38] sm:$0xf]
      %v3104 = vld [vmem:[%s5 + $0x3c] sm:$0xf]
      %v3105 = vld [vmem:[%s6] sm:$0x1]
      %v3122 = vunpack.c.l.b16 %v3089
      %v3123 = vunpack.c.l.b16 %v3090
      %v3124 = vunpack.c.l.b16 %v3091
      %v3125 = vunpack.c.l.b16 %v3092
      %v3126 = vunpack.c.l.b16 %v3093
      %v3127 = vunpack.c.l.b16 %v3094
      %v3128 = vunpack.c.l.b16 %v3095
      %v3129 = vunpack.c.l.b16 %v3096
      %v3130 = vunpack.c.l.b16 %v3097
      %v3131 = vunpack.c.l.b16 %v3098
      %v3132 = vunpack.c.l.b16 %v3099
      %v3133 = vunpack.c.l.b16 %v3100
      %v3134 = vunpack.c.l.b16 %v3101
      %v3135 = vunpack.c.l.b16 %v3102
      %v3136 = vunpack.c.l.b16 %v3103
      %v3137 = vunpack.c.l.b16 %v3104
      %v3138 = vpack.c.b16 %v3123, %v3122
      %v3139 = vpack.c.b16 %v3125, %v3124
      %v3140 = vpack.c.b16 %v3127, %v3126
      %v3141 = vpack.c.b16 %v3129, %v3128
      %v3142 = vpack.c.b16 %v3131, %v3130
      %v3143 = vpack.c.b16 %v3133, %v3132
      %v3144 = vpack.c.b16 %v3135, %v3134
      %v3145 = vpack.c.b16 %v3137, %v3136
      %3154 = vmatpush.bf16.msra.mxu0 %v3145
      %3155 = vmatpush.bf16.msra.mxu0 %v3144
      %3156 = vmatpush.bf16.msra.mxu0 %v3143
      %3157 = vmatpush.bf16.msra.mxu0 %v3142
      %3158 = vmatpush.bf16.msra.mxu0 %v3141
      %3159 = vmatpush.bf16.msra.mxu0 %v3140
      %3160 = vmatpush.bf16.msra.mxu0 %v3139
      %3161 = vmatpush.bf16.msra.mxu0 %v3138
      %3162 = vmatmul.bf16.gmra.mxu0 %v3088
      %v3163 = vpop.f32.mrf.mxu0
      %v3164 = vadd.f32 %v3105, %v3163
      %v3165 = vpop.f32.mrf.mxu0
      %3166 = vdwg.mxu0
      %v3167 = vmax.f32 %v3164, 0.0
      %v3168 = vpack.c.bf16 %v3167, %v3167
      %v3169 = vld [vmem:[%s7] sm:$0xf]
      %v3170 = vld [vmem:[%s7 + $0x4] sm:$0xf]
      %v3171 = vld [vmem:[%s7 + $0x8] sm:$0xf]
      %v3172 = vld [vmem:[%s7 + $0xc] sm:$0xf]
      %v3173 = vld [vmem:[%s7 + $0x10] sm:$0xf]
      %v3174 = vld [vmem:[%s7 + $0x14] sm:$0xf]
      %v3175 = vld [vmem:[%s7 + $0x18] sm:$0xf]
      %v3176 = vld [vmem:[%s7 + $0x1c] sm:$0xf]
      %v3177 = vld [vmem:[%s7 + $0x20] sm:$0xf]
      %v3178 = vld [vmem:[%s7 + $0x24] sm:$0xf]
      %v3179 = vld [vmem:[%s7 + $0x28] sm:$0xf]
      %v3180 = vld [vmem:[%s7 + $0x2c] sm:$0xf]
      %v3181 = vld [vmem:[%s7 + $0x30] sm:$0xf]
      %v3182 = vld [vmem:[%s7 + $0x34] sm:$0xf]
      %v3183 = vld [vmem:[%s7 + $0x38] sm:$0xf]
      %v3184 = vld [vmem:[%s7 + $0x3c] sm:$0xf]
      %v3185 = vld [vmem:[%s8] sm:$0x1]
      %v3202 = vunpack.c.l.b16 %v3169
      %v3203 = vunpack.c.l.b16 %v3170
      %v3204 = vunpack.c.l.b16 %v3171
      %v3205 = vunpack.c.l.b16 %v3172
      %v3206 = vunpack.c.l.b16 %v3173
      %v3207 = vunpack.c.l.b16 %v3174
      %v3208 = vunpack.c.l.b16 %v3175
      %v3209 = vunpack.c.l.b16 %v3176
      %v3210 = vunpack.c.l.b16 %v3177
      %v3211 = vunpack.c.l.b16 %v3178
      %v3212 = vunpack.c.l.b16 %v3179
      %v3213 = vunpack.c.l.b16 %v3180
      %v3214 = vunpack.c.l.b16 %v3181
      %v3215 = vunpack.c.l.b16 %v3182
      %v3216 = vunpack.c.l.b16 %v3183
      %v3217 = vunpack.c.l.b16 %v3184
      %v3218 = vpack.c.b16 %v3203, %v3202
      %v3219 = vpack.c.b16 %v3205, %v3204
      %v3220 = vpack.c.b16 %v3207, %v3206
      %v3221 = vpack.c.b16 %v3209, %v3208
      %v3222 = vpack.c.b16 %v3211, %v3210
      %v3223 = vpack.c.b16 %v3213, %v3212
      %v3224 = vpack.c.b16 %v3215, %v3214
      %v3225 = vpack.c.b16 %v3217, %v3216
      %3234 = vmatpush.bf16.msra.mxu0 %v3225
      %3235 = vmatpush.bf16.msra.mxu0 %v3224
      %3236 = vmatpush.bf16.msra.mxu0 %v3223
      %3237 = vmatpush.bf16.msra.mxu0 %v3222
      %3238 = vmatpush.bf16.msra.mxu0 %v3221
      %3239 = vmatpush.bf16.msra.mxu0 %v3220
      %3240 = vmatpush.bf16.msra.mxu0 %v3219
      %3241 = vmatpush.bf16.msra.mxu0 %v3218
      %3242 = vmatmul.bf16.gmra.mxu0 %v3168
      %v3243 = vpop.f32.mrf.mxu0
      %v3244 = vadd.f32 %v3185, %v3243
      %v3245 = vpop.f32.mrf.mxu0
      %3246 = vdwg.mxu0
      %3247 = vst [vmem:[%s328] sm:$0x1] %v3244
      %p3248 = scmp.lt.s32.totalorder %s20, 1
      %s3249 = scalar_select %p3248, %s20, 1
      %s3250 = scalar_lea.vmem %s9, %s3249
      // Predicated region
      $region57: #{value_net_forward.3} parent=55 // pred_check
        %p3251 = pneg %p232
      $region58: #{value_net_forward.3} parent=55 // pred_check_branch
        %3253 = sbr.rel (%p3251) target = $region60
      $region59: #{value_net_forward.3} parent=55 // pred_region
        _
      $region60: #{value_net_forward.3} parent=55 // pred_fallthru
        _
    $region56: #{value_net_forward.3} parent=5 // pred_fallthru
      _
    %p3254 = scmp.le.s32.totalorder 2, %s15
    // Predicated region
    $region61: #{value_net_forward.3} parent=5 // pred_check
      %p3255 = pneg %p3254
    $region62: #{value_net_forward.3} parent=5 // pred_check_branch
      %3257 = sbr.rel (%p3255) target = $region64
    $region63: #{value_net_forward.3} parent=5 // pred_region
      %s3258 = ssub.s32 %s15, 2
      // Predicated region
      $region65: #{value_net_forward.3} parent=63 // pred_check
        %p3259 = pneg %p238
      $region66: #{value_net_forward.3} parent=63 // pred_check_branch
        %3261 = sbr.rel (%p3259) target = $region68
      $region67: #{value_net_forward.3} parent=63 // pred_region
        %p3262 = scmp.lt.s32.totalorder %s21, 1
        %s3263 = scalar_select %p3262, %s21, 1
        %s3264 = scalar_lea.vmem %s9, %s3263
      $region68: #{value_net_forward.3} parent=63 // pred_fallthru
        _
    $region64: #{value_net_forward.3} parent=5 // pred_fallthru
      _
  $region6: #{value_net_forward.3} parent=0 // loop_footer
    %s19 = sadd.s32 1, %s15
  $region7: #{value_net_forward.3} parent=0 // loop_footer_branch
    %14 = sbr.rel target = $region3
  $region8: #{value_net_forward.3} parent=0 // loop_exit
    _

</llo_original>
